<compile_context>
chip_gen: v7x
topology: tpu7x:2x2x1
jax: 0.10.0
libtpu: 0.0.40
codegen_flags: <defaults>
</compile_context>

<pallas_src>
import functools

import jax
import jax.numpy as jnp
from jax.experimental import pallas as pl
from jax.experimental.pallas import tpu as pltpu


def _round_up(x, m):
    return ((x + m - 1) // m) * m


def _spec2d(shape):
    # full-array block (satisfies the "full dims" exemption of the (8,128) rule)
    return pl.BlockSpec(shape, lambda i: (0, 0))


def _head_broadcast(cols, width):
    # cols: list of (R, 1) arrays -> (R, len(cols)*width); pure VPU lane-broadcast.
    rows = cols[0].shape[0]
    return jnp.concatenate([jnp.broadcast_to(c, (rows, width)) for c in cols], axis=1)


# --------------------------- fused forward kernel ----------------------------
def _gat_forward_kernel(*refs, num_layers, heads, neg_slope):
    (xfeat_ref, eattr_ref, src_ref, dst_ref, batch_ref,
     node_w_ref, node_b_ref, edge_w_ref, edge_b_ref) = refs[:9]
    pos = 9
    layer_refs = []
    for _ in range(num_layers):
        layer_refs.append(refs[pos:pos + 5])
        pos += 5
    lin1_w_ref, lin1_b_ref, lin2_w_ref, lin2_b_ref = refs[pos:pos + 4]
    out_ref = refs[pos + 4]

    f32 = jnp.float32
    bf16 = jnp.bfloat16

    E = src_ref.shape[0]
    N = xfeat_ref.shape[0]
    G = out_ref.shape[0]

    # Build the gather/scatter one-hots in VMEM from the int32 index vectors
    # (no E×N operands in HBM, no host-side transpose). Values are exactly 0/1,
    # so bf16 gather/scatter matmuls with f32 accumulation are exact in the
    # one-hot operand.
    edge_iota = jax.lax.broadcasted_iota(jnp.int32, (E, N), 1)
    S = (edge_iota == src_ref[...]).astype(bf16)     # (E, N) one-hot(src)
    D = (edge_iota == dst_ref[...]).astype(bf16)     # (E, N) one-hot(dst)

    # ---------------- node / edge encoders (Linear + ReLU) ----------------
    h = jnp.dot(xfeat_ref[...], node_w_ref[...], preferred_element_type=f32) + node_b_ref[...]
    h = jnp.maximum(h, 0.0)
    f = jnp.dot(eattr_ref[...], edge_w_ref[...], preferred_element_type=f32) + edge_b_ref[...]
    f = jnp.maximum(f, 0.0)

    # --------------------------- EGATConv layers ---------------------------
    for wn_ref, b_node_ref, w_fij_ref, b_e_ref, attn_ref in layer_refs:
        b_node = b_node_ref[...]                     # (1, HFn)
        b_e = b_e_ref[...]                           # (1, HFe)
        attn_mat = attn_ref[...]                     # (HFe, H) block-diagonal
        hfn = b_node.shape[1]
        hfe = b_e.shape[1]
        fn = hfn // heads
        pn = _round_up(hfn, 128)                     # lane-padded segment widths
        pe = _round_up(hfe, 128)

        # one wide, lane-padded node-side projection [fc_node |0| fc_ni |0| fc_nj];
        # all slice starts below are multiples of 128.
        hw = jnp.dot(h, wn_ref[...], preferred_element_type=f32)      # (N, pn+pe+hfe)
        src_part = hw[:, :pn + pe]                    # fc_node | fc_ni (for src gather)
        dst_part = hw[:, pn + pe:]                    # fc_nj           (for dst gather)

        g_src = jnp.dot(S, src_part.astype(bf16), preferred_element_type=f32)   # (E, pn+pe)
        g_dst = jnp.dot(D, dst_part.astype(bf16), preferred_element_type=f32)   # (E, hfe)
        msg = g_src[:, :hfn] + b_node                 # fc_node(h_src) + bias, at edges
        f_ni = g_src[:, pn:pn + hfe]                  # starts on a 128-lane boundary

        f_fij = jnp.dot(f, w_fij_ref[...], preferred_element_type=f32)          # (E, hfe)
        f_pre = f_ni + g_dst + f_fij + b_e
        # DGL EGATConv applies F.leaky_relu with the default slope (0.01)
        f_act = jnp.where(f_pre > 0, f_pre, neg_slope * f_pre)                  # (E, hfe)

        # attention logits for ALL heads with one block-diagonal matmul (E,HFe)@(HFe,H)
        e_all = jnp.dot(f_act, attn_mat, preferred_element_type=f32)            # (E, H)
        # global per-head max: exact for edge_softmax (shift-invariance), removes
        # all (E,N) masked-max temporaries from the critical path.
        gmax = jnp.max(e_all, axis=0, keepdims=True)                            # (1, H)
        ex_all = jnp.exp(e_all - gmax)                                          # (E, H)

        ex_rep = _head_broadcast([ex_all[:, hd:hd + 1] for hd in range(heads)], fn)  # (E, HFn)

        # single scatter: contract D's axis 0 (transposed-LHS matmul, no DT buffer);
        # ordered [msg*exp | exp] so the big `unnorm` slab starts at lane 0.
        agg_in = jnp.concatenate([msg * ex_rep, ex_all], axis=1)                # (E, HFn+H)
        agg = jax.lax.dot_general(D, agg_in.astype(bf16),
                                  (((0,), (0,)), ((), ())),
                                  preferred_element_type=f32)                    # (N, HFn+H)
        unnorm = agg[:, :hfn]
        denom = agg[:, hfn:]
        safe = jnp.where(denom > 0, denom, 1.0)
        recip = jnp.where(denom > 0, pl.reciprocal(safe, approx=True), 0.0)      # (N, H)
        recip_rep = _head_broadcast([recip[:, hd:hd + 1] for hd in range(heads)], fn)

        # post-layer ReLU + head flatten (already flat, head-major)
        h = jnp.maximum(unnorm * recip_rep, 0.0)                                 # (N, HFn)
        f = jnp.maximum(f_act, 0.0)                                              # (E, HFe)

    # --------------------- global_add_pool + MLP head ----------------------
    graph_iota = jax.lax.broadcasted_iota(jnp.int32, (N, G), 1)
    B = (graph_iota == batch_ref[...]).astype(f32)                               # (N, G)
    pooled = jax.lax.dot_general(B, h, (((0,), (0,)), ((), ())),
                                 preferred_element_type=f32)                     # (G, HFn)
    z = jnp.dot(pooled, lin1_w_ref[...], preferred_element_type=f32) + lin1_b_ref[...]
    z = jnp.maximum(z, 0.0)
    out_ref[...] = jnp.dot(z, lin2_w_ref[...], preferred_element_type=f32) + lin2_b_ref[...]


# --------------------------- parameters (deterministic) ----------------------
def _dense(key, fan_in, fan_out, scale=0.1):
    kw, kb = jax.random.split(key)
    w = scale * jax.random.normal(kw, (fan_in, fan_out), jnp.float32)
    b = scale * jax.random.normal(kb, (1, fan_out), jnp.float32)
    return w, b


def init_params(key, node_f, edge_f, conv_layers=3):
    out_size = 32 // 2           # 16
    heads = 2
    hidden_n = [64 // 2, 128 // 2, 64 // 2]   # [32, 64, 32]
    hidden_e = [64 // 2, 128 // 2, 64 // 2]

    keys = jax.random.split(key, 4 + conv_layers)
    p = {"heads": heads}
    p["node_w"], p["node_b"] = _dense(keys[0], node_f, out_size)
    p["edge_w"], p["edge_b"] = _dense(keys[1], edge_f, out_size)

    gat = []
    in_n, in_e = out_size, out_size
    for l in range(conv_layers):
        on, oe = hidden_n[l], hidden_e[l]
        hfn, hfe = heads * on, heads * oe
        pn, pe = _round_up(hfn, 128), _round_up(hfe, 128)
        lk = jax.random.split(keys[2 + l], 6)
        w_ni = 0.1 * jax.random.normal(lk[0], (in_n, hfe), jnp.float32)
        w_nj = 0.1 * jax.random.normal(lk[1], (in_n, hfe), jnp.float32)
        w_fij = 0.1 * jax.random.normal(lk[2], (in_e, hfe), jnp.float32)
        w_node, b_node = _dense(lk[3], in_n, hfn)
        b_e = 0.1 * jax.random.normal(lk[4], (1, hfe), jnp.float32)
        attn = 0.1 * jax.random.normal(lk[5], (heads, oe), jnp.float32)

        # block-diagonal attention matrix: one (E,HFe)@(HFe,H) matmul yields all
        # per-head logits -> no unaligned per-head lane slices in the kernel.
        attn_mat = jnp.zeros((hfe, heads), jnp.float32)
        for hd in range(heads):
            attn_mat = attn_mat.at[hd * oe:(hd + 1) * oe, hd].set(attn[hd])

        # fused, lane-padded node-side projection [fc_node |0| fc_ni |0| fc_nj]:
        # every slice consumed in the kernel starts on a 128-lane boundary
        # (zero columns are free on the 256-wide MXU of v6e/v7x).
        w_all = jnp.concatenate(
            [w_node, jnp.zeros((in_n, pn - hfn), jnp.float32),
             w_ni, jnp.zeros((in_n, pe - hfe), jnp.float32),
             w_nj], axis=1)
        gat.append(dict(w_all=w_all, b_node=b_node, w_fij=w_fij, b_e=b_e,
                        attn_mat=attn_mat))
        in_n, in_e = hfn, hfe
    p["gat"] = gat

    p["lin1_w"], p["lin1_b"] = _dense(keys[-2], hidden_n[-1] * heads, hidden_n[-1])
    p["lin2_w"], p["lin2_b"] = _dense(keys[-1], hidden_n[-1], 1)
    return p


# ----------------------------------- forward ---------------------------------
def gat_forward(params, x, pos, edge_attr, src, dst, batch, num_graphs):
    N = x.shape[0]
    E = src.shape[0]
    feat = jnp.concatenate([x, pos], axis=1).astype(jnp.float32)        # (N, node_f)

    # only the int32 index vectors cross HBM; the (E,N)/(N,G) one-hots are built
    # inside the kernel (saves ~3*E*N*2 bytes of HBM write+read per call).
    src_col = src.astype(jnp.int32).reshape(E, 1)
    dst_col = dst.astype(jnp.int32).reshape(E, 1)
    batch_col = batch.astype(jnp.int32).reshape(N, 1)

    args = [feat, edge_attr.astype(jnp.float32), src_col, dst_col, batch_col,
            params["node_w"], params["node_b"], params["edge_w"], params["edge_b"]]
    for lp in params["gat"]:
        args += [lp["w_all"], lp["b_node"], lp["w_fij"], lp["b_e"], lp["attn_mat"]]
    args += [params["lin1_w"], params["lin1_b"], params["lin2_w"], params["lin2_b"]]

    # generation-specific VMEM budget: ~48 MiB on v7x (64 MiB physical),
    # ~96 MiB on v5e/v6e (128 MiB physical), with headroom for compiler scratch.
    try:
        vmem_cap = pltpu.get_tpu_info().vmem_capacity_bytes
    except Exception:
        vmem_cap = 64 * 1024 * 1024
    vmem_limit = min(100 * 1024 * 1024, (vmem_cap * 3) // 4)

    kernel = functools.partial(_gat_forward_kernel,
                               num_layers=len(params["gat"]),
                               heads=params["heads"],
                               neg_slope=0.01)
    return pl.pallas_call(
        kernel,
        out_shape=jax.ShapeDtypeStruct((num_graphs, 1), jnp.float32),
        grid=(1,),
        in_specs=[_spec2d(a.shape) for a in args],
        out_specs=_spec2d((num_graphs, 1)),
        compiler_params=pltpu.CompilerParams(
            dimension_semantics=("arbitrary",),
            vmem_limit_bytes=int(vmem_limit)),
    )(*args)
    # TODO(synk): for large graphs, replace the dense one-hot machinery with
    # scalar-prefetched src/dst indices on an E-tiled "arbitrary" grid axis
    # (pl.Buffered edge-block specs, h kept as a VMEM accumulator).


# ------------------------------------- main -----------------------------------
if __name__ == "__main__":
    key = jax.random.PRNGKey(0)
    k_x, k_pos, k_e, k_p = jax.random.split(key, 4)

    # small synthetic batch of 2 graphs, 6 nodes each (ring graphs)
    num_graphs = 2
    nodes_per_graph = 6
    N = num_graphs * nodes_per_graph
    node_f = 8           # node_layer in_features: 5 raw features + 3 coords
    edge_f = 4

    x = jax.random.normal(k_x, (N, node_f - 3), jnp.float32)
    pos = jax.random.normal(k_pos, (N, 3), jnp.float32)

    src_list, dst_list = [], []
    for g in range(num_graphs):
        base = g * nodes_per_graph
        for i in range(nodes_per_graph):
            j = (i + 1) % nodes_per_graph
            src_list += [base + i, base + j]
            dst_list += [base + j, base + i]
    src = jnp.asarray(src_list, jnp.int32)
    dst = jnp.asarray(dst_list, jnp.int32)
    E = src.shape[0]
    edge_attr = jax.random.normal(k_e, (E, edge_f), jnp.float32)
    batch = jnp.repeat(jnp.arange(num_graphs, dtype=jnp.int32), nodes_per_graph)

    params = init_params(k_p, node_f, edge_f, conv_layers=3)

    out = gat_forward(params, x, pos, edge_attr, src, dst, batch, num_graphs)
    out = jax.block_until_ready(out)
    assert out.shape == (num_graphs, 1)
    print("KERNEL_OK")
</pallas_src>

<mosaic_0001>
module attributes {stable_mosaic.version = 11 : i64} {
  func.func @_gat_forward_kernel(%arg0: i32, %arg1: memref<12x8xf32, #tpu.memory_space<vmem>>, %arg2: memref<24x4xf32, #tpu.memory_space<vmem>>, %arg3: memref<24x1xi32, #tpu.memory_space<vmem>>, %arg4: memref<24x1xi32, #tpu.memory_space<vmem>>, %arg5: memref<12x1xi32, #tpu.memory_space<vmem>>, %arg6: memref<8x16xf32, #tpu.memory_space<vmem>>, %arg7: memref<1x16xf32, #tpu.memory_space<vmem>>, %arg8: memref<4x16xf32, #tpu.memory_space<vmem>>, %arg9: memref<1x16xf32, #tpu.memory_space<vmem>>, %arg10: memref<16x320xf32, #tpu.memory_space<vmem>>, %arg11: memref<1x64xf32, #tpu.memory_space<vmem>>, %arg12: memref<16x64xf32, #tpu.memory_space<vmem>>, %arg13: memref<1x64xf32, #tpu.memory_space<vmem>>, %arg14: memref<64x2xf32, #tpu.memory_space<vmem>>, %arg15: memref<64x384xf32, #tpu.memory_space<vmem>>, %arg16: memref<1x128xf32, #tpu.memory_space<vmem>>, %arg17: memref<64x128xf32, #tpu.memory_space<vmem>>, %arg18: memref<1x128xf32, #tpu.memory_space<vmem>>, %arg19: memref<128x2xf32, #tpu.memory_space<vmem>>, %arg20: memref<128x320xf32, #tpu.memory_space<vmem>>, %arg21: memref<1x64xf32, #tpu.memory_space<vmem>>, %arg22: memref<128x64xf32, #tpu.memory_space<vmem>>, %arg23: memref<1x64xf32, #tpu.memory_space<vmem>>, %arg24: memref<64x2xf32, #tpu.memory_space<vmem>>, %arg25: memref<64x32xf32, #tpu.memory_space<vmem>>, %arg26: memref<1x32xf32, #tpu.memory_space<vmem>>, %arg27: memref<32x1xf32, #tpu.memory_space<vmem>>, %arg28: memref<1x1xf32, #tpu.memory_space<vmem>>, %arg29: memref<2x1xf32, #tpu.memory_space<vmem>>) attributes {dimension_semantics = [#tpu.dimension_semantics<arbitrary>], iteration_bounds = array<i64: 1>, scalar_prefetch = 0 : i64, scratch_operands = 0 : i64, tpu.core_type = #tpu.core_type<tc>, window_params = [{pipeline_mode = #tpu.pipeline_mode<synchronous>, transform_indices = @transform_0, window_bounds = array<i64: 12, 8>}, {pipeline_mode = #tpu.pipeline_mode<synchronous>, transform_indices = @transform_1, window_bounds = array<i64: 24, 4>}, {pipeline_mode = #tpu.pipeline_mode<synchronous>, transform_indices = @transform_2, window_bounds = array<i64: 24, 1>}, {pipeline_mode = #tpu.pipeline_mode<synchronous>, transform_indices = @transform_3, window_bounds = array<i64: 24, 1>}, {pipeline_mode = #tpu.pipeline_mode<synchronous>, transform_indices = @transform_4, window_bounds = array<i64: 12, 1>}, {pipeline_mode = #tpu.pipeline_mode<synchronous>, transform_indices = @transform_5, window_bounds = array<i64: 8, 16>}, {pipeline_mode = #tpu.pipeline_mode<synchronous>, transform_indices = @transform_6, window_bounds = array<i64: 1, 16>}, {pipeline_mode = #tpu.pipeline_mode<synchronous>, transform_indices = @transform_7, window_bounds = array<i64: 4, 16>}, {pipeline_mode = #tpu.pipeline_mode<synchronous>, transform_indices = @transform_8, window_bounds = array<i64: 1, 16>}, {pipeline_mode = #tpu.pipeline_mode<synchronous>, transform_indices = @transform_9, window_bounds = array<i64: 16, 320>}, {pipeline_mode = #tpu.pipeline_mode<synchronous>, transform_indices = @transform_10, window_bounds = array<i64: 1, 64>}, {pipeline_mode = #tpu.pipeline_mode<synchronous>, transform_indices = @transform_11, window_bounds = array<i64: 16, 64>}, {pipeline_mode = #tpu.pipeline_mode<synchronous>, transform_indices = @transform_12, window_bounds = array<i64: 1, 64>}, {pipeline_mode = #tpu.pipeline_mode<synchronous>, transform_indices = @transform_13, window_bounds = array<i64: 64, 2>}, {pipeline_mode = #tpu.pipeline_mode<synchronous>, transform_indices = @transform_14, window_bounds = array<i64: 64, 384>}, {pipeline_mode = #tpu.pipeline_mode<synchronous>, transform_indices = @transform_15, window_bounds = array<i64: 1, 128>}, {pipeline_mode = #tpu.pipeline_mode<synchronous>, transform_indices = @transform_16, window_bounds = array<i64: 64, 128>}, {pipeline_mode = #tpu.pipeline_mode<synchronous>, transform_indices = @transform_17, window_bounds = array<i64: 1, 128>}, {pipeline_mode = #tpu.pipeline_mode<synchronous>, transform_indices = @transform_18, window_bounds = array<i64: 128, 2>}, {pipeline_mode = #tpu.pipeline_mode<synchronous>, transform_indices = @transform_19, window_bounds = array<i64: 128, 320>}, {pipeline_mode = #tpu.pipeline_mode<synchronous>, transform_indices = @transform_20, window_bounds = array<i64: 1, 64>}, {pipeline_mode = #tpu.pipeline_mode<synchronous>, transform_indices = @transform_21, window_bounds = array<i64: 128, 64>}, {pipeline_mode = #tpu.pipeline_mode<synchronous>, transform_indices = @transform_22, window_bounds = array<i64: 1, 64>}, {pipeline_mode = #tpu.pipeline_mode<synchronous>, transform_indices = @transform_23, window_bounds = array<i64: 64, 2>}, {pipeline_mode = #tpu.pipeline_mode<synchronous>, transform_indices = @transform_24, window_bounds = array<i64: 64, 32>}, {pipeline_mode = #tpu.pipeline_mode<synchronous>, transform_indices = @transform_25, window_bounds = array<i64: 1, 32>}, {pipeline_mode = #tpu.pipeline_mode<synchronous>, transform_indices = @transform_26, window_bounds = array<i64: 32, 1>}, {pipeline_mode = #tpu.pipeline_mode<synchronous>, transform_indices = @transform_27, window_bounds = array<i64: 1, 1>}, {pipeline_mode = #tpu.pipeline_mode<synchronous>, transform_indices = @transform_28, window_bounds = array<i64: 2, 1>}]} {
    %0 = tpu.iota {dimensions = array<i32: 1>} : vector<24x12xi32>
    %c0 = arith.constant 0 : index
    %c0_0 = arith.constant 0 : index
    %1 = vector.load %arg3[%c0, %c0_0] : memref<24x1xi32, #tpu.memory_space<vmem>>, vector<24x1xi32>
    %2 = vector.broadcast %1 : vector<24x1xi32> to vector<24x12xi32>
    %3 = arith.cmpi eq, %0, %2 : vector<24x12xi32>
    %4 = arith.extui %3 : vector<24x12xi1> to vector<24x12xi32>
    %5 = arith.sitofp %4 : vector<24x12xi32> to vector<24x12xf32>
    %6 = arith.truncf %5 : vector<24x12xf32> to vector<24x12xbf16>
    %c0_1 = arith.constant 0 : index
    %c0_2 = arith.constant 0 : index
    %7 = vector.load %arg4[%c0_1, %c0_2] : memref<24x1xi32, #tpu.memory_space<vmem>>, vector<24x1xi32>
    %8 = vector.broadcast %7 : vector<24x1xi32> to vector<24x12xi32>
    %9 = arith.cmpi eq, %0, %8 : vector<24x12xi32>
    %10 = arith.extui %9 : vector<24x12xi1> to vector<24x12xi32>
    %11 = arith.sitofp %10 : vector<24x12xi32> to vector<24x12xf32>
    %12 = arith.truncf %11 : vector<24x12xf32> to vector<24x12xbf16>
    %c0_3 = arith.constant 0 : index
    %c0_4 = arith.constant 0 : index
    %13 = vector.load %arg1[%c0_3, %c0_4] : memref<12x8xf32, #tpu.memory_space<vmem>>, vector<12x8xf32>
    %c0_5 = arith.constant 0 : index
    %c0_6 = arith.constant 0 : index
    %14 = vector.load %arg6[%c0_5, %c0_6] : memref<8x16xf32, #tpu.memory_space<vmem>>, vector<8x16xf32>
    %cst = arith.constant dense<0.000000e+00> : vector<12x16xf32>
    %15 = tpu.matmul %13, %14, %cst {dimension_numbers = #tpu.dot_dimension_numbers<[1], [0], [0], [1], [0, 0, 1, 1], [], []>} : vector<12x8xf32>, vector<8x16xf32>, vector<12x16xf32> -> vector<12x16xf32>
    %c0_7 = arith.constant 0 : index
    %c0_8 = arith.constant 0 : index
    %16 = vector.load %arg7[%c0_7, %c0_8] : memref<1x16xf32, #tpu.memory_space<vmem>>, vector<1x16xf32>
    %17 = vector.broadcast %16 : vector<1x16xf32> to vector<12x16xf32>
    %18 = arith.addf %15, %17 : vector<12x16xf32>
    %cst_9 = arith.constant 0.000000e+00 : f32
    %19 = vector.broadcast %cst_9 : f32 to vector<12x16xf32>
    %20 = arith.maximumf %18, %19 : vector<12x16xf32>
    %c0_10 = arith.constant 0 : index
    %c0_11 = arith.constant 0 : index
    %21 = vector.load %arg2[%c0_10, %c0_11] : memref<24x4xf32, #tpu.memory_space<vmem>>, vector<24x4xf32>
    %c0_12 = arith.constant 0 : index
    %c0_13 = arith.constant 0 : index
    %22 = vector.load %arg8[%c0_12, %c0_13] : memref<4x16xf32, #tpu.memory_space<vmem>>, vector<4x16xf32>
    %cst_14 = arith.constant dense<0.000000e+00> : vector<24x16xf32>
    %23 = tpu.matmul %21, %22, %cst_14 {dimension_numbers = #tpu.dot_dimension_numbers<[1], [0], [0], [1], [0, 0, 1, 1], [], []>} : vector<24x4xf32>, vector<4x16xf32>, vector<24x16xf32> -> vector<24x16xf32>
    %c0_15 = arith.constant 0 : index
    %c0_16 = arith.constant 0 : index
    %24 = vector.load %arg9[%c0_15, %c0_16] : memref<1x16xf32, #tpu.memory_space<vmem>>, vector<1x16xf32>
    %25 = vector.broadcast %24 : vector<1x16xf32> to vector<24x16xf32>
    %26 = arith.addf %23, %25 : vector<24x16xf32>
    %cst_17 = arith.constant 0.000000e+00 : f32
    %27 = vector.broadcast %cst_17 : f32 to vector<24x16xf32>
    %28 = arith.maximumf %26, %27 : vector<24x16xf32>
    %c0_18 = arith.constant 0 : index
    %c0_19 = arith.constant 0 : index
    %29 = vector.load %arg11[%c0_18, %c0_19] : memref<1x64xf32, #tpu.memory_space<vmem>>, vector<1x64xf32>
    %c0_20 = arith.constant 0 : index
    %c0_21 = arith.constant 0 : index
    %30 = vector.load %arg13[%c0_20, %c0_21] : memref<1x64xf32, #tpu.memory_space<vmem>>, vector<1x64xf32>
    %c0_22 = arith.constant 0 : index
    %c0_23 = arith.constant 0 : index
    %31 = vector.load %arg14[%c0_22, %c0_23] : memref<64x2xf32, #tpu.memory_space<vmem>>, vector<64x2xf32>
    %c0_24 = arith.constant 0 : index
    %c0_25 = arith.constant 0 : index
    %32 = vector.load %arg10[%c0_24, %c0_25] : memref<16x320xf32, #tpu.memory_space<vmem>>, vector<16x320xf32>
    %cst_26 = arith.constant dense<0.000000e+00> : vector<12x320xf32>
    %33 = tpu.matmul %20, %32, %cst_26 {dimension_numbers = #tpu.dot_dimension_numbers<[1], [0], [0], [1], [0, 0, 1, 1], [], []>} : vector<12x16xf32>, vector<16x320xf32>, vector<12x320xf32> -> vector<12x320xf32>
    %34 = vector.extract_strided_slice %33 {offsets = [0, 0], sizes = [12, 256], strides = [1, 1]} : vector<12x320xf32> to vector<12x256xf32>
    %35 = vector.extract_strided_slice %33 {offsets = [0, 256], sizes = [12, 64], strides = [1, 1]} : vector<12x320xf32> to vector<12x64xf32>
    %36 = arith.truncf %34 : vector<12x256xf32> to vector<12x256xbf16>
    %cst_27 = arith.constant dense<0.000000e+00> : vector<24x256xf32>
    %37 = tpu.matmul %6, %36, %cst_27 {dimension_numbers = #tpu.dot_dimension_numbers<[1], [0], [0], [1], [0, 0, 1, 1], [], []>} : vector<24x12xbf16>, vector<12x256xbf16>, vector<24x256xf32> -> vector<24x256xf32>
    %38 = arith.truncf %35 : vector<12x64xf32> to vector<12x64xbf16>
    %cst_28 = arith.constant dense<0.000000e+00> : vector<24x64xf32>
    %39 = tpu.matmul %12, %38, %cst_28 {dimension_numbers = #tpu.dot_dimension_numbers<[1], [0], [0], [1], [0, 0, 1, 1], [], []>} : vector<24x12xbf16>, vector<12x64xbf16>, vector<24x64xf32> -> vector<24x64xf32>
    %40 = vector.extract_strided_slice %37 {offsets = [0, 0], sizes = [24, 64], strides = [1, 1]} : vector<24x256xf32> to vector<24x64xf32>
    %41 = vector.broadcast %29 : vector<1x64xf32> to vector<24x64xf32>
    %42 = arith.addf %40, %41 : vector<24x64xf32>
    %43 = vector.extract_strided_slice %37 {offsets = [0, 128], sizes = [24, 64], strides = [1, 1]} : vector<24x256xf32> to vector<24x64xf32>
    %c0_29 = arith.constant 0 : index
    %c0_30 = arith.constant 0 : index
    %44 = vector.load %arg12[%c0_29, %c0_30] : memref<16x64xf32, #tpu.memory_space<vmem>>, vector<16x64xf32>
    %cst_31 = arith.constant dense<0.000000e+00> : vector<24x64xf32>
    %45 = tpu.matmul %28, %44, %cst_31 {dimension_numbers = #tpu.dot_dimension_numbers<[1], [0], [0], [1], [0, 0, 1, 1], [], []>} : vector<24x16xf32>, vector<16x64xf32>, vector<24x64xf32> -> vector<24x64xf32>
    %46 = arith.addf %43, %39 : vector<24x64xf32>
    %47 = arith.addf %46, %45 : vector<24x64xf32>
    %48 = vector.broadcast %30 : vector<1x64xf32> to vector<24x64xf32>
    %49 = arith.addf %47, %48 : vector<24x64xf32>
    %cst_32 = arith.constant 0.000000e+00 : f32
    %50 = vector.broadcast %cst_32 : f32 to vector<24x64xf32>
    %51 = arith.cmpf ogt, %49, %50 : vector<24x64xf32>
    %cst_33 = arith.constant 0.00999999977 : f32
    %52 = vector.broadcast %cst_33 : f32 to vector<24x64xf32>
    %53 = arith.mulf %52, %49 : vector<24x64xf32>
    %54 = arith.select %51, %49, %53 : vector<24x64xi1>, vector<24x64xf32>
    %cst_34 = arith.constant dense<0.000000e+00> : vector<24x2xf32>
    %55 = tpu.matmul %54, %31, %cst_34 {dimension_numbers = #tpu.dot_dimension_numbers<[1], [0], [0], [1], [0, 0, 1, 1], [], []>} : vector<24x64xf32>, vector<64x2xf32>, vector<24x2xf32> -> vector<24x2xf32>
    %cst_35 = arith.constant dense<0xFF800000> : vector<2xf32>
    %56 = vector.multi_reduction <maximumf>, %55, %cst_35 [0] : vector<24x2xf32> to vector<2xf32>
    %57 = vector.shape_cast %56 : vector<2xf32> to vector<1x2xf32>
    %58 = vector.broadcast %57 : vector<1x2xf32> to vector<24x2xf32>
    %59 = arith.subf %55, %58 : vector<24x2xf32>
    %60 = math.exp %59 : vector<24x2xf32>
    %61 = vector.extract_strided_slice %60 {offsets = [0, 0], sizes = [24, 1], strides = [1, 1]} : vector<24x2xf32> to vector<24x1xf32>
    %62 = vector.extract_strided_slice %60 {offsets = [0, 1], sizes = [24, 1], strides = [1, 1]} : vector<24x2xf32> to vector<24x1xf32>
    %63 = vector.shape_cast %61 : vector<24x1xf32> to vector<24x1xf32>
    %64 = vector.broadcast %63 : vector<24x1xf32> to vector<24x32xf32>
    %65 = vector.shape_cast %62 : vector<24x1xf32> to vector<24x1xf32>
    %66 = vector.broadcast %65 : vector<24x1xf32> to vector<24x32xf32>
    %67 = tpu.concatenate %64, %66 in 1 : vector<24x32xf32>, vector<24x32xf32> -> vector<24x64xf32>
    %68 = arith.mulf %42, %67 : vector<24x64xf32>
    %69 = tpu.concatenate %68, %60 in 1 : vector<24x64xf32>, vector<24x2xf32> -> vector<24x66xf32>
    %70 = arith.truncf %69 : vector<24x66xf32> to vector<24x66xbf16>
    %cst_36 = arith.constant dense<0.000000e+00> : vector<12x66xf32>
    %71 = tpu.matmul %12, %70, %cst_36 {dimension_numbers = #tpu.dot_dimension_numbers<[0], [0], [1], [1], [0, 1, 1, 1], [], []>} : vector<24x12xbf16>, vector<24x66xbf16>, vector<12x66xf32> -> vector<12x66xf32>
    %72 = vector.extract_strided_slice %71 {offsets = [0, 0], sizes = [12, 64], strides = [1, 1]} : vector<12x66xf32> to vector<12x64xf32>
    %73 = vector.extract_strided_slice %71 {offsets = [0, 64], sizes = [12, 2], strides = [1, 1]} : vector<12x66xf32> to vector<12x2xf32>
    %cst_37 = arith.constant 0.000000e+00 : f32
    %74 = vector.broadcast %cst_37 : f32 to vector<12x2xf32>
    %75 = arith.cmpf ogt, %73, %74 : vector<12x2xf32>
    %cst_38 = arith.constant 1.000000e+00 : f32
    %76 = vector.broadcast %cst_38 : f32 to vector<12x2xf32>
    %77 = arith.select %75, %73, %76 : vector<12x2xi1>, vector<12x2xf32>
    %cst_39 = arith.constant 0.000000e+00 : f32
    %78 = vector.broadcast %cst_39 : f32 to vector<12x2xf32>
    %79 = arith.cmpf ogt, %73, %78 : vector<12x2xf32>
    %80 = tpu.reciprocal %77 {approx = true} : vector<12x2xf32> -> vector<12x2xf32>
    %cst_40 = arith.constant 0.000000e+00 : f32
    %81 = vector.broadcast %cst_40 : f32 to vector<12x2xf32>
    %82 = arith.select %79, %80, %81 : vector<12x2xi1>, vector<12x2xf32>
    %83 = vector.extract_strided_slice %82 {offsets = [0, 0], sizes = [12, 1], strides = [1, 1]} : vector<12x2xf32> to vector<12x1xf32>
    %84 = vector.extract_strided_slice %82 {offsets = [0, 1], sizes = [12, 1], strides = [1, 1]} : vector<12x2xf32> to vector<12x1xf32>
    %85 = vector.shape_cast %83 : vector<12x1xf32> to vector<12x1xf32>
    %86 = vector.broadcast %85 : vector<12x1xf32> to vector<12x32xf32>
    %87 = vector.shape_cast %84 : vector<12x1xf32> to vector<12x1xf32>
    %88 = vector.broadcast %87 : vector<12x1xf32> to vector<12x32xf32>
    %89 = tpu.concatenate %86, %88 in 1 : vector<12x32xf32>, vector<12x32xf32> -> vector<12x64xf32>
    %90 = arith.mulf %72, %89 : vector<12x64xf32>
    %cst_41 = arith.constant 0.000000e+00 : f32
    %91 = vector.broadcast %cst_41 : f32 to vector<12x64xf32>
    %92 = arith.maximumf %90, %91 : vector<12x64xf32>
    %cst_42 = arith.constant 0.000000e+00 : f32
    %93 = vector.broadcast %cst_42 : f32 to vector<24x64xf32>
    %94 = arith.maximumf %54, %93 : vector<24x64xf32>
    %c0_43 = arith.constant 0 : index
    %c0_44 = arith.constant 0 : index
    %95 = vector.load %arg16[%c0_43, %c0_44] : memref<1x128xf32, #tpu.memory_space<vmem>>, vector<1x128xf32>
    %c0_45 = arith.constant 0 : index
    %c0_46 = arith.constant 0 : index
    %96 = vector.load %arg18[%c0_45, %c0_46] : memref<1x128xf32, #tpu.memory_space<vmem>>, vector<1x128xf32>
    %c0_47 = arith.constant 0 : index
    %c0_48 = arith.constant 0 : index
    %97 = vector.load %arg19[%c0_47, %c0_48] : memref<128x2xf32, #tpu.memory_space<vmem>>, vector<128x2xf32>
    %c0_49 = arith.constant 0 : index
    %c0_50 = arith.constant 0 : index
    %98 = vector.load %arg15[%c0_49, %c0_50] : memref<64x384xf32, #tpu.memory_space<vmem>>, vector<64x384xf32>
    %cst_51 = arith.constant dense<0.000000e+00> : vector<12x384xf32>
    %99 = tpu.matmul %92, %98, %cst_51 {dimension_numbers = #tpu.dot_dimension_numbers<[1], [0], [0], [1], [0, 0, 1, 1], [], []>} : vector<12x64xf32>, vector<64x384xf32>, vector<12x384xf32> -> vector<12x384xf32>
    %100 = vector.extract_strided_slice %99 {offsets = [0, 0], sizes = [12, 256], strides = [1, 1]} : vector<12x384xf32> to vector<12x256xf32>
    %101 = vector.extract_strided_slice %99 {offsets = [0, 256], sizes = [12, 128], strides = [1, 1]} : vector<12x384xf32> to vector<12x128xf32>
    %102 = arith.truncf %100 : vector<12x256xf32> to vector<12x256xbf16>
    %cst_52 = arith.constant dense<0.000000e+00> : vector<24x256xf32>
    %103 = tpu.matmul %6, %102, %cst_52 {dimension_numbers = #tpu.dot_dimension_numbers<[1], [0], [0], [1], [0, 0, 1, 1], [], []>} : vector<24x12xbf16>, vector<12x256xbf16>, vector<24x256xf32> -> vector<24x256xf32>
    %104 = arith.truncf %101 : vector<12x128xf32> to vector<12x128xbf16>
    %cst_53 = arith.constant dense<0.000000e+00> : vector<24x128xf32>
    %105 = tpu.matmul %12, %104, %cst_53 {dimension_numbers = #tpu.dot_dimension_numbers<[1], [0], [0], [1], [0, 0, 1, 1], [], []>} : vector<24x12xbf16>, vector<12x128xbf16>, vector<24x128xf32> -> vector<24x128xf32>
    %106 = vector.extract_strided_slice %103 {offsets = [0, 0], sizes = [24, 128], strides = [1, 1]} : vector<24x256xf32> to vector<24x128xf32>
    %107 = vector.broadcast %95 : vector<1x128xf32> to vector<24x128xf32>
    %108 = arith.addf %106, %107 : vector<24x128xf32>
    %109 = vector.extract_strided_slice %103 {offsets = [0, 128], sizes = [24, 128], strides = [1, 1]} : vector<24x256xf32> to vector<24x128xf32>
    %c0_54 = arith.constant 0 : index
    %c0_55 = arith.constant 0 : index
    %110 = vector.load %arg17[%c0_54, %c0_55] : memref<64x128xf32, #tpu.memory_space<vmem>>, vector<64x128xf32>
    %cst_56 = arith.constant dense<0.000000e+00> : vector<24x128xf32>
    %111 = tpu.matmul %94, %110, %cst_56 {dimension_numbers = #tpu.dot_dimension_numbers<[1], [0], [0], [1], [0, 0, 1, 1], [], []>} : vector<24x64xf32>, vector<64x128xf32>, vector<24x128xf32> -> vector<24x128xf32>
    %112 = arith.addf %109, %105 : vector<24x128xf32>
    %113 = arith.addf %112, %111 : vector<24x128xf32>
    %114 = vector.broadcast %96 : vector<1x128xf32> to vector<24x128xf32>
    %115 = arith.addf %113, %114 : vector<24x128xf32>
    %cst_57 = arith.constant 0.000000e+00 : f32
    %116 = vector.broadcast %cst_57 : f32 to vector<24x128xf32>
    %117 = arith.cmpf ogt, %115, %116 : vector<24x128xf32>
    %cst_58 = arith.constant 0.00999999977 : f32
    %118 = vector.broadcast %cst_58 : f32 to vector<24x128xf32>
    %119 = arith.mulf %118, %115 : vector<24x128xf32>
    %120 = arith.select %117, %115, %119 : vector<24x128xi1>, vector<24x128xf32>
    %cst_59 = arith.constant dense<0.000000e+00> : vector<24x2xf32>
    %121 = tpu.matmul %120, %97, %cst_59 {dimension_numbers = #tpu.dot_dimension_numbers<[1], [0], [0], [1], [0, 0, 1, 1], [], []>} : vector<24x128xf32>, vector<128x2xf32>, vector<24x2xf32> -> vector<24x2xf32>
    %cst_60 = arith.constant dense<0xFF800000> : vector<2xf32>
    %122 = vector.multi_reduction <maximumf>, %121, %cst_60 [0] : vector<24x2xf32> to vector<2xf32>
    %123 = vector.shape_cast %122 : vector<2xf32> to vector<1x2xf32>
    %124 = vector.broadcast %123 : vector<1x2xf32> to vector<24x2xf32>
    %125 = arith.subf %121, %124 : vector<24x2xf32>
    %126 = math.exp %125 : vector<24x2xf32>
    %127 = vector.extract_strided_slice %126 {offsets = [0, 0], sizes = [24, 1], strides = [1, 1]} : vector<24x2xf32> to vector<24x1xf32>
    %128 = vector.extract_strided_slice %126 {offsets = [0, 1], sizes = [24, 1], strides = [1, 1]} : vector<24x2xf32> to vector<24x1xf32>
    %129 = vector.shape_cast %127 : vector<24x1xf32> to vector<24x1xf32>
    %130 = vector.broadcast %129 : vector<24x1xf32> to vector<24x64xf32>
    %131 = vector.shape_cast %128 : vector<24x1xf32> to vector<24x1xf32>
    %132 = vector.broadcast %131 : vector<24x1xf32> to vector<24x64xf32>
    %133 = tpu.concatenate %130, %132 in 1 : vector<24x64xf32>, vector<24x64xf32> -> vector<24x128xf32>
    %134 = arith.mulf %108, %133 : vector<24x128xf32>
    %135 = tpu.concatenate %134, %126 in 1 : vector<24x128xf32>, vector<24x2xf32> -> vector<24x130xf32>
    %136 = arith.truncf %135 : vector<24x130xf32> to vector<24x130xbf16>
    %cst_61 = arith.constant dense<0.000000e+00> : vector<12x130xf32>
    %137 = tpu.matmul %12, %136, %cst_61 {dimension_numbers = #tpu.dot_dimension_numbers<[0], [0], [1], [1], [0, 1, 1, 1], [], []>} : vector<24x12xbf16>, vector<24x130xbf16>, vector<12x130xf32> -> vector<12x130xf32>
    %138 = vector.extract_strided_slice %137 {offsets = [0, 0], sizes = [12, 128], strides = [1, 1]} : vector<12x130xf32> to vector<12x128xf32>
    %139 = vector.extract_strided_slice %137 {offsets = [0, 128], sizes = [12, 2], strides = [1, 1]} : vector<12x130xf32> to vector<12x2xf32>
    %cst_62 = arith.constant 0.000000e+00 : f32
    %140 = vector.broadcast %cst_62 : f32 to vector<12x2xf32>
    %141 = arith.cmpf ogt, %139, %140 : vector<12x2xf32>
    %cst_63 = arith.constant 1.000000e+00 : f32
    %142 = vector.broadcast %cst_63 : f32 to vector<12x2xf32>
    %143 = arith.select %141, %139, %142 : vector<12x2xi1>, vector<12x2xf32>
    %cst_64 = arith.constant 0.000000e+00 : f32
    %144 = vector.broadcast %cst_64 : f32 to vector<12x2xf32>
    %145 = arith.cmpf ogt, %139, %144 : vector<12x2xf32>
    %146 = tpu.reciprocal %143 {approx = true} : vector<12x2xf32> -> vector<12x2xf32>
    %cst_65 = arith.constant 0.000000e+00 : f32
    %147 = vector.broadcast %cst_65 : f32 to vector<12x2xf32>
    %148 = arith.select %145, %146, %147 : vector<12x2xi1>, vector<12x2xf32>
    %149 = vector.extract_strided_slice %148 {offsets = [0, 0], sizes = [12, 1], strides = [1, 1]} : vector<12x2xf32> to vector<12x1xf32>
    %150 = vector.extract_strided_slice %148 {offsets = [0, 1], sizes = [12, 1], strides = [1, 1]} : vector<12x2xf32> to vector<12x1xf32>
    %151 = vector.shape_cast %149 : vector<12x1xf32> to vector<12x1xf32>
    %152 = vector.broadcast %151 : vector<12x1xf32> to vector<12x64xf32>
    %153 = vector.shape_cast %150 : vector<12x1xf32> to vector<12x1xf32>
    %154 = vector.broadcast %153 : vector<12x1xf32> to vector<12x64xf32>
    %155 = tpu.concatenate %152, %154 in 1 : vector<12x64xf32>, vector<12x64xf32> -> vector<12x128xf32>
    %156 = arith.mulf %138, %155 : vector<12x128xf32>
    %cst_66 = arith.constant 0.000000e+00 : f32
    %157 = vector.broadcast %cst_66 : f32 to vector<12x128xf32>
    %158 = arith.maximumf %156, %157 : vector<12x128xf32>
    %cst_67 = arith.constant 0.000000e+00 : f32
    %159 = vector.broadcast %cst_67 : f32 to vector<24x128xf32>
    %160 = arith.maximumf %120, %159 : vector<24x128xf32>
    %c0_68 = arith.constant 0 : index
    %c0_69 = arith.constant 0 : index
    %161 = vector.load %arg21[%c0_68, %c0_69] : memref<1x64xf32, #tpu.memory_space<vmem>>, vector<1x64xf32>
    %c0_70 = arith.constant 0 : index
    %c0_71 = arith.constant 0 : index
    %162 = vector.load %arg23[%c0_70, %c0_71] : memref<1x64xf32, #tpu.memory_space<vmem>>, vector<1x64xf32>
    %c0_72 = arith.constant 0 : index
    %c0_73 = arith.constant 0 : index
    %163 = vector.load %arg24[%c0_72, %c0_73] : memref<64x2xf32, #tpu.memory_space<vmem>>, vector<64x2xf32>
    %c0_74 = arith.constant 0 : index
    %c0_75 = arith.constant 0 : index
    %164 = vector.load %arg20[%c0_74, %c0_75] : memref<128x320xf32, #tpu.memory_space<vmem>>, vector<128x320xf32>
    %cst_76 = arith.constant dense<0.000000e+00> : vector<12x320xf32>
    %165 = tpu.matmul %158, %164, %cst_76 {dimension_numbers = #tpu.dot_dimension_numbers<[1], [0], [0], [1], [0, 0, 1, 1], [], []>} : vector<12x128xf32>, vector<128x320xf32>, vector<12x320xf32> -> vector<12x320xf32>
    %166 = vector.extract_strided_slice %165 {offsets = [0, 0], sizes = [12, 256], strides = [1, 1]} : vector<12x320xf32> to vector<12x256xf32>
    %167 = vector.extract_strided_slice %165 {offsets = [0, 256], sizes = [12, 64], strides = [1, 1]} : vector<12x320xf32> to vector<12x64xf32>
    %168 = arith.truncf %166 : vector<12x256xf32> to vector<12x256xbf16>
    %cst_77 = arith.constant dense<0.000000e+00> : vector<24x256xf32>
    %169 = tpu.matmul %6, %168, %cst_77 {dimension_numbers = #tpu.dot_dimension_numbers<[1], [0], [0], [1], [0, 0, 1, 1], [], []>} : vector<24x12xbf16>, vector<12x256xbf16>, vector<24x256xf32> -> vector<24x256xf32>
    %170 = arith.truncf %167 : vector<12x64xf32> to vector<12x64xbf16>
    %cst_78 = arith.constant dense<0.000000e+00> : vector<24x64xf32>
    %171 = tpu.matmul %12, %170, %cst_78 {dimension_numbers = #tpu.dot_dimension_numbers<[1], [0], [0], [1], [0, 0, 1, 1], [], []>} : vector<24x12xbf16>, vector<12x64xbf16>, vector<24x64xf32> -> vector<24x64xf32>
    %172 = vector.extract_strided_slice %169 {offsets = [0, 0], sizes = [24, 64], strides = [1, 1]} : vector<24x256xf32> to vector<24x64xf32>
    %173 = vector.broadcast %161 : vector<1x64xf32> to vector<24x64xf32>
    %174 = arith.addf %172, %173 : vector<24x64xf32>
    %175 = vector.extract_strided_slice %169 {offsets = [0, 128], sizes = [24, 64], strides = [1, 1]} : vector<24x256xf32> to vector<24x64xf32>
    %c0_79 = arith.constant 0 : index
    %c0_80 = arith.constant 0 : index
    %176 = vector.load %arg22[%c0_79, %c0_80] : memref<128x64xf32, #tpu.memory_space<vmem>>, vector<128x64xf32>
    %cst_81 = arith.constant dense<0.000000e+00> : vector<24x64xf32>
    %177 = tpu.matmul %160, %176, %cst_81 {dimension_numbers = #tpu.dot_dimension_numbers<[1], [0], [0], [1], [0, 0, 1, 1], [], []>} : vector<24x128xf32>, vector<128x64xf32>, vector<24x64xf32> -> vector<24x64xf32>
    %178 = arith.addf %175, %171 : vector<24x64xf32>
    %179 = arith.addf %178, %177 : vector<24x64xf32>
    %180 = vector.broadcast %162 : vector<1x64xf32> to vector<24x64xf32>
    %181 = arith.addf %179, %180 : vector<24x64xf32>
    %cst_82 = arith.constant 0.000000e+00 : f32
    %182 = vector.broadcast %cst_82 : f32 to vector<24x64xf32>
    %183 = arith.cmpf ogt, %181, %182 : vector<24x64xf32>
    %cst_83 = arith.constant 0.00999999977 : f32
    %184 = vector.broadcast %cst_83 : f32 to vector<24x64xf32>
    %185 = arith.mulf %184, %181 : vector<24x64xf32>
    %186 = arith.select %183, %181, %185 : vector<24x64xi1>, vector<24x64xf32>
    %cst_84 = arith.constant dense<0.000000e+00> : vector<24x2xf32>
    %187 = tpu.matmul %186, %163, %cst_84 {dimension_numbers = #tpu.dot_dimension_numbers<[1], [0], [0], [1], [0, 0, 1, 1], [], []>} : vector<24x64xf32>, vector<64x2xf32>, vector<24x2xf32> -> vector<24x2xf32>
    %cst_85 = arith.constant dense<0xFF800000> : vector<2xf32>
    %188 = vector.multi_reduction <maximumf>, %187, %cst_85 [0] : vector<24x2xf32> to vector<2xf32>
    %189 = vector.shape_cast %188 : vector<2xf32> to vector<1x2xf32>
    %190 = vector.broadcast %189 : vector<1x2xf32> to vector<24x2xf32>
    %191 = arith.subf %187, %190 : vector<24x2xf32>
    %192 = math.exp %191 : vector<24x2xf32>
    %193 = vector.extract_strided_slice %192 {offsets = [0, 0], sizes = [24, 1], strides = [1, 1]} : vector<24x2xf32> to vector<24x1xf32>
    %194 = vector.extract_strided_slice %192 {offsets = [0, 1], sizes = [24, 1], strides = [1, 1]} : vector<24x2xf32> to vector<24x1xf32>
    %195 = vector.shape_cast %193 : vector<24x1xf32> to vector<24x1xf32>
    %196 = vector.broadcast %195 : vector<24x1xf32> to vector<24x32xf32>
    %197 = vector.shape_cast %194 : vector<24x1xf32> to vector<24x1xf32>
    %198 = vector.broadcast %197 : vector<24x1xf32> to vector<24x32xf32>
    %199 = tpu.concatenate %196, %198 in 1 : vector<24x32xf32>, vector<24x32xf32> -> vector<24x64xf32>
    %200 = arith.mulf %174, %199 : vector<24x64xf32>
    %201 = tpu.concatenate %200, %192 in 1 : vector<24x64xf32>, vector<24x2xf32> -> vector<24x66xf32>
    %202 = arith.truncf %201 : vector<24x66xf32> to vector<24x66xbf16>
    %cst_86 = arith.constant dense<0.000000e+00> : vector<12x66xf32>
    %203 = tpu.matmul %12, %202, %cst_86 {dimension_numbers = #tpu.dot_dimension_numbers<[0], [0], [1], [1], [0, 1, 1, 1], [], []>} : vector<24x12xbf16>, vector<24x66xbf16>, vector<12x66xf32> -> vector<12x66xf32>
    %204 = vector.extract_strided_slice %203 {offsets = [0, 0], sizes = [12, 64], strides = [1, 1]} : vector<12x66xf32> to vector<12x64xf32>
    %205 = vector.extract_strided_slice %203 {offsets = [0, 64], sizes = [12, 2], strides = [1, 1]} : vector<12x66xf32> to vector<12x2xf32>
    %cst_87 = arith.constant 0.000000e+00 : f32
    %206 = vector.broadcast %cst_87 : f32 to vector<12x2xf32>
    %207 = arith.cmpf ogt, %205, %206 : vector<12x2xf32>
    %cst_88 = arith.constant 1.000000e+00 : f32
    %208 = vector.broadcast %cst_88 : f32 to vector<12x2xf32>
    %209 = arith.select %207, %205, %208 : vector<12x2xi1>, vector<12x2xf32>
    %cst_89 = arith.constant 0.000000e+00 : f32
    %210 = vector.broadcast %cst_89 : f32 to vector<12x2xf32>
    %211 = arith.cmpf ogt, %205, %210 : vector<12x2xf32>
    %212 = tpu.reciprocal %209 {approx = true} : vector<12x2xf32> -> vector<12x2xf32>
    %cst_90 = arith.constant 0.000000e+00 : f32
    %213 = vector.broadcast %cst_90 : f32 to vector<12x2xf32>
    %214 = arith.select %211, %212, %213 : vector<12x2xi1>, vector<12x2xf32>
    %215 = vector.extract_strided_slice %214 {offsets = [0, 0], sizes = [12, 1], strides = [1, 1]} : vector<12x2xf32> to vector<12x1xf32>
    %216 = vector.extract_strided_slice %214 {offsets = [0, 1], sizes = [12, 1], strides = [1, 1]} : vector<12x2xf32> to vector<12x1xf32>
    %217 = vector.shape_cast %215 : vector<12x1xf32> to vector<12x1xf32>
    %218 = vector.broadcast %217 : vector<12x1xf32> to vector<12x32xf32>
    %219 = vector.shape_cast %216 : vector<12x1xf32> to vector<12x1xf32>
    %220 = vector.broadcast %219 : vector<12x1xf32> to vector<12x32xf32>
    %221 = tpu.concatenate %218, %220 in 1 : vector<12x32xf32>, vector<12x32xf32> -> vector<12x64xf32>
    %222 = arith.mulf %204, %221 : vector<12x64xf32>
    %cst_91 = arith.constant 0.000000e+00 : f32
    %223 = vector.broadcast %cst_91 : f32 to vector<12x64xf32>
    %224 = arith.maximumf %222, %223 : vector<12x64xf32>
    %225 = tpu.iota {dimensions = array<i32: 1>} : vector<12x2xi32>
    %c0_92 = arith.constant 0 : index
    %c0_93 = arith.constant 0 : index
    %226 = vector.load %arg5[%c0_92, %c0_93] : memref<12x1xi32, #tpu.memory_space<vmem>>, vector<12x1xi32>
    %227 = vector.broadcast %226 : vector<12x1xi32> to vector<12x2xi32>
    %228 = arith.cmpi eq, %225, %227 : vector<12x2xi32>
    %229 = arith.extui %228 : vector<12x2xi1> to vector<12x2xi32>
    %230 = arith.sitofp %229 : vector<12x2xi32> to vector<12x2xf32>
    %cst_94 = arith.constant dense<0.000000e+00> : vector<2x64xf32>
    %231 = tpu.matmul %230, %224, %cst_94 {dimension_numbers = #tpu.dot_dimension_numbers<[0], [0], [1], [1], [0, 1, 1, 1], [], []>} : vector<12x2xf32>, vector<12x64xf32>, vector<2x64xf32> -> vector<2x64xf32>
    %c0_95 = arith.constant 0 : index
    %c0_96 = arith.constant 0 : index
    %232 = vector.load %arg25[%c0_95, %c0_96] : memref<64x32xf32, #tpu.memory_space<vmem>>, vector<64x32xf32>
    %cst_97 = arith.constant dense<0.000000e+00> : vector<2x32xf32>
    %233 = tpu.matmul %231, %232, %cst_97 {dimension_numbers = #tpu.dot_dimension_numbers<[1], [0], [0], [1], [0, 0, 1, 1], [], []>} : vector<2x64xf32>, vector<64x32xf32>, vector<2x32xf32> -> vector<2x32xf32>
    %c0_98 = arith.constant 0 : index
    %c0_99 = arith.constant 0 : index
    %234 = vector.load %arg26[%c0_98, %c0_99] : memref<1x32xf32, #tpu.memory_space<vmem>>, vector<1x32xf32>
    %235 = vector.broadcast %234 : vector<1x32xf32> to vector<2x32xf32>
    %236 = arith.addf %233, %235 : vector<2x32xf32>
    %cst_100 = arith.constant 0.000000e+00 : f32
    %237 = vector.broadcast %cst_100 : f32 to vector<2x32xf32>
    %238 = arith.maximumf %236, %237 : vector<2x32xf32>
    %c0_101 = arith.constant 0 : index
    %c0_102 = arith.constant 0 : index
    %239 = vector.load %arg27[%c0_101, %c0_102] : memref<32x1xf32, #tpu.memory_space<vmem>>, vector<32x1xf32>
    %cst_103 = arith.constant dense<0.000000e+00> : vector<2x1xf32>
    %240 = tpu.matmul %238, %239, %cst_103 {dimension_numbers = #tpu.dot_dimension_numbers<[1], [0], [0], [1], [0, 0, 1, 1], [], []>} : vector<2x32xf32>, vector<32x1xf32>, vector<2x1xf32> -> vector<2x1xf32>
    %c0_104 = arith.constant 0 : index
    %c0_105 = arith.constant 0 : index
    %241 = vector.load %arg28[%c0_104, %c0_105] : memref<1x1xf32, #tpu.memory_space<vmem>>, vector<1x1xf32>
    %242 = vector.broadcast %241 : vector<1x1xf32> to vector<2x1xf32>
    %243 = arith.addf %240, %242 : vector<2x1xf32>
    %c0_106 = arith.constant 0 : index
    %c0_107 = arith.constant 0 : index
    %244 = vector.load %arg29[%c0_106, %c0_107] : memref<2x1xf32, #tpu.memory_space<vmem>>, vector<2x1xf32>
    tpu.vector_store %arg29[%c0_106, %c0_107], %243 {strides = array<i32>} : memref<2x1xf32, #tpu.memory_space<vmem>>, vector<2x1xf32>,
    return
  }
  func.func @transform_0(%arg0: i32) -> (i32, i32) {
    %c0_i32 = arith.constant 0 : i32
    %c0_i32_0 = arith.constant 0 : i32
    %c0_i32_1 = arith.constant 0 : i32
    return %c0_i32, %c0_i32_0 : i32, i32
  }
  func.func @transform_1(%arg0: i32) -> (i32, i32) {
    %c0_i32 = arith.constant 0 : i32
    %c0_i32_0 = arith.constant 0 : i32
    %c0_i32_1 = arith.constant 0 : i32
    return %c0_i32, %c0_i32_0 : i32, i32
  }
  func.func @transform_2(%arg0: i32) -> (i32, i32) {
    %c0_i32 = arith.constant 0 : i32
    %c0_i32_0 = arith.constant 0 : i32
    %c0_i32_1 = arith.constant 0 : i32
    return %c0_i32, %c0_i32_0 : i32, i32
  }
  func.func @transform_3(%arg0: i32) -> (i32, i32) {
    %c0_i32 = arith.constant 0 : i32
    %c0_i32_0 = arith.constant 0 : i32
    %c0_i32_1 = arith.constant 0 : i32
    return %c0_i32, %c0_i32_0 : i32, i32
  }
  func.func @transform_4(%arg0: i32) -> (i32, i32) {
    %c0_i32 = arith.constant 0 : i32
    %c0_i32_0 = arith.constant 0 : i32
    %c0_i32_1 = arith.constant 0 : i32
    return %c0_i32, %c0_i32_0 : i32, i32
  }
  func.func @transform_5(%arg0: i32) -> (i32, i32) {
    %c0_i32 = arith.constant 0 : i32
    %c0_i32_0 = arith.constant 0 : i32
    %c0_i32_1 = arith.constant 0 : i32
    return %c0_i32, %c0_i32_0 : i32, i32
  }
  func.func @transform_6(%arg0: i32) -> (i32, i32) {
    %c0_i32 = arith.constant 0 : i32
    %c0_i32_0 = arith.constant 0 : i32
    %c0_i32_1 = arith.constant 0 : i32
    return %c0_i32, %c0_i32_0 : i32, i32
  }
  func.func @transform_7(%arg0: i32) -> (i32, i32) {
    %c0_i32 = arith.constant 0 : i32
    %c0_i32_0 = arith.constant 0 : i32
    %c0_i32_1 = arith.constant 0 : i32
    return %c0_i32, %c0_i32_0 : i32, i32
  }
  func.func @transform_8(%arg0: i32) -> (i32, i32) {
    %c0_i32 = arith.constant 0 : i32
    %c0_i32_0 = arith.constant 0 : i32
    %c0_i32_1 = arith.constant 0 : i32
    return %c0_i32, %c0_i32_0 : i32, i32
  }
  func.func @transform_9(%arg0: i32) -> (i32, i32) {
    %c0_i32 = arith.constant 0 : i32
    %c0_i32_0 = arith.constant 0 : i32
    %c0_i32_1 = arith.constant 0 : i32
    return %c0_i32, %c0_i32_0 : i32, i32
  }
  func.func @transform_10(%arg0: i32) -> (i32, i32) {
    %c0_i32 = arith.constant 0 : i32
    %c0_i32_0 = arith.constant 0 : i32
    %c0_i32_1 = arith.constant 0 : i32
    return %c0_i32, %c0_i32_0 : i32, i32
  }
  func.func @transform_11(%arg0: i32) -> (i32, i32) {
    %c0_i32 = arith.constant 0 : i32
    %c0_i32_0 = arith.constant 0 : i32
    %c0_i32_1 = arith.constant 0 : i32
    return %c0_i32, %c0_i32_0 : i32, i32
  }
  func.func @transform_12(%arg0: i32) -> (i32, i32) {
    %c0_i32 = arith.constant 0 : i32
    %c0_i32_0 = arith.constant 0 : i32
    %c0_i32_1 = arith.constant 0 : i32
    return %c0_i32, %c0_i32_0 : i32, i32
  }
  func.func @transform_13(%arg0: i32) -> (i32, i32) {
    %c0_i32 = arith.constant 0 : i32
    %c0_i32_0 = arith.constant 0 : i32
    %c0_i32_1 = arith.constant 0 : i32
    return %c0_i32, %c0_i32_0 : i32, i32
  }
  func.func @transform_14(%arg0: i32) -> (i32, i32) {
    %c0_i32 = arith.constant 0 : i32
    %c0_i32_0 = arith.constant 0 : i32
    %c0_i32_1 = arith.constant 0 : i32
    return %c0_i32, %c0_i32_0 : i32, i32
  }
  func.func @transform_15(%arg0: i32) -> (i32, i32) {
    %c0_i32 = arith.constant 0 : i32
    %c0_i32_0 = arith.constant 0 : i32
    %c0_i32_1 = arith.constant 0 : i32
    return %c0_i32, %c0_i32_0 : i32, i32
  }
  func.func @transform_16(%arg0: i32) -> (i32, i32) {
    %c0_i32 = arith.constant 0 : i32
    %c0_i32_0 = arith.constant 0 : i32
    %c0_i32_1 = arith.constant 0 : i32
    return %c0_i32, %c0_i32_0 : i32, i32
  }
  func.func @transform_17(%arg0: i32) -> (i32, i32) {
    %c0_i32 = arith.constant 0 : i32
    %c0_i32_0 = arith.constant 0 : i32
    %c0_i32_1 = arith.constant 0 : i32
    return %c0_i32, %c0_i32_0 : i32, i32
  }
  func.func @transform_18(%arg0: i32) -> (i32, i32) {
    %c0_i32 = arith.constant 0 : i32
    %c0_i32_0 = arith.constant 0 : i32
    %c0_i32_1 = arith.constant 0 : i32
    return %c0_i32, %c0_i32_0 : i32, i32
  }
  func.func @transform_19(%arg0: i32) -> (i32, i32) {
    %c0_i32 = arith.constant 0 : i32
    %c0_i32_0 = arith.constant 0 : i32
    %c0_i32_1 = arith.constant 0 : i32
    return %c0_i32, %c0_i32_0 : i32, i32
  }
  func.func @transform_20(%arg0: i32) -> (i32, i32) {
    %c0_i32 = arith.constant 0 : i32
    %c0_i32_0 = arith.constant 0 : i32
    %c0_i32_1 = arith.constant 0 : i32
    return %c0_i32, %c0_i32_0 : i32, i32
  }
  func.func @transform_21(%arg0: i32) -> (i32, i32) {
    %c0_i32 = arith.constant 0 : i32
    %c0_i32_0 = arith.constant 0 : i32
    %c0_i32_1 = arith.constant 0 : i32
    return %c0_i32, %c0_i32_0 : i32, i32
  }
  func.func @transform_22(%arg0: i32) -> (i32, i32) {
    %c0_i32 = arith.constant 0 : i32
    %c0_i32_0 = arith.constant 0 : i32
    %c0_i32_1 = arith.constant 0 : i32
    return %c0_i32, %c0_i32_0 : i32, i32
  }
  func.func @transform_23(%arg0: i32) -> (i32, i32) {
    %c0_i32 = arith.constant 0 : i32
    %c0_i32_0 = arith.constant 0 : i32
    %c0_i32_1 = arith.constant 0 : i32
    return %c0_i32, %c0_i32_0 : i32, i32
  }
  func.func @transform_24(%arg0: i32) -> (i32, i32) {
    %c0_i32 = arith.constant 0 : i32
    %c0_i32_0 = arith.constant 0 : i32
    %c0_i32_1 = arith.constant 0 : i32
    return %c0_i32, %c0_i32_0 : i32, i32
  }
  func.func @transform_25(%arg0: i32) -> (i32, i32) {
    %c0_i32 = arith.constant 0 : i32
    %c0_i32_0 = arith.constant 0 : i32
    %c0_i32_1 = arith.constant 0 : i32
    return %c0_i32, %c0_i32_0 : i32, i32
  }
  func.func @transform_26(%arg0: i32) -> (i32, i32) {
    %c0_i32 = arith.constant 0 : i32
    %c0_i32_0 = arith.constant 0 : i32
    %c0_i32_1 = arith.constant 0 : i32
    return %c0_i32, %c0_i32_0 : i32, i32
  }
  func.func @transform_27(%arg0: i32) -> (i32, i32) {
    %c0_i32 = arith.constant 0 : i32
    %c0_i32_0 = arith.constant 0 : i32
    %c0_i32_1 = arith.constant 0 : i32
    return %c0_i32, %c0_i32_0 : i32, i32
  }
  func.func @transform_28(%arg0: i32) -> (i32, i32) {
    %c0_i32 = arith.constant 0 : i32
    %c0_i32_0 = arith.constant 0 : i32
    %c0_i32_1 = arith.constant 0 : i32
    return %c0_i32, %c0_i32_0 : i32, i32
  }
}

</mosaic_0001>

<llo_original>
// kernel: tpu_custom_call.1
$region0: #{tpu_custom_call.1}
  #allocation0 [shape = 'u32[]', space=smem, size = 0x4, offset = 0x4, fixed_abs, tag = 'smem constant byte address 0x4 - core index']
  #allocation1 [shape = 'u32[144,128]{1,0:T(1,128)}', space=vmem, size = 0x12000, scoped, tag = 'internal scratch']
  #allocation2 [shape = 'f32[1,1]{1,0:T(1,128)S(1)}', space=vmem, size = 0x200, scoped, tag = 'scoped memory for tpu_custom_call.1']
  %s0 = inlined_call_operand.vmem [shape: f32[12,8], index: 0, kind: input, shape index: {}]
  %s1 = inlined_call_operand.vmem [shape: f32[24,4], index: 1, kind: input, shape index: {}]
  %s2 = inlined_call_operand.vmem [shape: s32[24,1], index: 2, kind: input, shape index: {}]
  %s3 = inlined_call_operand.vmem [shape: s32[24,1], index: 3, kind: input, shape index: {}]
  %s4 = inlined_call_operand.vmem [shape: s32[12,1], index: 4, kind: input, shape index: {}]
  %s5 = inlined_call_operand.vmem [shape: f32[8,16], index: 5, kind: input, shape index: {}]
  %s6 = inlined_call_operand.vmem [shape: f32[1,16], index: 6, kind: input, shape index: {}]
  %s7 = inlined_call_operand.vmem [shape: f32[4,16], index: 7, kind: input, shape index: {}]
  %s8 = inlined_call_operand.vmem [shape: f32[1,16], index: 8, kind: input, shape index: {}]
  %s9 = inlined_call_operand.vmem [shape: f32[16,320], index: 9, kind: input, shape index: {}]
  %s10 = inlined_call_operand.vmem [shape: f32[1,64], index: 10, kind: input, shape index: {}]
  %s11 = inlined_call_operand.vmem [shape: f32[16,64], index: 11, kind: input, shape index: {}]
  %s12 = inlined_call_operand.vmem [shape: f32[1,64], index: 12, kind: input, shape index: {}]
  %s13 = inlined_call_operand.vmem [shape: f32[64,2], index: 13, kind: input, shape index: {}]
  %s14 = inlined_call_operand.vmem [shape: f32[64,384], index: 14, kind: input, shape index: {}]
  %s15 = inlined_call_operand.vmem [shape: f32[1,128], index: 15, kind: input, shape index: {}]
  %s16 = inlined_call_operand.vmem [shape: f32[64,128], index: 16, kind: input, shape index: {}]
  %s17 = inlined_call_operand.vmem [shape: f32[1,128], index: 17, kind: input, shape index: {}]
  %s18 = inlined_call_operand.vmem [shape: f32[128,2], index: 18, kind: input, shape index: {}]
  %s19 = inlined_call_operand.vmem [shape: f32[128,320], index: 19, kind: input, shape index: {}]
  %s20 = inlined_call_operand.vmem [shape: f32[1,64], index: 20, kind: input, shape index: {}]
  %s21 = inlined_call_operand.vmem [shape: f32[128,64], index: 21, kind: input, shape index: {}]
  %s22 = inlined_call_operand.vmem [shape: f32[1,64], index: 22, kind: input, shape index: {}]
  %s23 = inlined_call_operand.vmem [shape: f32[64,2], index: 23, kind: input, shape index: {}]
  %s24 = inlined_call_operand.vmem [shape: f32[64,32], index: 24, kind: input, shape index: {}]
  %s25 = inlined_call_operand.vmem [shape: f32[1,32], index: 25, kind: input, shape index: {}]
  %s26 = inlined_call_operand.vmem [shape: f32[32,1], index: 26, kind: input, shape index: {}]
  %s27 = inlined_call_operand.<no memory space> [shape: f32[1,1], index: 27, kind: input, shape index: {}]
  %s28 = inlined_call_operand.vmem [shape: f32[2,1], index: 28, kind: output, shape index: {}]
  %s29 = sld [smem:[#allocation0]]
  $region122: #{tpu_custom_call.1} parent=0
    _
  %s31 = ssub.s32 1, %s29
  %s32 = scalar_select 0, %s31, %s29
  %v33 = vstv %s27
  %34 = vst [vmem:[#allocation2] sm:$0x1] %v33
  // Predicated region
  $region2: #{tpu_custom_call.1} parent=0 // pred_check
    _
  $region3: #{tpu_custom_call.1} parent=0 // pred_check_branch
    %36 = sbr.rel (0) target = $region5
  $region4: #{tpu_custom_call.1} parent=0 // pred_region
    _
  $region5: #{tpu_custom_call.1} parent=0 // pred_fallthru
    _
  // Predicated region
  $region6: #{tpu_custom_call.1} parent=0 // pred_check
    _
  $region7: #{tpu_custom_call.1} parent=0 // pred_check_branch
    %38 = sbr.rel (0) target = $region9
  $region8: #{tpu_custom_call.1} parent=0 // pred_region
    _
  $region9: #{tpu_custom_call.1} parent=0 // pred_fallthru
    _
  // Predicated region
  $region10: #{tpu_custom_call.1} parent=0 // pred_check
    _
  $region11: #{tpu_custom_call.1} parent=0 // pred_check_branch
    %40 = sbr.rel (0) target = $region13
  $region12: #{tpu_custom_call.1} parent=0 // pred_region
    _
  $region13: #{tpu_custom_call.1} parent=0 // pred_fallthru
    _
  // Predicated region
  $region14: #{tpu_custom_call.1} parent=0 // pred_check
    _
  $region15: #{tpu_custom_call.1} parent=0 // pred_check_branch
    %42 = sbr.rel (0) target = $region17
  $region16: #{tpu_custom_call.1} parent=0 // pred_region
    _
  $region17: #{tpu_custom_call.1} parent=0 // pred_fallthru
    _
  // Predicated region
  $region18: #{tpu_custom_call.1} parent=0 // pred_check
    _
  $region19: #{tpu_custom_call.1} parent=0 // pred_check_branch
    %44 = sbr.rel (0) target = $region21
  $region20: #{tpu_custom_call.1} parent=0 // pred_region
    _
  $region21: #{tpu_custom_call.1} parent=0 // pred_fallthru
    _
  // Predicated region
  $region22: #{tpu_custom_call.1} parent=0 // pred_check
    _
  $region23: #{tpu_custom_call.1} parent=0 // pred_check_branch
    %46 = sbr.rel (0) target = $region25
  $region24: #{tpu_custom_call.1} parent=0 // pred_region
    _
  $region25: #{tpu_custom_call.1} parent=0 // pred_fallthru
    _
  // Predicated region
  $region26: #{tpu_custom_call.1} parent=0 // pred_check
    _
  $region27: #{tpu_custom_call.1} parent=0 // pred_check_branch
    %48 = sbr.rel (0) target = $region29
  $region28: #{tpu_custom_call.1} parent=0 // pred_region
    _
  $region29: #{tpu_custom_call.1} parent=0 // pred_fallthru
    _
  // Predicated region
  $region30: #{tpu_custom_call.1} parent=0 // pred_check
    _
  $region31: #{tpu_custom_call.1} parent=0 // pred_check_branch
    %50 = sbr.rel (0) target = $region33
  $region32: #{tpu_custom_call.1} parent=0 // pred_region
    _
  $region33: #{tpu_custom_call.1} parent=0 // pred_fallthru
    _
  // Predicated region
  $region34: #{tpu_custom_call.1} parent=0 // pred_check
    _
  $region35: #{tpu_custom_call.1} parent=0 // pred_check_branch
    %52 = sbr.rel (0) target = $region37
  $region36: #{tpu_custom_call.1} parent=0 // pred_region
    _
  $region37: #{tpu_custom_call.1} parent=0 // pred_fallthru
    _
  // Predicated region
  $region38: #{tpu_custom_call.1} parent=0 // pred_check
    _
  $region39: #{tpu_custom_call.1} parent=0 // pred_check_branch
    %54 = sbr.rel (0) target = $region41
  $region40: #{tpu_custom_call.1} parent=0 // pred_region
    _
  $region41: #{tpu_custom_call.1} parent=0 // pred_fallthru
    _
  // Predicated region
  $region42: #{tpu_custom_call.1} parent=0 // pred_check
    _
  $region43: #{tpu_custom_call.1} parent=0 // pred_check_branch
    %56 = sbr.rel (0) target = $region45
  $region44: #{tpu_custom_call.1} parent=0 // pred_region
    _
  $region45: #{tpu_custom_call.1} parent=0 // pred_fallthru
    _
  // Predicated region
  $region46: #{tpu_custom_call.1} parent=0 // pred_check
    _
  $region47: #{tpu_custom_call.1} parent=0 // pred_check_branch
    %58 = sbr.rel (0) target = $region49
  $region48: #{tpu_custom_call.1} parent=0 // pred_region
    _
  $region49: #{tpu_custom_call.1} parent=0 // pred_fallthru
    _
  // Predicated region
  $region50: #{tpu_custom_call.1} parent=0 // pred_check
    _
  $region51: #{tpu_custom_call.1} parent=0 // pred_check_branch
    %60 = sbr.rel (0) target = $region53
  $region52: #{tpu_custom_call.1} parent=0 // pred_region
    _
  $region53: #{tpu_custom_call.1} parent=0 // pred_fallthru
    _
  // Predicated region
  $region54: #{tpu_custom_call.1} parent=0 // pred_check
    _
  $region55: #{tpu_custom_call.1} parent=0 // pred_check_branch
    %62 = sbr.rel (0) target = $region57
  $region56: #{tpu_custom_call.1} parent=0 // pred_region
    _
  $region57: #{tpu_custom_call.1} parent=0 // pred_fallthru
    _
  // Predicated region
  $region58: #{tpu_custom_call.1} parent=0 // pred_check
    _
  $region59: #{tpu_custom_call.1} parent=0 // pred_check_branch
    %64 = sbr.rel (0) target = $region61
  $region60: #{tpu_custom_call.1} parent=0 // pred_region
    _
  $region61: #{tpu_custom_call.1} parent=0 // pred_fallthru
    _
  // Predicated region
  $region62: #{tpu_custom_call.1} parent=0 // pred_check
    _
  $region63: #{tpu_custom_call.1} parent=0 // pred_check_branch
    %66 = sbr.rel (0) target = $region65
  $region64: #{tpu_custom_call.1} parent=0 // pred_region
    _
  $region65: #{tpu_custom_call.1} parent=0 // pred_fallthru
    _
  // Predicated region
  $region66: #{tpu_custom_call.1} parent=0 // pred_check
    _
  $region67: #{tpu_custom_call.1} parent=0 // pred_check_branch
    %68 = sbr.rel (0) target = $region69
  $region68: #{tpu_custom_call.1} parent=0 // pred_region
    _
  $region69: #{tpu_custom_call.1} parent=0 // pred_fallthru
    _
  // Predicated region
  $region70: #{tpu_custom_call.1} parent=0 // pred_check
    _
  $region71: #{tpu_custom_call.1} parent=0 // pred_check_branch
    %70 = sbr.rel (0) target = $region73
  $region72: #{tpu_custom_call.1} parent=0 // pred_region
    _
  $region73: #{tpu_custom_call.1} parent=0 // pred_fallthru
    _
  // Predicated region
  $region74: #{tpu_custom_call.1} parent=0 // pred_check
    _
  $region75: #{tpu_custom_call.1} parent=0 // pred_check_branch
    %72 = sbr.rel (0) target = $region77
  $region76: #{tpu_custom_call.1} parent=0 // pred_region
    _
  $region77: #{tpu_custom_call.1} parent=0 // pred_fallthru
    _
  // Predicated region
  $region78: #{tpu_custom_call.1} parent=0 // pred_check
    _
  $region79: #{tpu_custom_call.1} parent=0 // pred_check_branch
    %74 = sbr.rel (0) target = $region81
  $region80: #{tpu_custom_call.1} parent=0 // pred_region
    _
  $region81: #{tpu_custom_call.1} parent=0 // pred_fallthru
    _
  // Predicated region
  $region82: #{tpu_custom_call.1} parent=0 // pred_check
    _
  $region83: #{tpu_custom_call.1} parent=0 // pred_check_branch
    %76 = sbr.rel (0) target = $region85
  $region84: #{tpu_custom_call.1} parent=0 // pred_region
    _
  $region85: #{tpu_custom_call.1} parent=0 // pred_fallthru
    _
  // Predicated region
  $region86: #{tpu_custom_call.1} parent=0 // pred_check
    _
  $region87: #{tpu_custom_call.1} parent=0 // pred_check_branch
    %78 = sbr.rel (0) target = $region89
  $region88: #{tpu_custom_call.1} parent=0 // pred_region
    _
  $region89: #{tpu_custom_call.1} parent=0 // pred_fallthru
    _
  // Predicated region
  $region90: #{tpu_custom_call.1} parent=0 // pred_check
    _
  $region91: #{tpu_custom_call.1} parent=0 // pred_check_branch
    %80 = sbr.rel (0) target = $region93
  $region92: #{tpu_custom_call.1} parent=0 // pred_region
    _
  $region93: #{tpu_custom_call.1} parent=0 // pred_fallthru
    _
  // Predicated region
  $region94: #{tpu_custom_call.1} parent=0 // pred_check
    _
  $region95: #{tpu_custom_call.1} parent=0 // pred_check_branch
    %82 = sbr.rel (0) target = $region97
  $region96: #{tpu_custom_call.1} parent=0 // pred_region
    _
  $region97: #{tpu_custom_call.1} parent=0 // pred_fallthru
    _
  // Predicated region
  $region98: #{tpu_custom_call.1} parent=0 // pred_check
    _
  $region99: #{tpu_custom_call.1} parent=0 // pred_check_branch
    %84 = sbr.rel (0) target = $region101
  $region100: #{tpu_custom_call.1} parent=0 // pred_region
    _
  $region101: #{tpu_custom_call.1} parent=0 // pred_fallthru
    _
  // Predicated region
  $region102: #{tpu_custom_call.1} parent=0 // pred_check
    _
  $region103: #{tpu_custom_call.1} parent=0 // pred_check_branch
    %86 = sbr.rel (0) target = $region105
  $region104: #{tpu_custom_call.1} parent=0 // pred_region
    _
  $region105: #{tpu_custom_call.1} parent=0 // pred_fallthru
    _
  // Predicated region
  $region106: #{tpu_custom_call.1} parent=0 // pred_check
    _
  $region107: #{tpu_custom_call.1} parent=0 // pred_check_branch
    %88 = sbr.rel (0) target = $region109
  $region108: #{tpu_custom_call.1} parent=0 // pred_region
    _
  $region109: #{tpu_custom_call.1} parent=0 // pred_fallthru
    _
  // Predicated region
  $region110: #{tpu_custom_call.1} parent=0 // pred_check
    _
  $region111: #{tpu_custom_call.1} parent=0 // pred_check_branch
    %90 = sbr.rel (0) target = $region113
  $region112: #{tpu_custom_call.1} parent=0 // pred_region
    _
  $region113: #{tpu_custom_call.1} parent=0 // pred_fallthru
    _
  %v92 = vlaneseq
  %v93 = vand.u32 %v92, 127
  %v94 = vld [vmem:[%s2] sm:$0xff]
  %v95 = vld [vmem:[%s2 + $0x8] sm:$0xff]
  %v96 = vld [vmem:[%s2 + $0x10] sm:$0xff]
  %97 = vset.pattern.permute.xlu0 0
  %98 = vperm.xlu0 %97, %v94
  %v99 = vpop.permute.xlu0 %98
  %100 = vset.pattern.permute.xlu0 0
  %101 = vperm.xlu0 %100, %v95
  %v102 = vpop.permute.xlu0 %101
  %103 = vset.pattern.permute.xlu0 0
  %104 = vperm.xlu0 %103, %v96
  %v105 = vpop.permute.xlu0 %104
  %vm106 = vcmp.eq.s32.totalorder %v93, %v99
  %vm107 = vcmp.eq.s32.totalorder %v93, %v102
  %vm108 = vcmp.eq.s32.totalorder %v93, %v105
  %v109 = vsel %vm106, 1, 0
  %v110 = vsel %vm107, 1, 0
  %v111 = vsel %vm108, 1, 0
  %v112 = vcvt.s32.f32 %v109
  %v113 = vcvt.s32.f32 %v110
  %v114 = vcvt.s32.f32 %v111
  %v115 = vpack.c.bf16 %v113, %v112
  %v116 = vpack.c.bf16 %v114, %v114
  %v117 = vld [vmem:[%s3] sm:$0xff]
  %v118 = vld [vmem:[%s3 + $0x8] sm:$0xff]
  %v119 = vld [vmem:[%s3 + $0x10] sm:$0xff]
  %120 = vset.pattern.permute.xlu0 0
  %121 = vperm.xlu0 %120, %v117
  %v122 = vpop.permute.xlu0 %121
  %123 = vset.pattern.permute.xlu0 0
  %124 = vperm.xlu0 %123, %v118
  %v125 = vpop.permute.xlu0 %124
  %126 = vset.pattern.permute.xlu0 0
  %127 = vperm.xlu0 %126, %v119
  %v128 = vpop.permute.xlu0 %127
  %vm129 = vcmp.eq.s32.totalorder %v93, %v122
  %vm130 = vcmp.eq.s32.totalorder %v93, %v125
  %vm131 = vcmp.eq.s32.totalorder %v93, %v128
  %v132 = vsel %vm129, 1, 0
  %v133 = vsel %vm130, 1, 0
  %v134 = vsel %vm131, 1, 0
  %v135 = vcvt.s32.f32 %v132
  %v136 = vcvt.s32.f32 %v133
  %v137 = vcvt.s32.f32 %v134
  %v138 = vpack.c.bf16 %v136, %v135
  %v139 = vpack.c.bf16 %v137, %v137
  %v140 = vld [vmem:[%s0] sm:$0xff]
  %v141 = vld [vmem:[%s0 + $0x8] sm:$0xf]
  %v142 = vld [vmem:[%s5] sm:$0xff]
  %v143 = vld [vmem:[%s6] sm:$0x1]
  %v145 = vlaneseq
  %v146 = vshrl.u32 %v145, 7
  %v147 = vsub.s32 0, %v146
  %v148 = vrot.slane %v143, %v147
  %vm150 = vcmask 64512
  %v152 = vsel %vm150, %v140, 0
  %v155 = vsel %vm150, %v141, 0
  %157 = vmatprep.subr.mxu0 0.0
  %158 = vmatpush1.msra.mxu0 %v142
  %159 = vmatprep.subr.mxu0 0.0
  %160 = vmatpush1.msra.mxu0 0.0
  %161 = vmatprep.subr.mxu0 0.0
  %162 = vmatpush1.msra.mxu0 0.0
  %163 = vmatprep.subr.mxu0 0.0
  %164 = vmatpush1.msra.mxu0 0.0
  %165 = vmatprep.subr.mxu0 0.0
  %166 = vmatpush1.msra.mxu0 0.0
  %167 = vmatprep.subr.mxu0 0.0
  %168 = vmatpush1.msra.mxu0 0.0
  %169 = vmatprep.subr.mxu0 0.0
  %170 = vmatpush1.msra.mxu0 0.0
  %171 = vmatprep.subr.mxu0 0.0
  %172 = vmatpush1.msra.mxu0 0.0
  %173 = vmatprep.subr.mxu0 0.0
  %174 = vmatpush1.msra.mxu0 0.0
  %175 = vmatprep.subr.mxu0 0.0
  %176 = vmatpush1.msra.mxu0 0.0
  %177 = vmatprep.subr.mxu0 0.0
  %178 = vmatpush1.msra.mxu0 0.0
  %179 = vmatprep.subr.mxu0 0.0
  %180 = vmatpush1.msra.mxu0 0.0
  %181 = vmatprep.subr.mxu0 0.0
  %182 = vmatpush1.msra.mxu0 0.0
  %183 = vmatprep.subr.mxu0 0.0
  %184 = vmatpush1.msra.mxu0 0.0
  %185 = vmatprep.subr.mxu0 0.0
  %186 = vmatpush1.msra.mxu0 0.0
  %187 = vmatprep.subr.mxu0 0.0
  %188 = vmatpush1.msra.mxu0 0.0
  %189 = vmatprep.subr.mxu0 0.0
  %190 = vmatpush1.msra.mxu0 0.0
  %191 = vmatprep.subr.mxu0 0.0
  %192 = vmatpush1.msra.mxu0 0.0
  %193 = vmatprep.subr.mxu0 0.0
  %194 = vmatpush1.msra.mxu0 0.0
  %195 = vmatprep.subr.mxu0 0.0
  %196 = vmatpush1.msra.mxu0 0.0
  %197 = vmatprep.subr.mxu0 0.0
  %198 = vmatpush1.msra.mxu0 0.0
  %199 = vmatprep.subr.mxu0 0.0
  %200 = vmatpush1.msra.mxu0 0.0
  %201 = vmatprep.subr.mxu0 0.0
  %202 = vmatpush1.msra.mxu0 0.0
  %203 = vmatprep.subr.mxu0 0.0
  %204 = vmatpush1.msra.mxu0 0.0
  %205 = vmatprep.subr.mxu0 0.0
  %206 = vmatpush1.msra.mxu0 0.0
  %207 = vmatprep.subr.mxu0 0.0
  %208 = vmatpush1.msra.mxu0 0.0
  %209 = vmatprep.subr.mxu0 0.0
  %210 = vmatpush1.msra.mxu0 0.0
  %211 = vmatprep.subr.mxu0 0.0
  %212 = vmatpush1.msra.mxu0 0.0
  %213 = vmatprep.subr.mxu0 0.0
  %214 = vmatpush1.msra.mxu0 0.0
  %215 = vmatprep.subr.mxu0 0.0
  %216 = vmatpush1.msra.mxu0 0.0
  %217 = vmatprep.subr.mxu0 0.0
  %218 = vmatpush1.msra.mxu0 0.0
  %219 = vmatprep.subr.mxu0 0.0
  %220 = vmatpush1.msra.mxu0 0.0
  %221 = vmatprep.mubr.f32.mxu0 0.0
  %222 = vmatmul.mubr.f32.gmra.mrb[0].mxu0 %v152
  %v223 = vpop.f32.mrb[0].mxu0
  %v224 = vadd.f32 %v148, %v223
  %v225 = vpop.f32.mrb[0].mxu0
  %226 = vmatprep.mubr.f32.mxu0 0.0
  %227 = vmatmul.mubr.f32.gmra.mrb[0].mxu0 %v155
  %v228 = vpop.f32.mrb[0].mxu0
  %v229 = vadd.f32 %v148, %v228
  %v230 = vpop.f32.mrb[0].mxu0
  %231 = vdwg.mxu0
  %v232 = vmax.f32 %v224, 0.0
  %v233 = vmax.f32 %v229, 0.0
  %v234 = vld [vmem:[%s1] sm:$0xff]
  %v235 = vld [vmem:[%s1 + $0x8] sm:$0xff]
  %v236 = vld [vmem:[%s1 + $0x10] sm:$0xff]
  %v237 = vld [vmem:[%s7] sm:$0xf]
  %v238 = vld [vmem:[%s8] sm:$0x1]
  %v240 = vlaneseq
  %v241 = vshrl.u32 %v240, 7
  %v242 = vsub.s32 0, %v241
  %v243 = vrot.slane %v238, %v242
  %vm245 = vcmask 31744
  %v247 = vsel %vm245, %v234, 0
  %v250 = vsel %vm245, %v235, 0
  %v253 = vsel %vm245, %v236, 0
  %vm255 = vcmask 1043456
  %v257 = vsel %vm255, %v237, 0
  %259 = vmatprep.subr.mxu0 0.0
  %260 = vmatpush1.msra.mxu0 %v257
  %261 = vmatprep.subr.mxu0 0.0
  %262 = vmatpush1.msra.mxu0 0.0
  %263 = vmatprep.subr.mxu0 0.0
  %264 = vmatpush1.msra.mxu0 0.0
  %265 = vmatprep.subr.mxu0 0.0
  %266 = vmatpush1.msra.mxu0 0.0
  %267 = vmatprep.subr.mxu0 0.0
  %268 = vmatpush1.msra.mxu0 0.0
  %269 = vmatprep.subr.mxu0 0.0
  %270 = vmatpush1.msra.mxu0 0.0
  %271 = vmatprep.subr.mxu0 0.0
  %272 = vmatpush1.msra.mxu0 0.0
  %273 = vmatprep.subr.mxu0 0.0
  %274 = vmatpush1.msra.mxu0 0.0
  %275 = vmatprep.subr.mxu0 0.0
  %276 = vmatpush1.msra.mxu0 0.0
  %277 = vmatprep.subr.mxu0 0.0
  %278 = vmatpush1.msra.mxu0 0.0
  %279 = vmatprep.subr.mxu0 0.0
  %280 = vmatpush1.msra.mxu0 0.0
  %281 = vmatprep.subr.mxu0 0.0
  %282 = vmatpush1.msra.mxu0 0.0
  %283 = vmatprep.subr.mxu0 0.0
  %284 = vmatpush1.msra.mxu0 0.0
  %285 = vmatprep.subr.mxu0 0.0
  %286 = vmatpush1.msra.mxu0 0.0
  %287 = vmatprep.subr.mxu0 0.0
  %288 = vmatpush1.msra.mxu0 0.0
  %289 = vmatprep.subr.mxu0 0.0
  %290 = vmatpush1.msra.mxu0 0.0
  %291 = vmatprep.subr.mxu0 0.0
  %292 = vmatpush1.msra.mxu0 0.0
  %293 = vmatprep.subr.mxu0 0.0
  %294 = vmatpush1.msra.mxu0 0.0
  %295 = vmatprep.subr.mxu0 0.0
  %296 = vmatpush1.msra.mxu0 0.0
  %297 = vmatprep.subr.mxu0 0.0
  %298 = vmatpush1.msra.mxu0 0.0
  %299 = vmatprep.subr.mxu0 0.0
  %300 = vmatpush1.msra.mxu0 0.0
  %301 = vmatprep.subr.mxu0 0.0
  %302 = vmatpush1.msra.mxu0 0.0
  %303 = vmatprep.subr.mxu0 0.0
  %304 = vmatpush1.msra.mxu0 0.0
  %305 = vmatprep.subr.mxu0 0.0
  %306 = vmatpush1.msra.mxu0 0.0
  %307 = vmatprep.subr.mxu0 0.0
  %308 = vmatpush1.msra.mxu0 0.0
  %309 = vmatprep.subr.mxu0 0.0
  %310 = vmatpush1.msra.mxu0 0.0
  %311 = vmatprep.subr.mxu0 0.0
  %312 = vmatpush1.msra.mxu0 0.0
  %313 = vmatprep.subr.mxu0 0.0
  %314 = vmatpush1.msra.mxu0 0.0
  %315 = vmatprep.subr.mxu0 0.0
  %316 = vmatpush1.msra.mxu0 0.0
  %317 = vmatprep.subr.mxu0 0.0
  %318 = vmatpush1.msra.mxu0 0.0
  %319 = vmatprep.subr.mxu0 0.0
  %320 = vmatpush1.msra.mxu0 0.0
  %321 = vmatprep.subr.mxu0 0.0
  %322 = vmatpush1.msra.mxu0 0.0
  %323 = vmatprep.mubr.f32.mxu0 0.0
  %324 = vmatmul.mubr.f32.gmra.mrb[0].mxu0 %v247
  %v325 = vpop.f32.mrb[0].mxu0
  %v326 = vadd.f32 %v243, %v325
  %v327 = vpop.f32.mrb[0].mxu0
  %328 = vmatprep.mubr.f32.mxu0 0.0
  %329 = vmatmul.mubr.f32.gmra.mrb[0].mxu0 %v250
  %v330 = vpop.f32.mrb[0].mxu0
  %v331 = vadd.f32 %v243, %v330
  %v332 = vpop.f32.mrb[0].mxu0
  %333 = vmatprep.mubr.f32.mxu0 0.0
  %334 = vmatmul.mubr.f32.gmra.mrb[0].mxu0 %v253
  %v335 = vpop.f32.mrb[0].mxu0
  %v336 = vadd.f32 %v243, %v335
  %v337 = vpop.f32.mrb[0].mxu0
  %338 = vdwg.mxu0
  %v339 = vmax.f32 %v326, 0.0
  %v340 = vmax.f32 %v331, 0.0
  %v341 = vmax.f32 %v336, 0.0
  %v342 = vld [vmem:[%s10] sm:$0x1]
  %v343 = vld [vmem:[%s12] sm:$0x1]
  %v344 = vld [vmem:[%s13] sm:$0xff]
  %v345 = vld [vmem:[%s13 + $0x8] sm:$0xff]
  %v346 = vld [vmem:[%s13 + $0x10] sm:$0xff]
  %v347 = vld [vmem:[%s13 + $0x18] sm:$0xff]
  %v348 = vld [vmem:[%s13 + $0x20] sm:$0xff]
  %v349 = vld [vmem:[%s13 + $0x28] sm:$0xff]
  %v350 = vld [vmem:[%s13 + $0x30] sm:$0xff]
  %v351 = vld [vmem:[%s13 + $0x38] sm:$0xff]
  %v352 = vld [vmem:[%s9] sm:$0xff]
  %v353 = vld [vmem:[%s9 + $0x8] sm:$0xff]
  %v354 = vld [vmem:[%s9 + $0x10] sm:$0xff]
  %v355 = vld [vmem:[%s9 + $0x18] sm:$0xff]
  %v356 = vld [vmem:[%s9 + $0x20] sm:$0xff]
  %v357 = vld [vmem:[%s9 + $0x28] sm:$0xff]
  %vm358 = vcmask 130048
  %v360 = vsel %vm358, %v232, 0
  %v363 = vsel %vm358, %v233, 0
  %365 = vmatprep.subr.mxu0 %v353
  %366 = vmatpush1.msra.mxu0 %v352
  %367 = vmatprep.subr.mxu0 %v356
  %368 = vmatpush1.msra.mxu0 %v355
  %369 = vmatprep.subr.mxu0 0.0
  %370 = vmatpush1.msra.mxu0 0.0
  %371 = vmatprep.subr.mxu0 0.0
  %372 = vmatpush1.msra.mxu0 0.0
  %373 = vmatprep.subr.mxu0 0.0
  %374 = vmatpush1.msra.mxu0 0.0
  %375 = vmatprep.subr.mxu0 0.0
  %376 = vmatpush1.msra.mxu0 0.0
  %377 = vmatprep.subr.mxu0 0.0
  %378 = vmatpush1.msra.mxu0 0.0
  %379 = vmatprep.subr.mxu0 0.0
  %380 = vmatpush1.msra.mxu0 0.0
  %381 = vmatprep.subr.mxu0 0.0
  %382 = vmatpush1.msra.mxu0 0.0
  %383 = vmatprep.subr.mxu0 0.0
  %384 = vmatpush1.msra.mxu0 0.0
  %385 = vmatprep.subr.mxu0 0.0
  %386 = vmatpush1.msra.mxu0 0.0
  %387 = vmatprep.subr.mxu0 0.0
  %388 = vmatpush1.msra.mxu0 0.0
  %389 = vmatprep.subr.mxu0 0.0
  %390 = vmatpush1.msra.mxu0 0.0
  %391 = vmatprep.subr.mxu0 0.0
  %392 = vmatpush1.msra.mxu0 0.0
  %393 = vmatprep.subr.mxu0 0.0
  %394 = vmatpush1.msra.mxu0 0.0
  %395 = vmatprep.subr.mxu0 0.0
  %396 = vmatpush1.msra.mxu0 0.0
  %397 = vmatprep.subr.mxu0 0.0
  %398 = vmatpush1.msra.mxu0 0.0
  %399 = vmatprep.subr.mxu0 0.0
  %400 = vmatpush1.msra.mxu0 0.0
  %401 = vmatprep.subr.mxu0 0.0
  %402 = vmatpush1.msra.mxu0 0.0
  %403 = vmatprep.subr.mxu0 0.0
  %404 = vmatpush1.msra.mxu0 0.0
  %405 = vmatprep.subr.mxu0 0.0
  %406 = vmatpush1.msra.mxu0 0.0
  %407 = vmatprep.subr.mxu0 0.0
  %408 = vmatpush1.msra.mxu0 0.0
  %409 = vmatprep.subr.mxu0 0.0
  %410 = vmatpush1.msra.mxu0 0.0
  %411 = vmatprep.subr.mxu0 0.0
  %412 = vmatpush1.msra.mxu0 0.0
  %413 = vmatprep.subr.mxu0 0.0
  %414 = vmatpush1.msra.mxu0 0.0
  %415 = vmatprep.subr.mxu0 0.0
  %416 = vmatpush1.msra.mxu0 0.0
  %417 = vmatprep.subr.mxu0 0.0
  %418 = vmatpush1.msra.mxu0 0.0
  %419 = vmatprep.subr.mxu0 0.0
  %420 = vmatpush1.msra.mxu0 0.0
  %421 = vmatprep.subr.mxu0 0.0
  %422 = vmatpush1.msra.mxu0 0.0
  %423 = vmatprep.subr.mxu0 0.0
  %424 = vmatpush1.msra.mxu0 0.0
  %425 = vmatprep.subr.mxu0 0.0
  %426 = vmatpush1.msra.mxu0 0.0
  %427 = vmatprep.subr.mxu0 0.0
  %428 = vmatpush1.msra.mxu0 0.0
  %429 = vmatprep.mubr.f32.mxu0 0.0
  %430 = vmatmul.mubr.f32.gmra.mrb[0].mxu0 %v360
  %v431 = vpop.f32.mrb[0].mxu0
  %v432 = vadd.f32 0.0, %v431
  %v433 = vpop.f32.mrb[0].mxu0
  %v434 = vadd.f32 0.0, %v433
  %435 = vmatprep.mubr.f32.mxu0 0.0
  %436 = vmatmul.mubr.f32.gmra.mrb[0].mxu0 %v363
  %v437 = vpop.f32.mrb[0].mxu0
  %v438 = vadd.f32 0.0, %v437
  %v439 = vpop.f32.mrb[0].mxu0
  %v440 = vadd.f32 0.0, %v439
  %441 = vdwg.mxu0
  %442 = vmatprep.subr.mxu0 0.0
  %443 = vmatpush1.msra.mxu0 %v354
  %444 = vmatprep.subr.mxu0 0.0
  %445 = vmatpush1.msra.mxu0 %v357
  %446 = vmatprep.subr.mxu0 0.0
  %447 = vmatpush1.msra.mxu0 0.0
  %448 = vmatprep.subr.mxu0 0.0
  %449 = vmatpush1.msra.mxu0 0.0
  %450 = vmatprep.subr.mxu0 0.0
  %451 = vmatpush1.msra.mxu0 0.0
  %452 = vmatprep.subr.mxu0 0.0
  %453 = vmatpush1.msra.mxu0 0.0
  %454 = vmatprep.subr.mxu0 0.0
  %455 = vmatpush1.msra.mxu0 0.0
  %456 = vmatprep.subr.mxu0 0.0
  %457 = vmatpush1.msra.mxu0 0.0
  %458 = vmatprep.subr.mxu0 0.0
  %459 = vmatpush1.msra.mxu0 0.0
  %460 = vmatprep.subr.mxu0 0.0
  %461 = vmatpush1.msra.mxu0 0.0
  %462 = vmatprep.subr.mxu0 0.0
  %463 = vmatpush1.msra.mxu0 0.0
  %464 = vmatprep.subr.mxu0 0.0
  %465 = vmatpush1.msra.mxu0 0.0
  %466 = vmatprep.subr.mxu0 0.0
  %467 = vmatpush1.msra.mxu0 0.0
  %468 = vmatprep.subr.mxu0 0.0
  %469 = vmatpush1.msra.mxu0 0.0
  %470 = vmatprep.subr.mxu0 0.0
  %471 = vmatpush1.msra.mxu0 0.0
  %472 = vmatprep.subr.mxu0 0.0
  %473 = vmatpush1.msra.mxu0 0.0
  %474 = vmatprep.subr.mxu0 0.0
  %475 = vmatpush1.msra.mxu0 0.0
  %476 = vmatprep.subr.mxu0 0.0
  %477 = vmatpush1.msra.mxu0 0.0
  %478 = vmatprep.subr.mxu0 0.0
  %479 = vmatpush1.msra.mxu0 0.0
  %480 = vmatprep.subr.mxu0 0.0
  %481 = vmatpush1.msra.mxu0 0.0
  %482 = vmatprep.subr.mxu0 0.0
  %483 = vmatpush1.msra.mxu0 0.0
  %484 = vmatprep.subr.mxu0 0.0
  %485 = vmatpush1.msra.mxu0 0.0
  %486 = vmatprep.subr.mxu0 0.0
  %487 = vmatpush1.msra.mxu0 0.0
  %488 = vmatprep.subr.mxu0 0.0
  %489 = vmatpush1.msra.mxu0 0.0
  %490 = vmatprep.subr.mxu0 0.0
  %491 = vmatpush1.msra.mxu0 0.0
  %492 = vmatprep.subr.mxu0 0.0
  %493 = vmatpush1.msra.mxu0 0.0
  %494 = vmatprep.subr.mxu0 0.0
  %495 = vmatpush1.msra.mxu0 0.0
  %496 = vmatprep.subr.mxu0 0.0
  %497 = vmatpush1.msra.mxu0 0.0
  %498 = vmatprep.subr.mxu0 0.0
  %499 = vmatpush1.msra.mxu0 0.0
  %500 = vmatprep.subr.mxu0 0.0
  %501 = vmatpush1.msra.mxu0 0.0
  %502 = vmatprep.subr.mxu0 0.0
  %503 = vmatpush1.msra.mxu0 0.0
  %504 = vmatprep.subr.mxu0 0.0
  %505 = vmatpush1.msra.mxu0 0.0
  %506 = vmatprep.mubr.f32.mxu0 0.0
  %507 = vmatmul.mubr.f32.gmra.mrb[0].mxu0 %v360
  %v508 = vpop.f32.mrb[0].mxu0
  %v509 = vadd.f32 0.0, %v508
  %v510 = vpop.f32.mrb[0].mxu0
  %511 = vmatprep.mubr.f32.mxu0 0.0
  %512 = vmatmul.mubr.f32.gmra.mrb[0].mxu0 %v363
  %v513 = vpop.f32.mrb[0].mxu0
  %v514 = vadd.f32 0.0, %v513
  %v515 = vpop.f32.mrb[0].mxu0
  %516 = vdwg.mxu0
  %v517 = vpack.c.bf16 %v438, %v432
  %v518 = vpack.c.bf16 %v440, %v434
  %vm519 = vcmask 97280
  %v521 = vsel %vm519, %v115, 0
  %v524 = vsel %vm519, %v116, 0
  %vm526 = vcmask 1045504
  %v528 = vsel %vm526, %v517, 0
  %v531 = vsel %vm526, %v518, 0
  %533 = vmatprep.subr.bf16.mxu0 %v531
  %534 = vmatpush1.bf16.msra.mxu0 %v528
  %535 = vmatprep.subr.bf16.mxu0 0
  %536 = vmatpush1.bf16.msra.mxu0 0
  %537 = vmatprep.subr.bf16.mxu0 0
  %538 = vmatpush1.bf16.msra.mxu0 0
  %539 = vmatprep.subr.bf16.mxu0 0
  %540 = vmatpush1.bf16.msra.mxu0 0
  %541 = vmatprep.subr.bf16.mxu0 0
  %542 = vmatpush1.bf16.msra.mxu0 0
  %543 = vmatprep.subr.bf16.mxu0 0
  %544 = vmatpush1.bf16.msra.mxu0 0
  %545 = vmatprep.subr.bf16.mxu0 0
  %546 = vmatpush1.bf16.msra.mxu0 0
  %547 = vmatprep.subr.bf16.mxu0 0
  %548 = vmatpush1.bf16.msra.mxu0 0
  %549 = vmatprep.subr.bf16.mxu0 0
  %550 = vmatpush1.bf16.msra.mxu0 0
  %551 = vmatprep.subr.bf16.mxu0 0
  %552 = vmatpush1.bf16.msra.mxu0 0
  %553 = vmatprep.subr.bf16.mxu0 0
  %554 = vmatpush1.bf16.msra.mxu0 0
  %555 = vmatprep.subr.bf16.mxu0 0
  %556 = vmatpush1.bf16.msra.mxu0 0
  %557 = vmatprep.subr.bf16.mxu0 0
  %558 = vmatpush1.bf16.msra.mxu0 0
  %559 = vmatprep.subr.bf16.mxu0 0
  %560 = vmatpush1.bf16.msra.mxu0 0
  %561 = vmatprep.subr.bf16.mxu0 0
  %562 = vmatpush1.bf16.msra.mxu0 0
  %563 = vmatprep.subr.bf16.mxu0 0
  %564 = vmatpush1.bf16.msra.mxu0 0
  %565 = vmatprep.mubr.bf16.mxu0 0
  %566 = vmatmul.mubr.bf16.gmra.mrb[0].mxu0 %v521
  %v567 = vpop.f32.mrb[0].mxu0
  %v568 = vadd.f32 0.0, %v567
  %v569 = vpop.f32.mrb[0].mxu0
  %v570 = vadd.f32 0.0, %v569
  %v571 = vpop.f32.mrb[0].mxu0
  %v572 = vadd.f32 0.0, %v571
  %v573 = vpop.f32.mrb[0].mxu0
  %v574 = vadd.f32 0.0, %v573
  %575 = vmatprep.mubr.bf16.mxu0 0
  %576 = vmatmul.mubr.bf16.gmra.mrb[0].mxu0 %v524
  %v577 = vpop.f32.mrb[0].mxu0
  %v578 = vadd.f32 0.0, %v577
  %v579 = vpop.f32.mrb[0].mxu0
  %v580 = vadd.f32 0.0, %v579
  %v581 = vpop.f32.mrb[0].mxu0
  %v582 = vpop.f32.mrb[0].mxu0
  %583 = vdwg.mxu0
  %v584 = vpack.c.bf16 %v514, %v509
  %v586 = vsel %vm519, %v138, 0
  %v589 = vsel %vm519, %v139, 0
  %v592 = vsel %vm526, %v584, 0
  %594 = vmatprep.subr.bf16.mxu0 0
  %595 = vmatpush1.bf16.msra.mxu0 %v592
  %596 = vmatprep.subr.bf16.mxu0 0
  %597 = vmatpush1.bf16.msra.mxu0 0
  %598 = vmatprep.subr.bf16.mxu0 0
  %599 = vmatpush1.bf16.msra.mxu0 0
  %600 = vmatprep.subr.bf16.mxu0 0
  %601 = vmatpush1.bf16.msra.mxu0 0
  %602 = vmatprep.subr.bf16.mxu0 0
  %603 = vmatpush1.bf16.msra.mxu0 0
  %604 = vmatprep.subr.bf16.mxu0 0
  %605 = vmatpush1.bf16.msra.mxu0 0
  %606 = vmatprep.subr.bf16.mxu0 0
  %607 = vmatpush1.bf16.msra.mxu0 0
  %608 = vmatprep.subr.bf16.mxu0 0
  %609 = vmatpush1.bf16.msra.mxu0 0
  %610 = vmatprep.subr.bf16.mxu0 0
  %611 = vmatpush1.bf16.msra.mxu0 0
  %612 = vmatprep.subr.bf16.mxu0 0
  %613 = vmatpush1.bf16.msra.mxu0 0
  %614 = vmatprep.subr.bf16.mxu0 0
  %615 = vmatpush1.bf16.msra.mxu0 0
  %616 = vmatprep.subr.bf16.mxu0 0
  %617 = vmatpush1.bf16.msra.mxu0 0
  %618 = vmatprep.subr.bf16.mxu0 0
  %619 = vmatpush1.bf16.msra.mxu0 0
  %620 = vmatprep.subr.bf16.mxu0 0
  %621 = vmatpush1.bf16.msra.mxu0 0
  %622 = vmatprep.subr.bf16.mxu0 0
  %623 = vmatpush1.bf16.msra.mxu0 0
  %624 = vmatprep.subr.bf16.mxu0 0
  %625 = vmatpush1.bf16.msra.mxu0 0
  %626 = vmatprep.mubr.bf16.mxu0 0
  %627 = vmatmul.mubr.bf16.gmra.mrb[0].mxu0 %v586
  %v628 = vpop.f32.mrb[0].mxu0
  %v629 = vadd.f32 0.0, %v628
  %v630 = vpop.f32.mrb[0].mxu0
  %v631 = vpop.f32.mrb[0].mxu0
  %v632 = vadd.f32 0.0, %v631
  %v633 = vpop.f32.mrb[0].mxu0
  %634 = vmatprep.mubr.bf16.mxu0 0
  %635 = vmatmul.mubr.bf16.gmra.mrb[0].mxu0 %v589
  %v636 = vpop.f32.mrb[0].mxu0
  %v637 = vadd.f32 0.0, %v636
  %v638 = vpop.f32.mrb[0].mxu0
  %v639 = vpop.f32.mrb[0].mxu0
  %v640 = vpop.f32.mrb[0].mxu0
  %641 = vdwg.mxu0
  %v643 = vlaneseq
  %v644 = vshrl.u32 %v643, 7
  %v645 = vsub.s32 0, %v644
  %v646 = vrot.slane %v342, %v645
  %v648 = vadd.f32 %v568, %v646
  %v649 = vadd.f32 %v572, %v646
  %v650 = vadd.f32 %v578, %v646
  %v651 = vld [vmem:[%s11] sm:$0xff]
  %v652 = vld [vmem:[%s11 + $0x8] sm:$0xff]
  %v654 = vsel %vm358, %v339, 0
  %v657 = vsel %vm358, %v340, 0
  %v660 = vsel %vm358, %v341, 0
  %662 = vmatprep.subr.mxu0 0.0
  %663 = vmatpush1.msra.mxu0 %v651
  %664 = vmatprep.subr.mxu0 0.0
  %665 = vmatpush1.msra.mxu0 %v652
  %666 = vmatprep.subr.mxu0 0.0
  %667 = vmatpush1.msra.mxu0 0.0
  %668 = vmatprep.subr.mxu0 0.0
  %669 = vmatpush1.msra.mxu0 0.0
  %670 = vmatprep.subr.mxu0 0.0
  %671 = vmatpush1.msra.mxu0 0.0
  %672 = vmatprep.subr.mxu0 0.0
  %673 = vmatpush1.msra.mxu0 0.0
  %674 = vmatprep.subr.mxu0 0.0
  %675 = vmatpush1.msra.mxu0 0.0
  %676 = vmatprep.subr.mxu0 0.0
  %677 = vmatpush1.msra.mxu0 0.0
  %678 = vmatprep.subr.mxu0 0.0
  %679 = vmatpush1.msra.mxu0 0.0
  %680 = vmatprep.subr.mxu0 0.0
  %681 = vmatpush1.msra.mxu0 0.0
  %682 = vmatprep.subr.mxu0 0.0
  %683 = vmatpush1.msra.mxu0 0.0
  %684 = vmatprep.subr.mxu0 0.0
  %685 = vmatpush1.msra.mxu0 0.0
  %686 = vmatprep.subr.mxu0 0.0
  %687 = vmatpush1.msra.mxu0 0.0
  %688 = vmatprep.subr.mxu0 0.0
  %689 = vmatpush1.msra.mxu0 0.0
  %690 = vmatprep.subr.mxu0 0.0
  %691 = vmatpush1.msra.mxu0 0.0
  %692 = vmatprep.subr.mxu0 0.0
  %693 = vmatpush1.msra.mxu0 0.0
  %694 = vmatprep.subr.mxu0 0.0
  %695 = vmatpush1.msra.mxu0 0.0
  %696 = vmatprep.subr.mxu0 0.0
  %697 = vmatpush1.msra.mxu0 0.0
  %698 = vmatprep.subr.mxu0 0.0
  %699 = vmatpush1.msra.mxu0 0.0
  %700 = vmatprep.subr.mxu0 0.0
  %701 = vmatpush1.msra.mxu0 0.0
  %702 = vmatprep.subr.mxu0 0.0
  %703 = vmatpush1.msra.mxu0 0.0
  %704 = vmatprep.subr.mxu0 0.0
  %705 = vmatpush1.msra.mxu0 0.0
  %706 = vmatprep.subr.mxu0 0.0
  %707 = vmatpush1.msra.mxu0 0.0
  %708 = vmatprep.subr.mxu0 0.0
  %709 = vmatpush1.msra.mxu0 0.0
  %710 = vmatprep.subr.mxu0 0.0
  %711 = vmatpush1.msra.mxu0 0.0
  %712 = vmatprep.subr.mxu0 0.0
  %713 = vmatpush1.msra.mxu0 0.0
  %714 = vmatprep.subr.mxu0 0.0
  %715 = vmatpush1.msra.mxu0 0.0
  %716 = vmatprep.subr.mxu0 0.0
  %717 = vmatpush1.msra.mxu0 0.0
  %718 = vmatprep.subr.mxu0 0.0
  %719 = vmatpush1.msra.mxu0 0.0
  %720 = vmatprep.subr.mxu0 0.0
  %721 = vmatpush1.msra.mxu0 0.0
  %722 = vmatprep.subr.mxu0 0.0
  %723 = vmatpush1.msra.mxu0 0.0
  %724 = vmatprep.subr.mxu0 0.0
  %725 = vmatpush1.msra.mxu0 0.0
  %726 = vmatprep.mubr.f32.mxu0 0.0
  %727 = vmatmul.mubr.f32.gmra.mrb[0].mxu0 %v654
  %v728 = vpop.f32.mrb[0].mxu0
  %v729 = vadd.f32 0.0, %v728
  %v730 = vpop.f32.mrb[0].mxu0
  %731 = vmatprep.mubr.f32.mxu0 0.0
  %732 = vmatmul.mubr.f32.gmra.mrb[0].mxu0 %v657
  %v733 = vpop.f32.mrb[0].mxu0
  %v734 = vadd.f32 0.0, %v733
  %v735 = vpop.f32.mrb[0].mxu0
  %736 = vmatprep.mubr.f32.mxu0 0.0
  %737 = vmatmul.mubr.f32.gmra.mrb[0].mxu0 %v660
  %v738 = vpop.f32.mrb[0].mxu0
  %v739 = vadd.f32 0.0, %v738
  %v740 = vpop.f32.mrb[0].mxu0
  %741 = vdwg.mxu0
  %v742 = vadd.f32 %v570, %v629
  %v743 = vadd.f32 %v574, %v632
  %v744 = vadd.f32 %v580, %v637
  %v745 = vadd.f32 %v742, %v729
  %v746 = vadd.f32 %v743, %v734
  %v747 = vadd.f32 %v744, %v739
  %v749 = vlaneseq
  %v750 = vshrl.u32 %v749, 7
  %v751 = vsub.s32 0, %v750
  %v752 = vrot.slane %v343, %v751
  %v754 = vadd.f32 %v745, %v752
  %v755 = vadd.f32 %v746, %v752
  %v756 = vadd.f32 %v747, %v752
  %vm757 = vcmp.gt.f32.partialorder %v754, 0.0
  %vm758 = vcmp.gt.f32.partialorder %v755, 0.0
  %vm759 = vcmp.gt.f32.partialorder %v756, 0.0
  %v760 = vmul.f32 %v754, 0.01
  %v761 = vmul.f32 %v755, 0.01
  %v762 = vmul.f32 %v756, 0.01
  %v763 = vsel %vm757, %v754, %v760
  %v764 = vsel %vm758, %v755, %v761
  %v765 = vsel %vm759, %v756, %v762
  %vm766 = vcmask 523264
  %v768 = vsel %vm766, %v763, 0
  %v771 = vsel %vm766, %v764, 0
  %v774 = vsel %vm766, %v765, 0
  %776 = vmatprep.subr.mxu0 0.0
  %777 = vmatpush1.msra.mxu0 %v344
  %778 = vmatprep.subr.mxu0 0.0
  %779 = vmatpush1.msra.mxu0 %v345
  %780 = vmatprep.subr.mxu0 0.0
  %781 = vmatpush1.msra.mxu0 %v346
  %782 = vmatprep.subr.mxu0 0.0
  %783 = vmatpush1.msra.mxu0 %v347
  %784 = vmatprep.subr.mxu0 0.0
  %785 = vmatpush1.msra.mxu0 %v348
  %786 = vmatprep.subr.mxu0 0.0
  %787 = vmatpush1.msra.mxu0 %v349
  %788 = vmatprep.subr.mxu0 0.0
  %789 = vmatpush1.msra.mxu0 %v350
  %790 = vmatprep.subr.mxu0 0.0
  %791 = vmatpush1.msra.mxu0 %v351
  %792 = vmatprep.subr.mxu0 0.0
  %793 = vmatpush1.msra.mxu0 0.0
  %794 = vmatprep.subr.mxu0 0.0
  %795 = vmatpush1.msra.mxu0 0.0
  %796 = vmatprep.subr.mxu0 0.0
  %797 = vmatpush1.msra.mxu0 0.0
  %798 = vmatprep.subr.mxu0 0.0
  %799 = vmatpush1.msra.mxu0 0.0
  %800 = vmatprep.subr.mxu0 0.0
  %801 = vmatpush1.msra.mxu0 0.0
  %802 = vmatprep.subr.mxu0 0.0
  %803 = vmatpush1.msra.mxu0 0.0
  %804 = vmatprep.subr.mxu0 0.0
  %805 = vmatpush1.msra.mxu0 0.0
  %806 = vmatprep.subr.mxu0 0.0
  %807 = vmatpush1.msra.mxu0 0.0
  %808 = vmatprep.subr.mxu0 0.0
  %809 = vmatpush1.msra.mxu0 0.0
  %810 = vmatprep.subr.mxu0 0.0
  %811 = vmatpush1.msra.mxu0 0.0
  %812 = vmatprep.subr.mxu0 0.0
  %813 = vmatpush1.msra.mxu0 0.0
  %814 = vmatprep.subr.mxu0 0.0
  %815 = vmatpush1.msra.mxu0 0.0
  %816 = vmatprep.subr.mxu0 0.0
  %817 = vmatpush1.msra.mxu0 0.0
  %818 = vmatprep.subr.mxu0 0.0
  %819 = vmatpush1.msra.mxu0 0.0
  %820 = vmatprep.subr.mxu0 0.0
  %821 = vmatpush1.msra.mxu0 0.0
  %822 = vmatprep.subr.mxu0 0.0
  %823 = vmatpush1.msra.mxu0 0.0
  %824 = vmatprep.subr.mxu0 0.0
  %825 = vmatpush1.msra.mxu0 0.0
  %826 = vmatprep.subr.mxu0 0.0
  %827 = vmatpush1.msra.mxu0 0.0
  %828 = vmatprep.subr.mxu0 0.0
  %829 = vmatpush1.msra.mxu0 0.0
  %830 = vmatprep.subr.mxu0 0.0
  %831 = vmatpush1.msra.mxu0 0.0
  %832 = vmatprep.subr.mxu0 0.0
  %833 = vmatpush1.msra.mxu0 0.0
  %834 = vmatprep.subr.mxu0 0.0
  %835 = vmatpush1.msra.mxu0 0.0
  %836 = vmatprep.subr.mxu0 0.0
  %837 = vmatpush1.msra.mxu0 0.0
  %838 = vmatprep.subr.mxu0 0.0
  %839 = vmatpush1.msra.mxu0 0.0
  %840 = vmatprep.mubr.f32.mxu0 0.0
  %841 = vmatmul.mubr.f32.gmra.mrb[0].mxu0 %v768
  %v842 = vpop.f32.mrb[0].mxu0
  %v843 = vadd.f32 0.0, %v842
  %v844 = vpop.f32.mrb[0].mxu0
  %845 = vmatprep.mubr.f32.mxu0 0.0
  %846 = vmatmul.mubr.f32.gmra.mrb[0].mxu0 %v771
  %v847 = vpop.f32.mrb[0].mxu0
  %v848 = vadd.f32 0.0, %v847
  %v849 = vpop.f32.mrb[0].mxu0
  %850 = vmatprep.mubr.f32.mxu0 0.0
  %851 = vmatmul.mubr.f32.gmra.mrb[0].mxu0 %v774
  %v852 = vpop.f32.mrb[0].mxu0
  %v853 = vadd.f32 0.0, %v852
  %v854 = vpop.f32.mrb[0].mxu0
  %855 = vdwg.mxu0
  %vm856 = vcmask 15360
  %v857 = vsel %vm856, %v843, -inf
  %v858 = vsel %vm856, %v848, -inf
  %v859 = vsel %vm856, %v853, -inf
  %v860 = vmax.f32 %v857, %v858
  %v861 = vmax.f32 %v860, %v859
  %v862 = vrot.slane %v861, 4
  %v863 = vmax.f32 %v861, %v862
  %v864 = vrot.slane %v863, 2
  %v865 = vmax.f32 %v863, %v864
  %v866 = vrot.slane %v865, 1
  %v867 = vmax.f32 %v865, %v866
  %v868 = vsub.f32 %v843, %v867
  %v869 = vsub.f32 %v848, %v867
  %v870 = vsub.f32 %v853, %v867
  %v871 = vmul.f32 %v868, 1.442695
  %v872 = vpow.pop %v871
  %v873 = vmul.f32 %v869, 1.442695
  %v874 = vpow.pop %v873
  %v875 = vmul.f32 %v870, 1.442695
  %v876 = vpow.pop %v875
  %878 = vset.pattern.permute.xlu0 0
  %879 = vperm.xlu0 %878, %v872
  %v880 = vpop.permute.xlu0 %879
  %883 = vset.pattern.permute.xlu0 0
  %884 = vperm.xlu0 %883, %v874
  %v885 = vpop.permute.xlu0 %884
  %888 = vset.pattern.permute.xlu0 0
  %889 = vperm.xlu0 %888, %v876
  %v890 = vpop.permute.xlu0 %889
  %892 = vset.pattern.permute.xlu0 1
  %893 = vperm.xlu0 %892, %v872
  %v894 = vpop.permute.xlu0 %893
  %896 = vset.pattern.permute.xlu0 1
  %897 = vperm.xlu0 %896, %v874
  %v898 = vpop.permute.xlu0 %897
  %900 = vset.pattern.permute.xlu0 1
  %901 = vperm.xlu0 %900, %v876
  %v902 = vpop.permute.xlu0 %901
  %vm904 = vcmask 261120
  %v905 = vsel %vm904, %v880, %v894
  %v906 = vsel %vm904, %v885, %v898
  %v907 = vsel %vm904, %v890, %v902
  %v908 = vmul.f32 %v648, %v905
  %v909 = vmul.f32 %v649, %v906
  %v910 = vmul.f32 %v650, %v907
  %911 = vrot.lane.b32.xlu0 %v872, 64
  %v912 = vpop.permute.xlu0 %911
  %913 = vrot.lane.b32.xlu0 %v874, 64
  %v914 = vpop.permute.xlu0 %913
  %915 = vrot.lane.b32.xlu0 %v876, 64
  %v916 = vpop.permute.xlu0 %915
  %v920 = vsel %vm766, %v908, %v912
  %v921 = vsel %vm766, %v909, %v914
  %v922 = vsel %vm766, %v910, %v916
  %v923 = vpack.c.bf16 %v921, %v920
  %v924 = vpack.c.bf16 %v922, %v922
  %925 = vxpose.xlu0.c.b16.start [1/8] %v138, 128
  %926 = vxpose.xlu0.c.b16.cont [2/8] %v139, 128
  %927 = vxpose.xlu0.c.b16.cont [3/8] 0, 128
  %928 = vxpose.xlu0.c.b16.cont [4/8] 0, 128
  %929 = vxpose.xlu0.c.b16.cont [5/8] 0, 128
  %930 = vxpose.xlu0.c.b16.cont [6/8] 0, 128
  %931 = vxpose.xlu0.c.b16.cont [7/8] 0, 128
  %932 = vxpose.xlu0.c.b16.end [8/8] 0, 128
  %v933 = vpop.trf.xlu0
  %v934 = vpop.trf.xlu0
  %v935 = vpop.trf.xlu0
  %v936 = vpop.trf.xlu0
  %v937 = vpop.trf.xlu0
  %v938 = vpop.trf.xlu0
  %v939 = vpop.trf.xlu0
  %v940 = vpop.trf.xlu0
  %vm941 = vcmask 195584
  %v943 = vsel %vm941, %v933, 0
  %v946 = vsel %vm255, %v924, 0
  %948 = vmatprep.subr.bf16.mxu0 0
  %949 = vmatpush1.bf16.msra.mxu0 %v923
  %950 = vmatprep.subr.bf16.mxu0 0
  %951 = vmatpush1.bf16.msra.mxu0 %v946
  %952 = vmatprep.subr.bf16.mxu0 0
  %953 = vmatpush1.bf16.msra.mxu0 0
  %954 = vmatprep.subr.bf16.mxu0 0
  %955 = vmatpush1.bf16.msra.mxu0 0
  %956 = vmatprep.subr.bf16.mxu0 0
  %957 = vmatpush1.bf16.msra.mxu0 0
  %958 = vmatprep.subr.bf16.mxu0 0
  %959 = vmatpush1.bf16.msra.mxu0 0
  %960 = vmatprep.subr.bf16.mxu0 0
  %961 = vmatpush1.bf16.msra.mxu0 0
  %962 = vmatprep.subr.bf16.mxu0 0
  %963 = vmatpush1.bf16.msra.mxu0 0
  %964 = vmatprep.subr.bf16.mxu0 0
  %965 = vmatpush1.bf16.msra.mxu0 0
  %966 = vmatprep.subr.bf16.mxu0 0
  %967 = vmatpush1.bf16.msra.mxu0 0
  %968 = vmatprep.subr.bf16.mxu0 0
  %969 = vmatpush1.bf16.msra.mxu0 0
  %970 = vmatprep.subr.bf16.mxu0 0
  %971 = vmatpush1.bf16.msra.mxu0 0
  %972 = vmatprep.subr.bf16.mxu0 0
  %973 = vmatpush1.bf16.msra.mxu0 0
  %974 = vmatprep.subr.bf16.mxu0 0
  %975 = vmatpush1.bf16.msra.mxu0 0
  %976 = vmatprep.subr.bf16.mxu0 0
  %977 = vmatpush1.bf16.msra.mxu0 0
  %978 = vmatprep.subr.bf16.mxu0 0
  %979 = vmatpush1.bf16.msra.mxu0 0
  %980 = vmatprep.mubr.bf16.mxu0 0
  %981 = vmatmul.mubr.bf16.gmra.mrb[0].mxu0 %v943
  %v982 = vpop.f32.mrb[0].mxu0
  %v983 = vadd.f32 0.0, %v982
  %v984 = vpop.f32.mrb[0].mxu0
  %v985 = vpop.f32.mrb[0].mxu0
  %v986 = vadd.f32 0.0, %v985
  %v987 = vpop.f32.mrb[0].mxu0
  %988 = vdwg.mxu0
  %vm989 = vcmp.gt.f32.partialorder %v983, 0.0
  %vm990 = vcmp.gt.f32.partialorder %v986, 0.0
  %v991 = vsel %vm989, %v983, 1.0
  %v992 = vsel %vm990, %v986, 1.0
  %v993 = vrcp.pop %v991
  %v994 = vrcp.pop %v992
  %v995 = vsel %vm989, %v993, 0.0
  %v996 = vsel %vm990, %v994, 0.0
  %998 = vset.pattern.permute.xlu0 64
  %999 = vperm.xlu0 %998, %v995
  %v1000 = vpop.permute.xlu0 %999
  %1003 = vset.pattern.permute.xlu0 64
  %1004 = vperm.xlu0 %1003, %v996
  %v1005 = vpop.permute.xlu0 %1004
  %1007 = vset.pattern.permute.xlu0 65
  %1008 = vperm.xlu0 %1007, %v995
  %v1009 = vpop.permute.xlu0 %1008
  %1011 = vset.pattern.permute.xlu0 65
  %1012 = vperm.xlu0 %1011, %v996
  %v1013 = vpop.permute.xlu0 %1012
  %v1015 = vsel %vm904, %v1000, %v1009
  %v1016 = vsel %vm904, %v1005, %v1013
  %v1017 = vmul.f32 %v983, %v1015
  %v1018 = vmul.f32 %v986, %v1016
  %v1019 = vmax.f32 %v1017, 0.0
  %v1020 = vmax.f32 %v1018, 0.0
  %v1021 = vmax.f32 %v763, 0.0
  %v1022 = vmax.f32 %v764, 0.0
  %v1023 = vmax.f32 %v765, 0.0
  %v1024 = vld [vmem:[%s15] sm:$0x1]
  %v1025 = vld [vmem:[%s17] sm:$0x1]
  %v1026 = vld [vmem:[%s18] sm:$0xff]
  %v1027 = vld [vmem:[%s18 + $0x8] sm:$0xff]
  %v1028 = vld [vmem:[%s18 + $0x10] sm:$0xff]
  %v1029 = vld [vmem:[%s18 + $0x18] sm:$0xff]
  %v1030 = vld [vmem:[%s18 + $0x20] sm:$0xff]
  %v1031 = vld [vmem:[%s18 + $0x28] sm:$0xff]
  %v1032 = vld [vmem:[%s18 + $0x30] sm:$0xff]
  %v1033 = vld [vmem:[%s18 + $0x38] sm:$0xff]
  %v1034 = vld [vmem:[%s18 + $0x40] sm:$0xff]
  %v1035 = vld [vmem:[%s18 + $0x48] sm:$0xff]
  %v1036 = vld [vmem:[%s18 + $0x50] sm:$0xff]
  %v1037 = vld [vmem:[%s18 + $0x58] sm:$0xff]
  %v1038 = vld [vmem:[%s18 + $0x60] sm:$0xff]
  %v1039 = vld [vmem:[%s18 + $0x68] sm:$0xff]
  %v1040 = vld [vmem:[%s18 + $0x70] sm:$0xff]
  %v1041 = vld [vmem:[%s18 + $0x78] sm:$0xff]
  %v1042 = vld [vmem:[%s14] sm:$0xff]
  %v1043 = vld [vmem:[%s14 + $0x8] sm:$0xff]
  %v1044 = vld [vmem:[%s14 + $0x10] sm:$0xff]
  %v1045 = vld [vmem:[%s14 + $0x18] sm:$0xff]
  %v1046 = vld [vmem:[%s14 + $0x20] sm:$0xff]
  %v1047 = vld [vmem:[%s14 + $0x28] sm:$0xff]
  %v1048 = vld [vmem:[%s14 + $0x30] sm:$0xff]
  %v1049 = vld [vmem:[%s14 + $0x38] sm:$0xff]
  %v1050 = vld [vmem:[%s14 + $0x40] sm:$0xff]
  %v1051 = vld [vmem:[%s14 + $0x48] sm:$0xff]
  %v1052 = vld [vmem:[%s14 + $0x50] sm:$0xff]
  %v1053 = vld [vmem:[%s14 + $0x58] sm:$0xff]
  %v1054 = vld [vmem:[%s14 + $0x60] sm:$0xff]
  %v1055 = vld [vmem:[%s14 + $0x68] sm:$0xff]
  %v1056 = vld [vmem:[%s14 + $0x70] sm:$0xff]
  %v1057 = vld [vmem:[%s14 + $0x78] sm:$0xff]
  %v1058 = vld [vmem:[%s14 + $0x80] sm:$0xff]
  %v1059 = vld [vmem:[%s14 + $0x88] sm:$0xff]
  %v1060 = vld [vmem:[%s14 + $0x90] sm:$0xff]
  %v1061 = vld [vmem:[%s14 + $0x98] sm:$0xff]
  %v1062 = vld [vmem:[%s14 + $0xa0] sm:$0xff]
  %v1063 = vld [vmem:[%s14 + $0xa8] sm:$0xff]
  %v1064 = vld [vmem:[%s14 + $0xb0] sm:$0xff]
  %v1065 = vld [vmem:[%s14 + $0xb8] sm:$0xff]
  %v1067 = vsel %vm766, %v1019, 0
  %v1070 = vsel %vm766, %v1020, 0
  %1072 = vmatprep.subr.mxu0 %v1043
  %1073 = vmatpush1.msra.mxu0 %v1042
  %1074 = vmatprep.subr.mxu0 %v1046
  %1075 = vmatpush1.msra.mxu0 %v1045
  %1076 = vmatprep.subr.mxu0 %v1049
  %1077 = vmatpush1.msra.mxu0 %v1048
  %1078 = vmatprep.subr.mxu0 %v1052
  %1079 = vmatpush1.msra.mxu0 %v1051
  %1080 = vmatprep.subr.mxu0 %v1055
  %1081 = vmatpush1.msra.mxu0 %v1054
  %1082 = vmatprep.subr.mxu0 %v1058
  %1083 = vmatpush1.msra.mxu0 %v1057
  %1084 = vmatprep.subr.mxu0 %v1061
  %1085 = vmatpush1.msra.mxu0 %v1060
  %1086 = vmatprep.subr.mxu0 %v1064
  %1087 = vmatpush1.msra.mxu0 %v1063
  %1088 = vmatprep.subr.mxu0 0.0
  %1089 = vmatpush1.msra.mxu0 0.0
  %1090 = vmatprep.subr.mxu0 0.0
  %1091 = vmatpush1.msra.mxu0 0.0
  %1092 = vmatprep.subr.mxu0 0.0
  %1093 = vmatpush1.msra.mxu0 0.0
  %1094 = vmatprep.subr.mxu0 0.0
  %1095 = vmatpush1.msra.mxu0 0.0
  %1096 = vmatprep.subr.mxu0 0.0
  %1097 = vmatpush1.msra.mxu0 0.0
  %1098 = vmatprep.subr.mxu0 0.0
  %1099 = vmatpush1.msra.mxu0 0.0
  %1100 = vmatprep.subr.mxu0 0.0
  %1101 = vmatpush1.msra.mxu0 0.0
  %1102 = vmatprep.subr.mxu0 0.0
  %1103 = vmatpush1.msra.mxu0 0.0
  %1104 = vmatprep.subr.mxu0 0.0
  %1105 = vmatpush1.msra.mxu0 0.0
  %1106 = vmatprep.subr.mxu0 0.0
  %1107 = vmatpush1.msra.mxu0 0.0
  %1108 = vmatprep.subr.mxu0 0.0
  %1109 = vmatpush1.msra.mxu0 0.0
  %1110 = vmatprep.subr.mxu0 0.0
  %1111 = vmatpush1.msra.mxu0 0.0
  %1112 = vmatprep.subr.mxu0 0.0
  %1113 = vmatpush1.msra.mxu0 0.0
  %1114 = vmatprep.subr.mxu0 0.0
  %1115 = vmatpush1.msra.mxu0 0.0
  %1116 = vmatprep.subr.mxu0 0.0
  %1117 = vmatpush1.msra.mxu0 0.0
  %1118 = vmatprep.subr.mxu0 0.0
  %1119 = vmatpush1.msra.mxu0 0.0
  %1120 = vmatprep.subr.mxu0 0.0
  %1121 = vmatpush1.msra.mxu0 0.0
  %1122 = vmatprep.subr.mxu0 0.0
  %1123 = vmatpush1.msra.mxu0 0.0
  %1124 = vmatprep.subr.mxu0 0.0
  %1125 = vmatpush1.msra.mxu0 0.0
  %1126 = vmatprep.subr.mxu0 0.0
  %1127 = vmatpush1.msra.mxu0 0.0
  %1128 = vmatprep.subr.mxu0 0.0
  %1129 = vmatpush1.msra.mxu0 0.0
  %1130 = vmatprep.subr.mxu0 0.0
  %1131 = vmatpush1.msra.mxu0 0.0
  %1132 = vmatprep.subr.mxu0 0.0
  %1133 = vmatpush1.msra.mxu0 0.0
  %1134 = vmatprep.subr.mxu0 0.0
  %1135 = vmatpush1.msra.mxu0 0.0
  %1136 = vmatprep.mubr.f32.mxu0 0.0
  %1137 = vmatmul.mubr.f32.gmra.mrb[0].mxu0 %v1067
  %v1138 = vpop.f32.mrb[0].mxu0
  %v1139 = vadd.f32 0.0, %v1138
  %v1140 = vpop.f32.mrb[0].mxu0
  %v1141 = vadd.f32 0.0, %v1140
  %1142 = vmatprep.mubr.f32.mxu0 0.0
  %1143 = vmatmul.mubr.f32.gmra.mrb[0].mxu0 %v1070
  %v1144 = vpop.f32.mrb[0].mxu0
  %v1145 = vadd.f32 0.0, %v1144
  %v1146 = vpop.f32.mrb[0].mxu0
  %v1147 = vadd.f32 0.0, %v1146
  %1148 = vdwg.mxu0
  %1149 = vmatprep.subr.mxu0 0.0
  %1150 = vmatpush1.msra.mxu0 %v1044
  %1151 = vmatprep.subr.mxu0 0.0
  %1152 = vmatpush1.msra.mxu0 %v1047
  %1153 = vmatprep.subr.mxu0 0.0
  %1154 = vmatpush1.msra.mxu0 %v1050
  %1155 = vmatprep.subr.mxu0 0.0
  %1156 = vmatpush1.msra.mxu0 %v1053
  %1157 = vmatprep.subr.mxu0 0.0
  %1158 = vmatpush1.msra.mxu0 %v1056
  %1159 = vmatprep.subr.mxu0 0.0
  %1160 = vmatpush1.msra.mxu0 %v1059
  %1161 = vmatprep.subr.mxu0 0.0
  %1162 = vmatpush1.msra.mxu0 %v1062
  %1163 = vmatprep.subr.mxu0 0.0
  %1164 = vmatpush1.msra.mxu0 %v1065
  %1165 = vmatprep.subr.mxu0 0.0
  %1166 = vmatpush1.msra.mxu0 0.0
  %1167 = vmatprep.subr.mxu0 0.0
  %1168 = vmatpush1.msra.mxu0 0.0
  %1169 = vmatprep.subr.mxu0 0.0
  %1170 = vmatpush1.msra.mxu0 0.0
  %1171 = vmatprep.subr.mxu0 0.0
  %1172 = vmatpush1.msra.mxu0 0.0
  %1173 = vmatprep.subr.mxu0 0.0
  %1174 = vmatpush1.msra.mxu0 0.0
  %1175 = vmatprep.subr.mxu0 0.0
  %1176 = vmatpush1.msra.mxu0 0.0
  %1177 = vmatprep.subr.mxu0 0.0
  %1178 = vmatpush1.msra.mxu0 0.0
  %1179 = vmatprep.subr.mxu0 0.0
  %1180 = vmatpush1.msra.mxu0 0.0
  %1181 = vmatprep.subr.mxu0 0.0
  %1182 = vmatpush1.msra.mxu0 0.0
  %1183 = vmatprep.subr.mxu0 0.0
  %1184 = vmatpush1.msra.mxu0 0.0
  %1185 = vmatprep.subr.mxu0 0.0
  %1186 = vmatpush1.msra.mxu0 0.0
  %1187 = vmatprep.subr.mxu0 0.0
  %1188 = vmatpush1.msra.mxu0 0.0
  %1189 = vmatprep.subr.mxu0 0.0
  %1190 = vmatpush1.msra.mxu0 0.0
  %1191 = vmatprep.subr.mxu0 0.0
  %1192 = vmatpush1.msra.mxu0 0.0
  %1193 = vmatprep.subr.mxu0 0.0
  %1194 = vmatpush1.msra.mxu0 0.0
  %1195 = vmatprep.subr.mxu0 0.0
  %1196 = vmatpush1.msra.mxu0 0.0
  %1197 = vmatprep.subr.mxu0 0.0
  %1198 = vmatpush1.msra.mxu0 0.0
  %1199 = vmatprep.subr.mxu0 0.0
  %1200 = vmatpush1.msra.mxu0 0.0
  %1201 = vmatprep.subr.mxu0 0.0
  %1202 = vmatpush1.msra.mxu0 0.0
  %1203 = vmatprep.subr.mxu0 0.0
  %1204 = vmatpush1.msra.mxu0 0.0
  %1205 = vmatprep.subr.mxu0 0.0
  %1206 = vmatpush1.msra.mxu0 0.0
  %1207 = vmatprep.subr.mxu0 0.0
  %1208 = vmatpush1.msra.mxu0 0.0
  %1209 = vmatprep.subr.mxu0 0.0
  %1210 = vmatpush1.msra.mxu0 0.0
  %1211 = vmatprep.subr.mxu0 0.0
  %1212 = vmatpush1.msra.mxu0 0.0
  %1213 = vmatprep.mubr.f32.mxu0 0.0
  %1214 = vmatmul.mubr.f32.gmra.mrb[0].mxu0 %v1067
  %v1215 = vpop.f32.mrb[0].mxu0
  %v1216 = vadd.f32 0.0, %v1215
  %v1217 = vpop.f32.mrb[0].mxu0
  %1218 = vmatprep.mubr.f32.mxu0 0.0
  %1219 = vmatmul.mubr.f32.gmra.mrb[0].mxu0 %v1070
  %v1220 = vpop.f32.mrb[0].mxu0
  %v1221 = vadd.f32 0.0, %v1220
  %v1222 = vpop.f32.mrb[0].mxu0
  %1223 = vdwg.mxu0
  %v1224 = vpack.c.bf16 %v1145, %v1139
  %v1225 = vpack.c.bf16 %v1147, %v1141
  %v1227 = vsel %vm526, %v1224, 0
  %v1230 = vsel %vm526, %v1225, 0
  %1232 = vmatprep.subr.bf16.mxu0 %v1230
  %1233 = vmatpush1.bf16.msra.mxu0 %v1227
  %1234 = vmatprep.subr.bf16.mxu0 0
  %1235 = vmatpush1.bf16.msra.mxu0 0
  %1236 = vmatprep.subr.bf16.mxu0 0
  %1237 = vmatpush1.bf16.msra.mxu0 0
  %1238 = vmatprep.subr.bf16.mxu0 0
  %1239 = vmatpush1.bf16.msra.mxu0 0
  %1240 = vmatprep.subr.bf16.mxu0 0
  %1241 = vmatpush1.bf16.msra.mxu0 0
  %1242 = vmatprep.subr.bf16.mxu0 0
  %1243 = vmatpush1.bf16.msra.mxu0 0
  %1244 = vmatprep.subr.bf16.mxu0 0
  %1245 = vmatpush1.bf16.msra.mxu0 0
  %1246 = vmatprep.subr.bf16.mxu0 0
  %1247 = vmatpush1.bf16.msra.mxu0 0
  %1248 = vmatprep.subr.bf16.mxu0 0
  %1249 = vmatpush1.bf16.msra.mxu0 0
  %1250 = vmatprep.subr.bf16.mxu0 0
  %1251 = vmatpush1.bf16.msra.mxu0 0
  %1252 = vmatprep.subr.bf16.mxu0 0
  %1253 = vmatpush1.bf16.msra.mxu0 0
  %1254 = vmatprep.subr.bf16.mxu0 0
  %1255 = vmatpush1.bf16.msra.mxu0 0
  %1256 = vmatprep.subr.bf16.mxu0 0
  %1257 = vmatpush1.bf16.msra.mxu0 0
  %1258 = vmatprep.subr.bf16.mxu0 0
  %1259 = vmatpush1.bf16.msra.mxu0 0
  %1260 = vmatprep.subr.bf16.mxu0 0
  %1261 = vmatpush1.bf16.msra.mxu0 0
  %1262 = vmatprep.subr.bf16.mxu0 0
  %1263 = vmatpush1.bf16.msra.mxu0 0
  %1264 = vmatprep.mubr.bf16.mxu0 0
  %1265 = vmatmul.mubr.bf16.gmra.mrb[0].mxu0 %v521
  %v1266 = vpop.f32.mrb[0].mxu0
  %v1267 = vadd.f32 0.0, %v1266
  %v1268 = vpop.f32.mrb[0].mxu0
  %v1269 = vadd.f32 0.0, %v1268
  %v1270 = vpop.f32.mrb[0].mxu0
  %v1271 = vadd.f32 0.0, %v1270
  %v1272 = vpop.f32.mrb[0].mxu0
  %v1273 = vadd.f32 0.0, %v1272
  %1274 = vmatprep.mubr.bf16.mxu0 0
  %1275 = vmatmul.mubr.bf16.gmra.mrb[0].mxu0 %v524
  %v1276 = vpop.f32.mrb[0].mxu0
  %v1277 = vadd.f32 0.0, %v1276
  %v1278 = vpop.f32.mrb[0].mxu0
  %v1279 = vadd.f32 0.0, %v1278
  %v1280 = vpop.f32.mrb[0].mxu0
  %v1281 = vpop.f32.mrb[0].mxu0
  %1282 = vdwg.mxu0
  %v1283 = vpack.c.bf16 %v1221, %v1216
  %v1285 = vsel %vm526, %v1283, 0
  %1287 = vmatprep.subr.bf16.mxu0 0
  %1288 = vmatpush1.bf16.msra.mxu0 %v1285
  %1289 = vmatprep.subr.bf16.mxu0 0
  %1290 = vmatpush1.bf16.msra.mxu0 0
  %1291 = vmatprep.subr.bf16.mxu0 0
  %1292 = vmatpush1.bf16.msra.mxu0 0
  %1293 = vmatprep.subr.bf16.mxu0 0
  %1294 = vmatpush1.bf16.msra.mxu0 0
  %1295 = vmatprep.subr.bf16.mxu0 0
  %1296 = vmatpush1.bf16.msra.mxu0 0
  %1297 = vmatprep.subr.bf16.mxu0 0
  %1298 = vmatpush1.bf16.msra.mxu0 0
  %1299 = vmatprep.subr.bf16.mxu0 0
  %1300 = vmatpush1.bf16.msra.mxu0 0
  %1301 = vmatprep.subr.bf16.mxu0 0
  %1302 = vmatpush1.bf16.msra.mxu0 0
  %1303 = vmatprep.subr.bf16.mxu0 0
  %1304 = vmatpush1.bf16.msra.mxu0 0
  %1305 = vmatprep.subr.bf16.mxu0 0
  %1306 = vmatpush1.bf16.msra.mxu0 0
  %1307 = vmatprep.subr.bf16.mxu0 0
  %1308 = vmatpush1.bf16.msra.mxu0 0
  %1309 = vmatprep.subr.bf16.mxu0 0
  %1310 = vmatpush1.bf16.msra.mxu0 0
  %1311 = vmatprep.subr.bf16.mxu0 0
  %1312 = vmatpush1.bf16.msra.mxu0 0
  %1313 = vmatprep.subr.bf16.mxu0 0
  %1314 = vmatpush1.bf16.msra.mxu0 0
  %1315 = vmatprep.subr.bf16.mxu0 0
  %1316 = vmatpush1.bf16.msra.mxu0 0
  %1317 = vmatprep.subr.bf16.mxu0 0
  %1318 = vmatpush1.bf16.msra.mxu0 0
  %1319 = vmatprep.mubr.bf16.mxu0 0
  %1320 = vmatmul.mubr.bf16.gmra.mrb[0].mxu0 %v586
  %v1321 = vpop.f32.mrb[0].mxu0
  %v1322 = vadd.f32 0.0, %v1321
  %v1323 = vpop.f32.mrb[0].mxu0
  %v1324 = vpop.f32.mrb[0].mxu0
  %v1325 = vadd.f32 0.0, %v1324
  %v1326 = vpop.f32.mrb[0].mxu0
  %1327 = vmatprep.mubr.bf16.mxu0 0
  %1328 = vmatmul.mubr.bf16.gmra.mrb[0].mxu0 %v589
  %v1329 = vpop.f32.mrb[0].mxu0
  %v1330 = vadd.f32 0.0, %v1329
  %v1331 = vpop.f32.mrb[0].mxu0
  %v1332 = vpop.f32.mrb[0].mxu0
  %v1333 = vpop.f32.mrb[0].mxu0
  %1334 = vdwg.mxu0
  %v1336 = vlaneseq
  %v1337 = vshrl.u32 %v1336, 7
  %v1338 = vsub.s32 0, %v1337
  %v1339 = vrot.slane %v1024, %v1338
  %v1341 = vadd.f32 %v1267, %v1339
  %v1342 = vadd.f32 %v1271, %v1339
  %v1343 = vadd.f32 %v1277, %v1339
  %v1344 = vld [vmem:[%s16] sm:$0xff]
  %v1345 = vld [vmem:[%s16 + $0x8] sm:$0xff]
  %v1346 = vld [vmem:[%s16 + $0x10] sm:$0xff]
  %v1347 = vld [vmem:[%s16 + $0x18] sm:$0xff]
  %v1348 = vld [vmem:[%s16 + $0x20] sm:$0xff]
  %v1349 = vld [vmem:[%s16 + $0x28] sm:$0xff]
  %v1350 = vld [vmem:[%s16 + $0x30] sm:$0xff]
  %v1351 = vld [vmem:[%s16 + $0x38] sm:$0xff]
  %v1353 = vsel %vm766, %v1021, 0
  %v1356 = vsel %vm766, %v1022, 0
  %v1359 = vsel %vm766, %v1023, 0
  %1361 = vmatprep.subr.mxu0 0.0
  %1362 = vmatpush1.msra.mxu0 %v1344
  %1363 = vmatprep.subr.mxu0 0.0
  %1364 = vmatpush1.msra.mxu0 %v1345
  %1365 = vmatprep.subr.mxu0 0.0
  %1366 = vmatpush1.msra.mxu0 %v1346
  %1367 = vmatprep.subr.mxu0 0.0
  %1368 = vmatpush1.msra.mxu0 %v1347
  %1369 = vmatprep.subr.mxu0 0.0
  %1370 = vmatpush1.msra.mxu0 %v1348
  %1371 = vmatprep.subr.mxu0 0.0
  %1372 = vmatpush1.msra.mxu0 %v1349
  %1373 = vmatprep.subr.mxu0 0.0
  %1374 = vmatpush1.msra.mxu0 %v1350
  %1375 = vmatprep.subr.mxu0 0.0
  %1376 = vmatpush1.msra.mxu0 %v1351
  %1377 = vmatprep.subr.mxu0 0.0
  %1378 = vmatpush1.msra.mxu0 0.0
  %1379 = vmatprep.subr.mxu0 0.0
  %1380 = vmatpush1.msra.mxu0 0.0
  %1381 = vmatprep.subr.mxu0 0.0
  %1382 = vmatpush1.msra.mxu0 0.0
  %1383 = vmatprep.subr.mxu0 0.0
  %1384 = vmatpush1.msra.mxu0 0.0
  %1385 = vmatprep.subr.mxu0 0.0
  %1386 = vmatpush1.msra.mxu0 0.0
  %1387 = vmatprep.subr.mxu0 0.0
  %1388 = vmatpush1.msra.mxu0 0.0
  %1389 = vmatprep.subr.mxu0 0.0
  %1390 = vmatpush1.msra.mxu0 0.0
  %1391 = vmatprep.subr.mxu0 0.0
  %1392 = vmatpush1.msra.mxu0 0.0
  %1393 = vmatprep.subr.mxu0 0.0
  %1394 = vmatpush1.msra.mxu0 0.0
  %1395 = vmatprep.subr.mxu0 0.0
  %1396 = vmatpush1.msra.mxu0 0.0
  %1397 = vmatprep.subr.mxu0 0.0
  %1398 = vmatpush1.msra.mxu0 0.0
  %1399 = vmatprep.subr.mxu0 0.0
  %1400 = vmatpush1.msra.mxu0 0.0
  %1401 = vmatprep.subr.mxu0 0.0
  %1402 = vmatpush1.msra.mxu0 0.0
  %1403 = vmatprep.subr.mxu0 0.0
  %1404 = vmatpush1.msra.mxu0 0.0
  %1405 = vmatprep.subr.mxu0 0.0
  %1406 = vmatpush1.msra.mxu0 0.0
  %1407 = vmatprep.subr.mxu0 0.0
  %1408 = vmatpush1.msra.mxu0 0.0
  %1409 = vmatprep.subr.mxu0 0.0
  %1410 = vmatpush1.msra.mxu0 0.0
  %1411 = vmatprep.subr.mxu0 0.0
  %1412 = vmatpush1.msra.mxu0 0.0
  %1413 = vmatprep.subr.mxu0 0.0
  %1414 = vmatpush1.msra.mxu0 0.0
  %1415 = vmatprep.subr.mxu0 0.0
  %1416 = vmatpush1.msra.mxu0 0.0
  %1417 = vmatprep.subr.mxu0 0.0
  %1418 = vmatpush1.msra.mxu0 0.0
  %1419 = vmatprep.subr.mxu0 0.0
  %1420 = vmatpush1.msra.mxu0 0.0
  %1421 = vmatprep.subr.mxu0 0.0
  %1422 = vmatpush1.msra.mxu0 0.0
  %1423 = vmatprep.subr.mxu0 0.0
  %1424 = vmatpush1.msra.mxu0 0.0
  %1425 = vmatprep.mubr.f32.mxu0 0.0
  %1426 = vmatmul.mubr.f32.gmra.mrb[0].mxu0 %v1353
  %v1427 = vpop.f32.mrb[0].mxu0
  %v1428 = vadd.f32 0.0, %v1427
  %v1429 = vpop.f32.mrb[0].mxu0
  %1430 = vmatprep.mubr.f32.mxu0 0.0
  %1431 = vmatmul.mubr.f32.gmra.mrb[0].mxu0 %v1356
  %v1432 = vpop.f32.mrb[0].mxu0
  %v1433 = vadd.f32 0.0, %v1432
  %v1434 = vpop.f32.mrb[0].mxu0
  %1435 = vmatprep.mubr.f32.mxu0 0.0
  %1436 = vmatmul.mubr.f32.gmra.mrb[0].mxu0 %v1359
  %v1437 = vpop.f32.mrb[0].mxu0
  %v1438 = vadd.f32 0.0, %v1437
  %v1439 = vpop.f32.mrb[0].mxu0
  %1440 = vdwg.mxu0
  %v1441 = vadd.f32 %v1269, %v1322
  %v1442 = vadd.f32 %v1273, %v1325
  %v1443 = vadd.f32 %v1279, %v1330
  %v1444 = vadd.f32 %v1441, %v1428
  %v1445 = vadd.f32 %v1442, %v1433
  %v1446 = vadd.f32 %v1443, %v1438
  %v1448 = vlaneseq
  %v1449 = vshrl.u32 %v1448, 7
  %v1450 = vsub.s32 0, %v1449
  %v1451 = vrot.slane %v1025, %v1450
  %v1453 = vadd.f32 %v1444, %v1451
  %v1454 = vadd.f32 %v1445, %v1451
  %v1455 = vadd.f32 %v1446, %v1451
  %vm1456 = vcmp.gt.f32.partialorder %v1453, 0.0
  %vm1457 = vcmp.gt.f32.partialorder %v1454, 0.0
  %vm1458 = vcmp.gt.f32.partialorder %v1455, 0.0
  %v1459 = vmul.f32 %v1453, 0.01
  %v1460 = vmul.f32 %v1454, 0.01
  %v1461 = vmul.f32 %v1455, 0.01
  %v1462 = vsel %vm1456, %v1453, %v1459
  %v1463 = vsel %vm1457, %v1454, %v1460
  %v1464 = vsel %vm1458, %v1455, %v1461
  %1465 = vmatprep.subr.mxu0 0.0
  %1466 = vmatpush1.msra.mxu0 %v1026
  %1467 = vmatprep.subr.mxu0 0.0
  %1468 = vmatpush1.msra.mxu0 %v1027
  %1469 = vmatprep.subr.mxu0 0.0
  %1470 = vmatpush1.msra.mxu0 %v1028
  %1471 = vmatprep.subr.mxu0 0.0
  %1472 = vmatpush1.msra.mxu0 %v1029
  %1473 = vmatprep.subr.mxu0 0.0
  %1474 = vmatpush1.msra.mxu0 %v1030
  %1475 = vmatprep.subr.mxu0 0.0
  %1476 = vmatpush1.msra.mxu0 %v1031
  %1477 = vmatprep.subr.mxu0 0.0
  %1478 = vmatpush1.msra.mxu0 %v1032
  %1479 = vmatprep.subr.mxu0 0.0
  %1480 = vmatpush1.msra.mxu0 %v1033
  %1481 = vmatprep.subr.mxu0 0.0
  %1482 = vmatpush1.msra.mxu0 %v1034
  %1483 = vmatprep.subr.mxu0 0.0
  %1484 = vmatpush1.msra.mxu0 %v1035
  %1485 = vmatprep.subr.mxu0 0.0
  %1486 = vmatpush1.msra.mxu0 %v1036
  %1487 = vmatprep.subr.mxu0 0.0
  %1488 = vmatpush1.msra.mxu0 %v1037
  %1489 = vmatprep.subr.mxu0 0.0
  %1490 = vmatpush1.msra.mxu0 %v1038
  %1491 = vmatprep.subr.mxu0 0.0
  %1492 = vmatpush1.msra.mxu0 %v1039
  %1493 = vmatprep.subr.mxu0 0.0
  %1494 = vmatpush1.msra.mxu0 %v1040
  %1495 = vmatprep.subr.mxu0 0.0
  %1496 = vmatpush1.msra.mxu0 %v1041
  %1497 = vmatprep.subr.mxu0 0.0
  %1498 = vmatpush1.msra.mxu0 0.0
  %1499 = vmatprep.subr.mxu0 0.0
  %1500 = vmatpush1.msra.mxu0 0.0
  %1501 = vmatprep.subr.mxu0 0.0
  %1502 = vmatpush1.msra.mxu0 0.0
  %1503 = vmatprep.subr.mxu0 0.0
  %1504 = vmatpush1.msra.mxu0 0.0
  %1505 = vmatprep.subr.mxu0 0.0
  %1506 = vmatpush1.msra.mxu0 0.0
  %1507 = vmatprep.subr.mxu0 0.0
  %1508 = vmatpush1.msra.mxu0 0.0
  %1509 = vmatprep.subr.mxu0 0.0
  %1510 = vmatpush1.msra.mxu0 0.0
  %1511 = vmatprep.subr.mxu0 0.0
  %1512 = vmatpush1.msra.mxu0 0.0
  %1513 = vmatprep.subr.mxu0 0.0
  %1514 = vmatpush1.msra.mxu0 0.0
  %1515 = vmatprep.subr.mxu0 0.0
  %1516 = vmatpush1.msra.mxu0 0.0
  %1517 = vmatprep.subr.mxu0 0.0
  %1518 = vmatpush1.msra.mxu0 0.0
  %1519 = vmatprep.subr.mxu0 0.0
  %1520 = vmatpush1.msra.mxu0 0.0
  %1521 = vmatprep.subr.mxu0 0.0
  %1522 = vmatpush1.msra.mxu0 0.0
  %1523 = vmatprep.subr.mxu0 0.0
  %1524 = vmatpush1.msra.mxu0 0.0
  %1525 = vmatprep.subr.mxu0 0.0
  %1526 = vmatpush1.msra.mxu0 0.0
  %1527 = vmatprep.subr.mxu0 0.0
  %1528 = vmatpush1.msra.mxu0 0.0
  %1529 = vmatprep.mubr.f32.mxu0 0.0
  %1530 = vmatmul.mubr.f32.gmra.mrb[0].mxu0 %v1462
  %v1531 = vpop.f32.mrb[0].mxu0
  %v1532 = vadd.f32 0.0, %v1531
  %v1533 = vpop.f32.mrb[0].mxu0
  %1534 = vmatprep.mubr.f32.mxu0 0.0
  %1535 = vmatmul.mubr.f32.gmra.mrb[0].mxu0 %v1463
  %v1536 = vpop.f32.mrb[0].mxu0
  %v1537 = vadd.f32 0.0, %v1536
  %v1538 = vpop.f32.mrb[0].mxu0
  %1539 = vmatprep.mubr.f32.mxu0 0.0
  %1540 = vmatmul.mubr.f32.gmra.mrb[0].mxu0 %v1464
  %v1541 = vpop.f32.mrb[0].mxu0
  %v1542 = vadd.f32 0.0, %v1541
  %v1543 = vpop.f32.mrb[0].mxu0
  %1544 = vdwg.mxu0
  %v1545 = vsel %vm856, %v1532, -inf
  %v1546 = vsel %vm856, %v1537, -inf
  %v1547 = vsel %vm856, %v1542, -inf
  %v1548 = vmax.f32 %v1545, %v1546
  %v1549 = vmax.f32 %v1548, %v1547
  %v1550 = vrot.slane %v1549, 4
  %v1551 = vmax.f32 %v1549, %v1550
  %v1552 = vrot.slane %v1551, 2
  %v1553 = vmax.f32 %v1551, %v1552
  %v1554 = vrot.slane %v1553, 1
  %v1555 = vmax.f32 %v1553, %v1554
  %v1556 = vsub.f32 %v1532, %v1555
  %v1557 = vsub.f32 %v1537, %v1555
  %v1558 = vsub.f32 %v1542, %v1555
  %v1559 = vmul.f32 %v1556, 1.442695
  %v1560 = vpow.pop %v1559
  %v1561 = vmul.f32 %v1557, 1.442695
  %v1562 = vpow.pop %v1561
  %v1563 = vmul.f32 %v1558, 1.442695
  %v1564 = vpow.pop %v1563
  %1566 = vset.pattern.permute.xlu0 0
  %1567 = vperm.xlu0 %1566, %v1560
  %v1568 = vpop.permute.xlu0 %1567
  %1571 = vset.pattern.permute.xlu0 0
  %1572 = vperm.xlu0 %1571, %v1562
  %v1573 = vpop.permute.xlu0 %1572
  %1576 = vset.pattern.permute.xlu0 0
  %1577 = vperm.xlu0 %1576, %v1564
  %v1578 = vpop.permute.xlu0 %1577
  %1580 = vset.pattern.permute.xlu0 1
  %1581 = vperm.xlu0 %1580, %v1560
  %v1582 = vpop.permute.xlu0 %1581
  %1584 = vset.pattern.permute.xlu0 1
  %1585 = vperm.xlu0 %1584, %v1562
  %v1586 = vpop.permute.xlu0 %1585
  %1588 = vset.pattern.permute.xlu0 1
  %1589 = vperm.xlu0 %1588, %v1564
  %v1590 = vpop.permute.xlu0 %1589
  %v1592 = vsel %vm766, %v1568, %v1582
  %v1593 = vsel %vm766, %v1573, %v1586
  %v1594 = vsel %vm766, %v1578, %v1590
  %v1595 = vmul.f32 %v1341, %v1592
  %v1596 = vmul.f32 %v1342, %v1593
  %v1597 = vmul.f32 %v1343, %v1594
  %v1598 = vpack.c.bf16 %v1596, %v1595
  %v1599 = vpack.c.bf16 %v1562, %v1560
  %v1600 = vpack.c.bf16 %v1597, %v1597
  %v1601 = vpack.c.bf16 %v1564, %v1564
  %v1603 = vsel %vm255, %v1600, 0
  %v1606 = vsel %vm255, %v1601, 0
  %1608 = vmatprep.subr.bf16.mxu0 %v1599
  %1609 = vmatpush1.bf16.msra.mxu0 %v1598
  %1610 = vmatprep.subr.bf16.mxu0 %v1606
  %1611 = vmatpush1.bf16.msra.mxu0 %v1603
  %1612 = vmatprep.subr.bf16.mxu0 0
  %1613 = vmatpush1.bf16.msra.mxu0 0
  %1614 = vmatprep.subr.bf16.mxu0 0
  %1615 = vmatpush1.bf16.msra.mxu0 0
  %1616 = vmatprep.subr.bf16.mxu0 0
  %1617 = vmatpush1.bf16.msra.mxu0 0
  %1618 = vmatprep.subr.bf16.mxu0 0
  %1619 = vmatpush1.bf16.msra.mxu0 0
  %1620 = vmatprep.subr.bf16.mxu0 0
  %1621 = vmatpush1.bf16.msra.mxu0 0
  %1622 = vmatprep.subr.bf16.mxu0 0
  %1623 = vmatpush1.bf16.msra.mxu0 0
  %1624 = vmatprep.subr.bf16.mxu0 0
  %1625 = vmatpush1.bf16.msra.mxu0 0
  %1626 = vmatprep.subr.bf16.mxu0 0
  %1627 = vmatpush1.bf16.msra.mxu0 0
  %1628 = vmatprep.subr.bf16.mxu0 0
  %1629 = vmatpush1.bf16.msra.mxu0 0
  %1630 = vmatprep.subr.bf16.mxu0 0
  %1631 = vmatpush1.bf16.msra.mxu0 0
  %1632 = vmatprep.subr.bf16.mxu0 0
  %1633 = vmatpush1.bf16.msra.mxu0 0
  %1634 = vmatprep.subr.bf16.mxu0 0
  %1635 = vmatpush1.bf16.msra.mxu0 0
  %1636 = vmatprep.subr.bf16.mxu0 0
  %1637 = vmatpush1.bf16.msra.mxu0 0
  %1638 = vmatprep.subr.bf16.mxu0 0
  %1639 = vmatpush1.bf16.msra.mxu0 0
  %1640 = vmatprep.mubr.bf16.mxu0 0
  %1641 = vmatmul.mubr.bf16.gmra.mrb[0].mxu0 %v943
  %v1642 = vpop.f32.mrb[0].mxu0
  %v1643 = vadd.f32 0.0, %v1642
  %v1644 = vpop.f32.mrb[0].mxu0
  %v1645 = vadd.f32 0.0, %v1644
  %v1646 = vpop.f32.mrb[0].mxu0
  %v1647 = vadd.f32 0.0, %v1646
  %v1648 = vpop.f32.mrb[0].mxu0
  %v1649 = vadd.f32 0.0, %v1648
  %1650 = vdwg.mxu0
  %vm1651 = vcmp.gt.f32.partialorder %v1645, 0.0
  %vm1652 = vcmp.gt.f32.partialorder %v1649, 0.0
  %v1653 = vsel %vm1651, %v1645, 1.0
  %v1654 = vsel %vm1652, %v1649, 1.0
  %v1655 = vrcp.pop %v1653
  %v1656 = vrcp.pop %v1654
  %v1657 = vsel %vm1651, %v1655, 0.0
  %v1658 = vsel %vm1652, %v1656, 0.0
  %1660 = vset.pattern.permute.xlu0 0
  %1661 = vperm.xlu0 %1660, %v1657
  %v1662 = vpop.permute.xlu0 %1661
  %1665 = vset.pattern.permute.xlu0 0
  %1666 = vperm.xlu0 %1665, %v1658
  %v1667 = vpop.permute.xlu0 %1666
  %1669 = vset.pattern.permute.xlu0 1
  %1670 = vperm.xlu0 %1669, %v1657
  %v1671 = vpop.permute.xlu0 %1670
  %1673 = vset.pattern.permute.xlu0 1
  %1674 = vperm.xlu0 %1673, %v1658
  %v1675 = vpop.permute.xlu0 %1674
  %v1677 = vsel %vm766, %v1662, %v1671
  %v1678 = vsel %vm766, %v1667, %v1675
  %v1679 = vmul.f32 %v1643, %v1677
  %v1680 = vmul.f32 %v1647, %v1678
  %v1681 = vmax.f32 %v1679, 0.0
  %v1682 = vmax.f32 %v1680, 0.0
  %v1683 = vmax.f32 %v1462, 0.0
  %v1684 = vmax.f32 %v1463, 0.0
  %v1685 = vmax.f32 %v1464, 0.0
  %v1686 = vld [vmem:[%s20] sm:$0x1]
  %v1687 = vld [vmem:[%s22] sm:$0x1]
  %v1688 = vld [vmem:[%s23] sm:$0xff]
  %v1689 = vld [vmem:[%s23 + $0x8] sm:$0xff]
  %v1690 = vld [vmem:[%s23 + $0x10] sm:$0xff]
  %v1691 = vld [vmem:[%s23 + $0x18] sm:$0xff]
  %v1692 = vld [vmem:[%s23 + $0x20] sm:$0xff]
  %v1693 = vld [vmem:[%s23 + $0x28] sm:$0xff]
  %v1694 = vld [vmem:[%s23 + $0x30] sm:$0xff]
  %v1695 = vld [vmem:[%s23 + $0x38] sm:$0xff]
  %v1696 = vld [vmem:[%s19] sm:$0xff]
  %v1697 = vld [vmem:[%s19 + $0x8] sm:$0xff]
  %v1698 = vld [vmem:[%s19 + $0x10] sm:$0xff]
  %v1699 = vld [vmem:[%s19 + $0x18] sm:$0xff]
  %v1700 = vld [vmem:[%s19 + $0x20] sm:$0xff]
  %v1701 = vld [vmem:[%s19 + $0x28] sm:$0xff]
  %v1702 = vld [vmem:[%s19 + $0x30] sm:$0xff]
  %v1703 = vld [vmem:[%s19 + $0x38] sm:$0xff]
  %v1704 = vld [vmem:[%s19 + $0x40] sm:$0xff]
  %v1705 = vld [vmem:[%s19 + $0x48] sm:$0xff]
  %v1706 = vld [vmem:[%s19 + $0x50] sm:$0xff]
  %v1707 = vld [vmem:[%s19 + $0x58] sm:$0xff]
  %v1708 = vld [vmem:[%s19 + $0x60] sm:$0xff]
  %v1709 = vld [vmem:[%s19 + $0x68] sm:$0xff]
  %v1710 = vld [vmem:[%s19 + $0x70] sm:$0xff]
  %v1711 = vld [vmem:[%s19 + $0x78] sm:$0xff]
  %v1712 = vld [vmem:[%s19 + $0x80] sm:$0xff]
  %v1713 = vld [vmem:[%s19 + $0x88] sm:$0xff]
  %v1714 = vld [vmem:[%s19 + $0x90] sm:$0xff]
  %v1715 = vld [vmem:[%s19 + $0x98] sm:$0xff]
  %v1716 = vld [vmem:[%s19 + $0xa0] sm:$0xff]
  %v1717 = vld [vmem:[%s19 + $0xa8] sm:$0xff]
  %v1718 = vld [vmem:[%s19 + $0xb0] sm:$0xff]
  %v1719 = vld [vmem:[%s19 + $0xb8] sm:$0xff]
  %v1720 = vld [vmem:[%s19 + $0xc0] sm:$0xff]
  %v1721 = vld [vmem:[%s19 + $0xc8] sm:$0xff]
  %v1722 = vld [vmem:[%s19 + $0xd0] sm:$0xff]
  %v1723 = vld [vmem:[%s19 + $0xd8] sm:$0xff]
  %v1724 = vld [vmem:[%s19 + $0xe0] sm:$0xff]
  %v1725 = vld [vmem:[%s19 + $0xe8] sm:$0xff]
  %v1726 = vld [vmem:[%s19 + $0xf0] sm:$0xff]
  %v1727 = vld [vmem:[%s19 + $0xf8] sm:$0xff]
  %v1728 = vld [vmem:[%s19 + $0x100] sm:$0xff]
  %v1729 = vld [vmem:[%s19 + $0x108] sm:$0xff]
  %v1730 = vld [vmem:[%s19 + $0x110] sm:$0xff]
  %v1731 = vld [vmem:[%s19 + $0x118] sm:$0xff]
  %v1732 = vld [vmem:[%s19 + $0x120] sm:$0xff]
  %v1733 = vld [vmem:[%s19 + $0x128] sm:$0xff]
  %v1734 = vld [vmem:[%s19 + $0x130] sm:$0xff]
  %v1735 = vld [vmem:[%s19 + $0x138] sm:$0xff]
  %v1736 = vld [vmem:[%s19 + $0x140] sm:$0xff]
  %v1737 = vld [vmem:[%s19 + $0x148] sm:$0xff]
  %v1738 = vld [vmem:[%s19 + $0x150] sm:$0xff]
  %v1739 = vld [vmem:[%s19 + $0x158] sm:$0xff]
  %v1740 = vld [vmem:[%s19 + $0x160] sm:$0xff]
  %v1741 = vld [vmem:[%s19 + $0x168] sm:$0xff]
  %v1742 = vld [vmem:[%s19 + $0x170] sm:$0xff]
  %v1743 = vld [vmem:[%s19 + $0x178] sm:$0xff]
  %1744 = vmatprep.subr.mxu0 %v1697
  %1745 = vmatpush1.msra.mxu0 %v1696
  %1746 = vmatprep.subr.mxu0 %v1700
  %1747 = vmatpush1.msra.mxu0 %v1699
  %1748 = vmatprep.subr.mxu0 %v1703
  %1749 = vmatpush1.msra.mxu0 %v1702
  %1750 = vmatprep.subr.mxu0 %v1706
  %1751 = vmatpush1.msra.mxu0 %v1705
  %1752 = vmatprep.subr.mxu0 %v1709
  %1753 = vmatpush1.msra.mxu0 %v1708
  %1754 = vmatprep.subr.mxu0 %v1712
  %1755 = vmatpush1.msra.mxu0 %v1711
  %1756 = vmatprep.subr.mxu0 %v1715
  %1757 = vmatpush1.msra.mxu0 %v1714
  %1758 = vmatprep.subr.mxu0 %v1718
  %1759 = vmatpush1.msra.mxu0 %v1717
  %1760 = vmatprep.subr.mxu0 %v1721
  %1761 = vmatpush1.msra.mxu0 %v1720
  %1762 = vmatprep.subr.mxu0 %v1724
  %1763 = vmatpush1.msra.mxu0 %v1723
  %1764 = vmatprep.subr.mxu0 %v1727
  %1765 = vmatpush1.msra.mxu0 %v1726
  %1766 = vmatprep.subr.mxu0 %v1730
  %1767 = vmatpush1.msra.mxu0 %v1729
  %1768 = vmatprep.subr.mxu0 %v1733
  %1769 = vmatpush1.msra.mxu0 %v1732
  %1770 = vmatprep.subr.mxu0 %v1736
  %1771 = vmatpush1.msra.mxu0 %v1735
  %1772 = vmatprep.subr.mxu0 %v1739
  %1773 = vmatpush1.msra.mxu0 %v1738
  %1774 = vmatprep.subr.mxu0 %v1742
  %1775 = vmatpush1.msra.mxu0 %v1741
  %1776 = vmatprep.subr.mxu0 0.0
  %1777 = vmatpush1.msra.mxu0 0.0
  %1778 = vmatprep.subr.mxu0 0.0
  %1779 = vmatpush1.msra.mxu0 0.0
  %1780 = vmatprep.subr.mxu0 0.0
  %1781 = vmatpush1.msra.mxu0 0.0
  %1782 = vmatprep.subr.mxu0 0.0
  %1783 = vmatpush1.msra.mxu0 0.0
  %1784 = vmatprep.subr.mxu0 0.0
  %1785 = vmatpush1.msra.mxu0 0.0
  %1786 = vmatprep.subr.mxu0 0.0
  %1787 = vmatpush1.msra.mxu0 0.0
  %1788 = vmatprep.subr.mxu0 0.0
  %1789 = vmatpush1.msra.mxu0 0.0
  %1790 = vmatprep.subr.mxu0 0.0
  %1791 = vmatpush1.msra.mxu0 0.0
  %1792 = vmatprep.subr.mxu0 0.0
  %1793 = vmatpush1.msra.mxu0 0.0
  %1794 = vmatprep.subr.mxu0 0.0
  %1795 = vmatpush1.msra.mxu0 0.0
  %1796 = vmatprep.subr.mxu0 0.0
  %1797 = vmatpush1.msra.mxu0 0.0
  %1798 = vmatprep.subr.mxu0 0.0
  %1799 = vmatpush1.msra.mxu0 0.0
  %1800 = vmatprep.subr.mxu0 0.0
  %1801 = vmatpush1.msra.mxu0 0.0
  %1802 = vmatprep.subr.mxu0 0.0
  %1803 = vmatpush1.msra.mxu0 0.0
  %1804 = vmatprep.subr.mxu0 0.0
  %1805 = vmatpush1.msra.mxu0 0.0
  %1806 = vmatprep.subr.mxu0 0.0
  %1807 = vmatpush1.msra.mxu0 0.0
  %1808 = vmatprep.mubr.f32.mxu0 0.0
  %1809 = vmatmul.mubr.f32.gmra.mrb[0].mxu0 %v1681
  %v1810 = vpop.f32.mrb[0].mxu0
  %v1811 = vadd.f32 0.0, %v1810
  %v1812 = vpop.f32.mrb[0].mxu0
  %v1813 = vadd.f32 0.0, %v1812
  %1814 = vmatprep.mubr.f32.mxu0 0.0
  %1815 = vmatmul.mubr.f32.gmra.mrb[0].mxu0 %v1682
  %v1816 = vpop.f32.mrb[0].mxu0
  %v1817 = vadd.f32 0.0, %v1816
  %v1818 = vpop.f32.mrb[0].mxu0
  %v1819 = vadd.f32 0.0, %v1818
  %1820 = vdwg.mxu0
  %1821 = vmatprep.subr.mxu0 0.0
  %1822 = vmatpush1.msra.mxu0 %v1698
  %1823 = vmatprep.subr.mxu0 0.0
  %1824 = vmatpush1.msra.mxu0 %v1701
  %1825 = vmatprep.subr.mxu0 0.0
  %1826 = vmatpush1.msra.mxu0 %v1704
  %1827 = vmatprep.subr.mxu0 0.0
  %1828 = vmatpush1.msra.mxu0 %v1707
  %1829 = vmatprep.subr.mxu0 0.0
  %1830 = vmatpush1.msra.mxu0 %v1710
  %1831 = vmatprep.subr.mxu0 0.0
  %1832 = vmatpush1.msra.mxu0 %v1713
  %1833 = vmatprep.subr.mxu0 0.0
  %1834 = vmatpush1.msra.mxu0 %v1716
  %1835 = vmatprep.subr.mxu0 0.0
  %1836 = vmatpush1.msra.mxu0 %v1719
  %1837 = vmatprep.subr.mxu0 0.0
  %1838 = vmatpush1.msra.mxu0 %v1722
  %1839 = vmatprep.subr.mxu0 0.0
  %1840 = vmatpush1.msra.mxu0 %v1725
  %1841 = vmatprep.subr.mxu0 0.0
  %1842 = vmatpush1.msra.mxu0 %v1728
  %1843 = vmatprep.subr.mxu0 0.0
  %1844 = vmatpush1.msra.mxu0 %v1731
  %1845 = vmatprep.subr.mxu0 0.0
  %1846 = vmatpush1.msra.mxu0 %v1734
  %1847 = vmatprep.subr.mxu0 0.0
  %1848 = vmatpush1.msra.mxu0 %v1737
  %1849 = vmatprep.subr.mxu0 0.0
  %1850 = vmatpush1.msra.mxu0 %v1740
  %1851 = vmatprep.subr.mxu0 0.0
  %1852 = vmatpush1.msra.mxu0 %v1743
  %1853 = vmatprep.subr.mxu0 0.0
  %1854 = vmatpush1.msra.mxu0 0.0
  %1855 = vmatprep.subr.mxu0 0.0
  %1856 = vmatpush1.msra.mxu0 0.0
  %1857 = vmatprep.subr.mxu0 0.0
  %1858 = vmatpush1.msra.mxu0 0.0
  %1859 = vmatprep.subr.mxu0 0.0
  %1860 = vmatpush1.msra.mxu0 0.0
  %1861 = vmatprep.subr.mxu0 0.0
  %1862 = vmatpush1.msra.mxu0 0.0
  %1863 = vmatprep.subr.mxu0 0.0
  %1864 = vmatpush1.msra.mxu0 0.0
  %1865 = vmatprep.subr.mxu0 0.0
  %1866 = vmatpush1.msra.mxu0 0.0
  %1867 = vmatprep.subr.mxu0 0.0
  %1868 = vmatpush1.msra.mxu0 0.0
  %1869 = vmatprep.subr.mxu0 0.0
  %1870 = vmatpush1.msra.mxu0 0.0
  %1871 = vmatprep.subr.mxu0 0.0
  %1872 = vmatpush1.msra.mxu0 0.0
  %1873 = vmatprep.subr.mxu0 0.0
  %1874 = vmatpush1.msra.mxu0 0.0
  %1875 = vmatprep.subr.mxu0 0.0
  %1876 = vmatpush1.msra.mxu0 0.0
  %1877 = vmatprep.subr.mxu0 0.0
  %1878 = vmatpush1.msra.mxu0 0.0
  %1879 = vmatprep.subr.mxu0 0.0
  %1880 = vmatpush1.msra.mxu0 0.0
  %1881 = vmatprep.subr.mxu0 0.0
  %1882 = vmatpush1.msra.mxu0 0.0
  %1883 = vmatprep.subr.mxu0 0.0
  %1884 = vmatpush1.msra.mxu0 0.0
  %1885 = vmatprep.mubr.f32.mxu0 0.0
  %1886 = vmatmul.mubr.f32.gmra.mrb[0].mxu0 %v1681
  %v1887 = vpop.f32.mrb[0].mxu0
  %v1888 = vadd.f32 0.0, %v1887
  %v1889 = vpop.f32.mrb[0].mxu0
  %1890 = vmatprep.mubr.f32.mxu0 0.0
  %1891 = vmatmul.mubr.f32.gmra.mrb[0].mxu0 %v1682
  %v1892 = vpop.f32.mrb[0].mxu0
  %v1893 = vadd.f32 0.0, %v1892
  %v1894 = vpop.f32.mrb[0].mxu0
  %1895 = vdwg.mxu0
  %v1896 = vpack.c.bf16 %v1817, %v1811
  %v1897 = vpack.c.bf16 %v1819, %v1813
  %v1899 = vsel %vm526, %v1896, 0
  %v1902 = vsel %vm526, %v1897, 0
  %1904 = vmatprep.subr.bf16.mxu0 %v1902
  %1905 = vmatpush1.bf16.msra.mxu0 %v1899
  %1906 = vmatprep.subr.bf16.mxu0 0
  %1907 = vmatpush1.bf16.msra.mxu0 0
  %1908 = vmatprep.subr.bf16.mxu0 0
  %1909 = vmatpush1.bf16.msra.mxu0 0
  %1910 = vmatprep.subr.bf16.mxu0 0
  %1911 = vmatpush1.bf16.msra.mxu0 0
  %1912 = vmatprep.subr.bf16.mxu0 0
  %1913 = vmatpush1.bf16.msra.mxu0 0
  %1914 = vmatprep.subr.bf16.mxu0 0
  %1915 = vmatpush1.bf16.msra.mxu0 0
  %1916 = vmatprep.subr.bf16.mxu0 0
  %1917 = vmatpush1.bf16.msra.mxu0 0
  %1918 = vmatprep.subr.bf16.mxu0 0
  %1919 = vmatpush1.bf16.msra.mxu0 0
  %1920 = vmatprep.subr.bf16.mxu0 0
  %1921 = vmatpush1.bf16.msra.mxu0 0
  %1922 = vmatprep.subr.bf16.mxu0 0
  %1923 = vmatpush1.bf16.msra.mxu0 0
  %1924 = vmatprep.subr.bf16.mxu0 0
  %1925 = vmatpush1.bf16.msra.mxu0 0
  %1926 = vmatprep.subr.bf16.mxu0 0
  %1927 = vmatpush1.bf16.msra.mxu0 0
  %1928 = vmatprep.subr.bf16.mxu0 0
  %1929 = vmatpush1.bf16.msra.mxu0 0
  %1930 = vmatprep.subr.bf16.mxu0 0
  %1931 = vmatpush1.bf16.msra.mxu0 0
  %1932 = vmatprep.subr.bf16.mxu0 0
  %1933 = vmatpush1.bf16.msra.mxu0 0
  %1934 = vmatprep.subr.bf16.mxu0 0
  %1935 = vmatpush1.bf16.msra.mxu0 0
  %1936 = vmatprep.mubr.bf16.mxu0 0
  %1937 = vmatmul.mubr.bf16.gmra.mrb[0].mxu0 %v521
  %v1938 = vpop.f32.mrb[0].mxu0
  %v1939 = vadd.f32 0.0, %v1938
  %v1940 = vpop.f32.mrb[0].mxu0
  %v1941 = vadd.f32 0.0, %v1940
  %v1942 = vpop.f32.mrb[0].mxu0
  %v1943 = vadd.f32 0.0, %v1942
  %v1944 = vpop.f32.mrb[0].mxu0
  %v1945 = vadd.f32 0.0, %v1944
  %1946 = vmatprep.mubr.bf16.mxu0 0
  %1947 = vmatmul.mubr.bf16.gmra.mrb[0].mxu0 %v524
  %v1948 = vpop.f32.mrb[0].mxu0
  %v1949 = vadd.f32 0.0, %v1948
  %v1950 = vpop.f32.mrb[0].mxu0
  %v1951 = vadd.f32 0.0, %v1950
  %v1952 = vpop.f32.mrb[0].mxu0
  %v1953 = vpop.f32.mrb[0].mxu0
  %1954 = vdwg.mxu0
  %v1955 = vpack.c.bf16 %v1893, %v1888
  %v1957 = vsel %vm526, %v1955, 0
  %1959 = vmatprep.subr.bf16.mxu0 0
  %1960 = vmatpush1.bf16.msra.mxu0 %v1957
  %1961 = vmatprep.subr.bf16.mxu0 0
  %1962 = vmatpush1.bf16.msra.mxu0 0
  %1963 = vmatprep.subr.bf16.mxu0 0
  %1964 = vmatpush1.bf16.msra.mxu0 0
  %1965 = vmatprep.subr.bf16.mxu0 0
  %1966 = vmatpush1.bf16.msra.mxu0 0
  %1967 = vmatprep.subr.bf16.mxu0 0
  %1968 = vmatpush1.bf16.msra.mxu0 0
  %1969 = vmatprep.subr.bf16.mxu0 0
  %1970 = vmatpush1.bf16.msra.mxu0 0
  %1971 = vmatprep.subr.bf16.mxu0 0
  %1972 = vmatpush1.bf16.msra.mxu0 0
  %1973 = vmatprep.subr.bf16.mxu0 0
  %1974 = vmatpush1.bf16.msra.mxu0 0
  %1975 = vmatprep.subr.bf16.mxu0 0
  %1976 = vmatpush1.bf16.msra.mxu0 0
  %1977 = vmatprep.subr.bf16.mxu0 0
  %1978 = vmatpush1.bf16.msra.mxu0 0
  %1979 = vmatprep.subr.bf16.mxu0 0
  %1980 = vmatpush1.bf16.msra.mxu0 0
  %1981 = vmatprep.subr.bf16.mxu0 0
  %1982 = vmatpush1.bf16.msra.mxu0 0
  %1983 = vmatprep.subr.bf16.mxu0 0
  %1984 = vmatpush1.bf16.msra.mxu0 0
  %1985 = vmatprep.subr.bf16.mxu0 0
  %1986 = vmatpush1.bf16.msra.mxu0 0
  %1987 = vmatprep.subr.bf16.mxu0 0
  %1988 = vmatpush1.bf16.msra.mxu0 0
  %1989 = vmatprep.subr.bf16.mxu0 0
  %1990 = vmatpush1.bf16.msra.mxu0 0
  %1991 = vmatprep.mubr.bf16.mxu0 0
  %1992 = vmatmul.mubr.bf16.gmra.mrb[0].mxu0 %v586
  %v1993 = vpop.f32.mrb[0].mxu0
  %v1994 = vadd.f32 0.0, %v1993
  %v1995 = vpop.f32.mrb[0].mxu0
  %v1996 = vpop.f32.mrb[0].mxu0
  %v1997 = vadd.f32 0.0, %v1996
  %v1998 = vpop.f32.mrb[0].mxu0
  %1999 = vmatprep.mubr.bf16.mxu0 0
  %2000 = vmatmul.mubr.bf16.gmra.mrb[0].mxu0 %v589
  %v2001 = vpop.f32.mrb[0].mxu0
  %v2002 = vadd.f32 0.0, %v2001
  %v2003 = vpop.f32.mrb[0].mxu0
  %v2004 = vpop.f32.mrb[0].mxu0
  %v2005 = vpop.f32.mrb[0].mxu0
  %2006 = vdwg.mxu0
  %v2008 = vlaneseq
  %v2009 = vshrl.u32 %v2008, 7
  %v2010 = vsub.s32 0, %v2009
  %v2011 = vrot.slane %v1686, %v2010
  %v2013 = vadd.f32 %v1939, %v2011
  %v2014 = vadd.f32 %v1943, %v2011
  %v2015 = vadd.f32 %v1949, %v2011
  %v2016 = vld [vmem:[%s21] sm:$0xff]
  %v2017 = vld [vmem:[%s21 + $0x8] sm:$0xff]
  %v2018 = vld [vmem:[%s21 + $0x10] sm:$0xff]
  %v2019 = vld [vmem:[%s21 + $0x18] sm:$0xff]
  %v2020 = vld [vmem:[%s21 + $0x20] sm:$0xff]
  %v2021 = vld [vmem:[%s21 + $0x28] sm:$0xff]
  %v2022 = vld [vmem:[%s21 + $0x30] sm:$0xff]
  %v2023 = vld [vmem:[%s21 + $0x38] sm:$0xff]
  %v2024 = vld [vmem:[%s21 + $0x40] sm:$0xff]
  %v2025 = vld [vmem:[%s21 + $0x48] sm:$0xff]
  %v2026 = vld [vmem:[%s21 + $0x50] sm:$0xff]
  %v2027 = vld [vmem:[%s21 + $0x58] sm:$0xff]
  %v2028 = vld [vmem:[%s21 + $0x60] sm:$0xff]
  %v2029 = vld [vmem:[%s21 + $0x68] sm:$0xff]
  %v2030 = vld [vmem:[%s21 + $0x70] sm:$0xff]
  %v2031 = vld [vmem:[%s21 + $0x78] sm:$0xff]
  %2032 = vmatprep.subr.mxu0 0.0
  %2033 = vmatpush1.msra.mxu0 %v2016
  %2034 = vmatprep.subr.mxu0 0.0
  %2035 = vmatpush1.msra.mxu0 %v2017
  %2036 = vmatprep.subr.mxu0 0.0
  %2037 = vmatpush1.msra.mxu0 %v2018
  %2038 = vmatprep.subr.mxu0 0.0
  %2039 = vmatpush1.msra.mxu0 %v2019
  %2040 = vmatprep.subr.mxu0 0.0
  %2041 = vmatpush1.msra.mxu0 %v2020
  %2042 = vmatprep.subr.mxu0 0.0
  %2043 = vmatpush1.msra.mxu0 %v2021
  %2044 = vmatprep.subr.mxu0 0.0
  %2045 = vmatpush1.msra.mxu0 %v2022
  %2046 = vmatprep.subr.mxu0 0.0
  %2047 = vmatpush1.msra.mxu0 %v2023
  %2048 = vmatprep.subr.mxu0 0.0
  %2049 = vmatpush1.msra.mxu0 %v2024
  %2050 = vmatprep.subr.mxu0 0.0
  %2051 = vmatpush1.msra.mxu0 %v2025
  %2052 = vmatprep.subr.mxu0 0.0
  %2053 = vmatpush1.msra.mxu0 %v2026
  %2054 = vmatprep.subr.mxu0 0.0
  %2055 = vmatpush1.msra.mxu0 %v2027
  %2056 = vmatprep.subr.mxu0 0.0
  %2057 = vmatpush1.msra.mxu0 %v2028
  %2058 = vmatprep.subr.mxu0 0.0
  %2059 = vmatpush1.msra.mxu0 %v2029
  %2060 = vmatprep.subr.mxu0 0.0
  %2061 = vmatpush1.msra.mxu0 %v2030
  %2062 = vmatprep.subr.mxu0 0.0
  %2063 = vmatpush1.msra.mxu0 %v2031
  %2064 = vmatprep.subr.mxu0 0.0
  %2065 = vmatpush1.msra.mxu0 0.0
  %2066 = vmatprep.subr.mxu0 0.0
  %2067 = vmatpush1.msra.mxu0 0.0
  %2068 = vmatprep.subr.mxu0 0.0
  %2069 = vmatpush1.msra.mxu0 0.0
  %2070 = vmatprep.subr.mxu0 0.0
  %2071 = vmatpush1.msra.mxu0 0.0
  %2072 = vmatprep.subr.mxu0 0.0
  %2073 = vmatpush1.msra.mxu0 0.0
  %2074 = vmatprep.subr.mxu0 0.0
  %2075 = vmatpush1.msra.mxu0 0.0
  %2076 = vmatprep.subr.mxu0 0.0
  %2077 = vmatpush1.msra.mxu0 0.0
  %2078 = vmatprep.subr.mxu0 0.0
  %2079 = vmatpush1.msra.mxu0 0.0
  %2080 = vmatprep.subr.mxu0 0.0
  %2081 = vmatpush1.msra.mxu0 0.0
  %2082 = vmatprep.subr.mxu0 0.0
  %2083 = vmatpush1.msra.mxu0 0.0
  %2084 = vmatprep.subr.mxu0 0.0
  %2085 = vmatpush1.msra.mxu0 0.0
  %2086 = vmatprep.subr.mxu0 0.0
  %2087 = vmatpush1.msra.mxu0 0.0
  %2088 = vmatprep.subr.mxu0 0.0
  %2089 = vmatpush1.msra.mxu0 0.0
  %2090 = vmatprep.subr.mxu0 0.0
  %2091 = vmatpush1.msra.mxu0 0.0
  %2092 = vmatprep.subr.mxu0 0.0
  %2093 = vmatpush1.msra.mxu0 0.0
  %2094 = vmatprep.subr.mxu0 0.0
  %2095 = vmatpush1.msra.mxu0 0.0
  %2096 = vmatprep.mubr.f32.mxu0 0.0
  %2097 = vmatmul.mubr.f32.gmra.mrb[0].mxu0 %v1683
  %v2098 = vpop.f32.mrb[0].mxu0
  %v2099 = vadd.f32 0.0, %v2098
  %v2100 = vpop.f32.mrb[0].mxu0
  %2101 = vmatprep.mubr.f32.mxu0 0.0
  %2102 = vmatmul.mubr.f32.gmra.mrb[0].mxu0 %v1684
  %v2103 = vpop.f32.mrb[0].mxu0
  %v2104 = vadd.f32 0.0, %v2103
  %v2105 = vpop.f32.mrb[0].mxu0
  %2106 = vmatprep.mubr.f32.mxu0 0.0
  %2107 = vmatmul.mubr.f32.gmra.mrb[0].mxu0 %v1685
  %v2108 = vpop.f32.mrb[0].mxu0
  %v2109 = vadd.f32 0.0, %v2108
  %v2110 = vpop.f32.mrb[0].mxu0
  %2111 = vdwg.mxu0
  %v2112 = vadd.f32 %v1941, %v1994
  %v2113 = vadd.f32 %v1945, %v1997
  %v2114 = vadd.f32 %v1951, %v2002
  %v2115 = vadd.f32 %v2112, %v2099
  %v2116 = vadd.f32 %v2113, %v2104
  %v2117 = vadd.f32 %v2114, %v2109
  %v2119 = vlaneseq
  %v2120 = vshrl.u32 %v2119, 7
  %v2121 = vsub.s32 0, %v2120
  %v2122 = vrot.slane %v1687, %v2121
  %v2124 = vadd.f32 %v2115, %v2122
  %v2125 = vadd.f32 %v2116, %v2122
  %v2126 = vadd.f32 %v2117, %v2122
  %vm2127 = vcmp.gt.f32.partialorder %v2124, 0.0
  %vm2128 = vcmp.gt.f32.partialorder %v2125, 0.0
  %vm2129 = vcmp.gt.f32.partialorder %v2126, 0.0
  %v2130 = vmul.f32 %v2124, 0.01
  %v2131 = vmul.f32 %v2125, 0.01
  %v2132 = vmul.f32 %v2126, 0.01
  %v2133 = vsel %vm2127, %v2124, %v2130
  %v2134 = vsel %vm2128, %v2125, %v2131
  %v2135 = vsel %vm2129, %v2126, %v2132
  %v2137 = vsel %vm766, %v2133, 0
  %v2140 = vsel %vm766, %v2134, 0
  %v2143 = vsel %vm766, %v2135, 0
  %2145 = vmatprep.subr.mxu0 0.0
  %2146 = vmatpush1.msra.mxu0 %v1688
  %2147 = vmatprep.subr.mxu0 0.0
  %2148 = vmatpush1.msra.mxu0 %v1689
  %2149 = vmatprep.subr.mxu0 0.0
  %2150 = vmatpush1.msra.mxu0 %v1690
  %2151 = vmatprep.subr.mxu0 0.0
  %2152 = vmatpush1.msra.mxu0 %v1691
  %2153 = vmatprep.subr.mxu0 0.0
  %2154 = vmatpush1.msra.mxu0 %v1692
  %2155 = vmatprep.subr.mxu0 0.0
  %2156 = vmatpush1.msra.mxu0 %v1693
  %2157 = vmatprep.subr.mxu0 0.0
  %2158 = vmatpush1.msra.mxu0 %v1694
  %2159 = vmatprep.subr.mxu0 0.0
  %2160 = vmatpush1.msra.mxu0 %v1695
  %2161 = vmatprep.subr.mxu0 0.0
  %2162 = vmatpush1.msra.mxu0 0.0
  %2163 = vmatprep.subr.mxu0 0.0
  %2164 = vmatpush1.msra.mxu0 0.0
  %2165 = vmatprep.subr.mxu0 0.0
  %2166 = vmatpush1.msra.mxu0 0.0
  %2167 = vmatprep.subr.mxu0 0.0
  %2168 = vmatpush1.msra.mxu0 0.0
  %2169 = vmatprep.subr.mxu0 0.0
  %2170 = vmatpush1.msra.mxu0 0.0
  %2171 = vmatprep.subr.mxu0 0.0
  %2172 = vmatpush1.msra.mxu0 0.0
  %2173 = vmatprep.subr.mxu0 0.0
  %2174 = vmatpush1.msra.mxu0 0.0
  %2175 = vmatprep.subr.mxu0 0.0
  %2176 = vmatpush1.msra.mxu0 0.0
  %2177 = vmatprep.subr.mxu0 0.0
  %2178 = vmatpush1.msra.mxu0 0.0
  %2179 = vmatprep.subr.mxu0 0.0
  %2180 = vmatpush1.msra.mxu0 0.0
  %2181 = vmatprep.subr.mxu0 0.0
  %2182 = vmatpush1.msra.mxu0 0.0
  %2183 = vmatprep.subr.mxu0 0.0
  %2184 = vmatpush1.msra.mxu0 0.0
  %2185 = vmatprep.subr.mxu0 0.0
  %2186 = vmatpush1.msra.mxu0 0.0
  %2187 = vmatprep.subr.mxu0 0.0
  %2188 = vmatpush1.msra.mxu0 0.0
  %2189 = vmatprep.subr.mxu0 0.0
  %2190 = vmatpush1.msra.mxu0 0.0
  %2191 = vmatprep.subr.mxu0 0.0
  %2192 = vmatpush1.msra.mxu0 0.0
  %2193 = vmatprep.subr.mxu0 0.0
  %2194 = vmatpush1.msra.mxu0 0.0
  %2195 = vmatprep.subr.mxu0 0.0
  %2196 = vmatpush1.msra.mxu0 0.0
  %2197 = vmatprep.subr.mxu0 0.0
  %2198 = vmatpush1.msra.mxu0 0.0
  %2199 = vmatprep.subr.mxu0 0.0
  %2200 = vmatpush1.msra.mxu0 0.0
  %2201 = vmatprep.subr.mxu0 0.0
  %2202 = vmatpush1.msra.mxu0 0.0
  %2203 = vmatprep.subr.mxu0 0.0
  %2204 = vmatpush1.msra.mxu0 0.0
  %2205 = vmatprep.subr.mxu0 0.0
  %2206 = vmatpush1.msra.mxu0 0.0
  %2207 = vmatprep.subr.mxu0 0.0
  %2208 = vmatpush1.msra.mxu0 0.0
  %2209 = vmatprep.mubr.f32.mxu0 0.0
  %2210 = vmatmul.mubr.f32.gmra.mrb[0].mxu0 %v2137
  %v2211 = vpop.f32.mrb[0].mxu0
  %v2212 = vadd.f32 0.0, %v2211
  %v2213 = vpop.f32.mrb[0].mxu0
  %2214 = vmatprep.mubr.f32.mxu0 0.0
  %2215 = vmatmul.mubr.f32.gmra.mrb[0].mxu0 %v2140
  %v2216 = vpop.f32.mrb[0].mxu0
  %v2217 = vadd.f32 0.0, %v2216
  %v2218 = vpop.f32.mrb[0].mxu0
  %2219 = vmatprep.mubr.f32.mxu0 0.0
  %2220 = vmatmul.mubr.f32.gmra.mrb[0].mxu0 %v2143
  %v2221 = vpop.f32.mrb[0].mxu0
  %v2222 = vadd.f32 0.0, %v2221
  %v2223 = vpop.f32.mrb[0].mxu0
  %2224 = vdwg.mxu0
  %v2225 = vsel %vm856, %v2212, -inf
  %v2226 = vsel %vm856, %v2217, -inf
  %v2227 = vsel %vm856, %v2222, -inf
  %v2228 = vmax.f32 %v2225, %v2226
  %v2229 = vmax.f32 %v2228, %v2227
  %v2230 = vrot.slane %v2229, 4
  %v2231 = vmax.f32 %v2229, %v2230
  %v2232 = vrot.slane %v2231, 2
  %v2233 = vmax.f32 %v2231, %v2232
  %v2234 = vrot.slane %v2233, 1
  %v2235 = vmax.f32 %v2233, %v2234
  %v2236 = vsub.f32 %v2212, %v2235
  %v2237 = vsub.f32 %v2217, %v2235
  %v2238 = vsub.f32 %v2222, %v2235
  %v2239 = vmul.f32 %v2236, 1.442695
  %v2240 = vpow.pop %v2239
  %v2241 = vmul.f32 %v2237, 1.442695
  %v2242 = vpow.pop %v2241
  %v2243 = vmul.f32 %v2238, 1.442695
  %v2244 = vpow.pop %v2243
  %2246 = vset.pattern.permute.xlu0 0
  %2247 = vperm.xlu0 %2246, %v2240
  %v2248 = vpop.permute.xlu0 %2247
  %2251 = vset.pattern.permute.xlu0 0
  %2252 = vperm.xlu0 %2251, %v2242
  %v2253 = vpop.permute.xlu0 %2252
  %2256 = vset.pattern.permute.xlu0 0
  %2257 = vperm.xlu0 %2256, %v2244
  %v2258 = vpop.permute.xlu0 %2257
  %2260 = vset.pattern.permute.xlu0 1
  %2261 = vperm.xlu0 %2260, %v2240
  %v2262 = vpop.permute.xlu0 %2261
  %2264 = vset.pattern.permute.xlu0 1
  %2265 = vperm.xlu0 %2264, %v2242
  %v2266 = vpop.permute.xlu0 %2265
  %2268 = vset.pattern.permute.xlu0 1
  %2269 = vperm.xlu0 %2268, %v2244
  %v2270 = vpop.permute.xlu0 %2269
  %v2272 = vsel %vm904, %v2248, %v2262
  %v2273 = vsel %vm904, %v2253, %v2266
  %v2274 = vsel %vm904, %v2258, %v2270
  %v2275 = vmul.f32 %v2013, %v2272
  %v2276 = vmul.f32 %v2014, %v2273
  %v2277 = vmul.f32 %v2015, %v2274
  %2278 = vrot.lane.b32.xlu0 %v2240, 64
  %v2279 = vpop.permute.xlu0 %2278
  %2280 = vrot.lane.b32.xlu0 %v2242, 64
  %v2281 = vpop.permute.xlu0 %2280
  %2282 = vrot.lane.b32.xlu0 %v2244, 64
  %v2283 = vpop.permute.xlu0 %2282
  %v2287 = vsel %vm766, %v2275, %v2279
  %v2288 = vsel %vm766, %v2276, %v2281
  %v2289 = vsel %vm766, %v2277, %v2283
  %v2290 = vpack.c.bf16 %v2288, %v2287
  %v2291 = vpack.c.bf16 %v2289, %v2289
  %v2293 = vsel %vm255, %v2291, 0
  %2295 = vmatprep.subr.bf16.mxu0 0
  %2296 = vmatpush1.bf16.msra.mxu0 %v2290
  %2297 = vmatprep.subr.bf16.mxu0 0
  %2298 = vmatpush1.bf16.msra.mxu0 %v2293
  %2299 = vmatprep.subr.bf16.mxu0 0
  %2300 = vmatpush1.bf16.msra.mxu0 0
  %2301 = vmatprep.subr.bf16.mxu0 0
  %2302 = vmatpush1.bf16.msra.mxu0 0
  %2303 = vmatprep.subr.bf16.mxu0 0
  %2304 = vmatpush1.bf16.msra.mxu0 0
  %2305 = vmatprep.subr.bf16.mxu0 0
  %2306 = vmatpush1.bf16.msra.mxu0 0
  %2307 = vmatprep.subr.bf16.mxu0 0
  %2308 = vmatpush1.bf16.msra.mxu0 0
  %2309 = vmatprep.subr.bf16.mxu0 0
  %2310 = vmatpush1.bf16.msra.mxu0 0
  %2311 = vmatprep.subr.bf16.mxu0 0
  %2312 = vmatpush1.bf16.msra.mxu0 0
  %2313 = vmatprep.subr.bf16.mxu0 0
  %2314 = vmatpush1.bf16.msra.mxu0 0
  %2315 = vmatprep.subr.bf16.mxu0 0
  %2316 = vmatpush1.bf16.msra.mxu0 0
  %2317 = vmatprep.subr.bf16.mxu0 0
  %2318 = vmatpush1.bf16.msra.mxu0 0
  %2319 = vmatprep.subr.bf16.mxu0 0
  %2320 = vmatpush1.bf16.msra.mxu0 0
  %2321 = vmatprep.subr.bf16.mxu0 0
  %2322 = vmatpush1.bf16.msra.mxu0 0
  %2323 = vmatprep.subr.bf16.mxu0 0
  %2324 = vmatpush1.bf16.msra.mxu0 0
  %2325 = vmatprep.subr.bf16.mxu0 0
  %2326 = vmatpush1.bf16.msra.mxu0 0
  %2327 = vmatprep.mubr.bf16.mxu0 0
  %2328 = vmatmul.mubr.bf16.gmra.mrb[0].mxu0 %v943
  %v2329 = vpop.f32.mrb[0].mxu0
  %v2330 = vadd.f32 0.0, %v2329
  %v2331 = vpop.f32.mrb[0].mxu0
  %v2332 = vpop.f32.mrb[0].mxu0
  %v2333 = vadd.f32 0.0, %v2332
  %v2334 = vpop.f32.mrb[0].mxu0
  %2335 = vdwg.mxu0
  %vm2336 = vcmp.gt.f32.partialorder %v2330, 0.0
  %vm2337 = vcmp.gt.f32.partialorder %v2333, 0.0
  %v2338 = vsel %vm2336, %v2330, 1.0
  %v2339 = vsel %vm2337, %v2333, 1.0
  %v2340 = vrcp.pop %v2338
  %v2341 = vrcp.pop %v2339
  %v2342 = vsel %vm2336, %v2340, 0.0
  %v2343 = vsel %vm2337, %v2341, 0.0
  %2345 = vset.pattern.permute.xlu0 64
  %2346 = vperm.xlu0 %2345, %v2342
  %v2347 = vpop.permute.xlu0 %2346
  %2350 = vset.pattern.permute.xlu0 64
  %2351 = vperm.xlu0 %2350, %v2343
  %v2352 = vpop.permute.xlu0 %2351
  %2354 = vset.pattern.permute.xlu0 65
  %2355 = vperm.xlu0 %2354, %v2342
  %v2356 = vpop.permute.xlu0 %2355
  %2358 = vset.pattern.permute.xlu0 65
  %2359 = vperm.xlu0 %2358, %v2343
  %v2360 = vpop.permute.xlu0 %2359
  %v2362 = vsel %vm904, %v2347, %v2356
  %v2363 = vsel %vm904, %v2352, %v2360
  %v2364 = vmul.f32 %v2330, %v2362
  %v2365 = vmul.f32 %v2333, %v2363
  %v2366 = vmax.f32 %v2364, 0.0
  %v2367 = vmax.f32 %v2365, 0.0
  %v2368 = vld [vmem:[%s4] sm:$0xff]
  %v2369 = vld [vmem:[%s4 + $0x8] sm:$0xf]
  %2370 = vset.pattern.permute.xlu0 0
  %2371 = vperm.xlu0 %2370, %v2368
  %v2372 = vpop.permute.xlu0 %2371
  %2373 = vset.pattern.permute.xlu0 0
  %2374 = vperm.xlu0 %2373, %v2369
  %v2375 = vpop.permute.xlu0 %2374
  %vm2376 = vcmp.eq.s32.totalorder %v93, %v2372
  %vm2377 = vcmp.eq.s32.totalorder %v93, %v2375
  %v2378 = vsel %vm2376, 1, 0
  %v2379 = vsel %vm2377, 1, 0
  %v2380 = vcvt.s32.f32 %v2378
  %v2381 = vcvt.s32.f32 %v2379
  %2382 = vxpose.xlu0.b32.start [1/16] %v2380, 128
  %2383 = vxpose.xlu0.b32.cont [2/16] %v2381, 128
  %2384 = vxpose.xlu0.b32.cont [3/16] 0.0, 128
  %2385 = vxpose.xlu0.b32.cont [4/16] 0.0, 128
  %2386 = vxpose.xlu0.b32.cont [5/16] 0.0, 128
  %2387 = vxpose.xlu0.b32.cont [6/16] 0.0, 128
  %2388 = vxpose.xlu0.b32.cont [7/16] 0.0, 128
  %2389 = vxpose.xlu0.b32.cont [8/16] 0.0, 128
  %2390 = vxpose.xlu0.b32.cont [9/16] 0.0, 128
  %2391 = vxpose.xlu0.b32.cont [10/16] 0.0, 128
  %2392 = vxpose.xlu0.b32.cont [11/16] 0.0, 128
  %2393 = vxpose.xlu0.b32.cont [12/16] 0.0, 128
  %2394 = vxpose.xlu0.b32.cont [13/16] 0.0, 128
  %2395 = vxpose.xlu0.b32.cont [14/16] 0.0, 128
  %2396 = vxpose.xlu0.b32.cont [15/16] 0.0, 128
  %2397 = vxpose.xlu0.b32.end [16/16] 0.0, 128
  %v2398 = vpop.trf.xlu0
  %v2399 = vpop.trf.xlu0
  %v2400 = vpop.trf.xlu0
  %v2401 = vpop.trf.xlu0
  %v2402 = vpop.trf.xlu0
  %v2403 = vpop.trf.xlu0
  %v2404 = vpop.trf.xlu0
  %v2405 = vpop.trf.xlu0
  %v2406 = vpop.trf.xlu0
  %v2407 = vpop.trf.xlu0
  %v2408 = vpop.trf.xlu0
  %v2409 = vpop.trf.xlu0
  %v2410 = vpop.trf.xlu0
  %v2411 = vpop.trf.xlu0
  %v2412 = vpop.trf.xlu0
  %v2413 = vpop.trf.xlu0
  %v2415 = vsel %vm519, %v2398, 0
  %v2418 = vsel %vm255, %v2367, 0
  %2420 = vmatprep.subr.mxu0 0.0
  %2421 = vmatpush1.msra.mxu0 %v2366
  %2422 = vmatprep.subr.mxu0 0.0
  %2423 = vmatpush1.msra.mxu0 %v2418
  %2424 = vmatprep.subr.mxu0 0.0
  %2425 = vmatpush1.msra.mxu0 0.0
  %2426 = vmatprep.subr.mxu0 0.0
  %2427 = vmatpush1.msra.mxu0 0.0
  %2428 = vmatprep.subr.mxu0 0.0
  %2429 = vmatpush1.msra.mxu0 0.0
  %2430 = vmatprep.subr.mxu0 0.0
  %2431 = vmatpush1.msra.mxu0 0.0
  %2432 = vmatprep.subr.mxu0 0.0
  %2433 = vmatpush1.msra.mxu0 0.0
  %2434 = vmatprep.subr.mxu0 0.0
  %2435 = vmatpush1.msra.mxu0 0.0
  %2436 = vmatprep.subr.mxu0 0.0
  %2437 = vmatpush1.msra.mxu0 0.0
  %2438 = vmatprep.subr.mxu0 0.0
  %2439 = vmatpush1.msra.mxu0 0.0
  %2440 = vmatprep.subr.mxu0 0.0
  %2441 = vmatpush1.msra.mxu0 0.0
  %2442 = vmatprep.subr.mxu0 0.0
  %2443 = vmatpush1.msra.mxu0 0.0
  %2444 = vmatprep.subr.mxu0 0.0
  %2445 = vmatpush1.msra.mxu0 0.0
  %2446 = vmatprep.subr.mxu0 0.0
  %2447 = vmatpush1.msra.mxu0 0.0
  %2448 = vmatprep.subr.mxu0 0.0
  %2449 = vmatpush1.msra.mxu0 0.0
  %2450 = vmatprep.subr.mxu0 0.0
  %2451 = vmatpush1.msra.mxu0 0.0
  %2452 = vmatprep.subr.mxu0 0.0
  %2453 = vmatpush1.msra.mxu0 0.0
  %2454 = vmatprep.subr.mxu0 0.0
  %2455 = vmatpush1.msra.mxu0 0.0
  %2456 = vmatprep.subr.mxu0 0.0
  %2457 = vmatpush1.msra.mxu0 0.0
  %2458 = vmatprep.subr.mxu0 0.0
  %2459 = vmatpush1.msra.mxu0 0.0
  %2460 = vmatprep.subr.mxu0 0.0
  %2461 = vmatpush1.msra.mxu0 0.0
  %2462 = vmatprep.subr.mxu0 0.0
  %2463 = vmatpush1.msra.mxu0 0.0
  %2464 = vmatprep.subr.mxu0 0.0
  %2465 = vmatpush1.msra.mxu0 0.0
  %2466 = vmatprep.subr.mxu0 0.0
  %2467 = vmatpush1.msra.mxu0 0.0
  %2468 = vmatprep.subr.mxu0 0.0
  %2469 = vmatpush1.msra.mxu0 0.0
  %2470 = vmatprep.subr.mxu0 0.0
  %2471 = vmatpush1.msra.mxu0 0.0
  %2472 = vmatprep.subr.mxu0 0.0
  %2473 = vmatpush1.msra.mxu0 0.0
  %2474 = vmatprep.subr.mxu0 0.0
  %2475 = vmatpush1.msra.mxu0 0.0
  %2476 = vmatprep.subr.mxu0 0.0
  %2477 = vmatpush1.msra.mxu0 0.0
  %2478 = vmatprep.subr.mxu0 0.0
  %2479 = vmatpush1.msra.mxu0 0.0
  %2480 = vmatprep.subr.mxu0 0.0
  %2481 = vmatpush1.msra.mxu0 0.0
  %2482 = vmatprep.subr.mxu0 0.0
  %2483 = vmatpush1.msra.mxu0 0.0
  %2484 = vmatprep.mubr.f32.mxu0 0.0
  %2485 = vmatmul.mubr.f32.gmra.mrb[0].mxu0 %v2415
  %v2486 = vpop.f32.mrb[0].mxu0
  %v2487 = vadd.f32 0.0, %v2486
  %v2488 = vpop.f32.mrb[0].mxu0
  %2489 = vdwg.mxu0
  %v2490 = vld [vmem:[%s24] sm:$0xff]
  %v2491 = vld [vmem:[%s24 + $0x8] sm:$0xff]
  %v2492 = vld [vmem:[%s24 + $0x10] sm:$0xff]
  %v2493 = vld [vmem:[%s24 + $0x18] sm:$0xff]
  %v2494 = vld [vmem:[%s24 + $0x20] sm:$0xff]
  %v2495 = vld [vmem:[%s24 + $0x28] sm:$0xff]
  %v2496 = vld [vmem:[%s24 + $0x30] sm:$0xff]
  %v2497 = vld [vmem:[%s24 + $0x38] sm:$0xff]
  %v2498 = vld [vmem:[%s25] sm:$0x1]
  %v2500 = vlaneseq
  %v2501 = vshrl.u32 %v2500, 7
  %v2502 = vsub.s32 0, %v2501
  %v2503 = vrot.slane %v2498, %v2502
  %v2506 = vsel %vm766, %v2487, 0
  %2508 = vmatprep.subr.mxu0 0.0
  %2509 = vmatpush1.msra.mxu0 %v2490
  %2510 = vmatprep.subr.mxu0 0.0
  %2511 = vmatpush1.msra.mxu0 %v2491
  %2512 = vmatprep.subr.mxu0 0.0
  %2513 = vmatpush1.msra.mxu0 %v2492
  %2514 = vmatprep.subr.mxu0 0.0
  %2515 = vmatpush1.msra.mxu0 %v2493
  %2516 = vmatprep.subr.mxu0 0.0
  %2517 = vmatpush1.msra.mxu0 %v2494
  %2518 = vmatprep.subr.mxu0 0.0
  %2519 = vmatpush1.msra.mxu0 %v2495
  %2520 = vmatprep.subr.mxu0 0.0
  %2521 = vmatpush1.msra.mxu0 %v2496
  %2522 = vmatprep.subr.mxu0 0.0
  %2523 = vmatpush1.msra.mxu0 %v2497
  %2524 = vmatprep.subr.mxu0 0.0
  %2525 = vmatpush1.msra.mxu0 0.0
  %2526 = vmatprep.subr.mxu0 0.0
  %2527 = vmatpush1.msra.mxu0 0.0
  %2528 = vmatprep.subr.mxu0 0.0
  %2529 = vmatpush1.msra.mxu0 0.0
  %2530 = vmatprep.subr.mxu0 0.0
  %2531 = vmatpush1.msra.mxu0 0.0
  %2532 = vmatprep.subr.mxu0 0.0
  %2533 = vmatpush1.msra.mxu0 0.0
  %2534 = vmatprep.subr.mxu0 0.0
  %2535 = vmatpush1.msra.mxu0 0.0
  %2536 = vmatprep.subr.mxu0 0.0
  %2537 = vmatpush1.msra.mxu0 0.0
  %2538 = vmatprep.subr.mxu0 0.0
  %2539 = vmatpush1.msra.mxu0 0.0
  %2540 = vmatprep.subr.mxu0 0.0
  %2541 = vmatpush1.msra.mxu0 0.0
  %2542 = vmatprep.subr.mxu0 0.0
  %2543 = vmatpush1.msra.mxu0 0.0
  %2544 = vmatprep.subr.mxu0 0.0
  %2545 = vmatpush1.msra.mxu0 0.0
  %2546 = vmatprep.subr.mxu0 0.0
  %2547 = vmatpush1.msra.mxu0 0.0
  %2548 = vmatprep.subr.mxu0 0.0
  %2549 = vmatpush1.msra.mxu0 0.0
  %2550 = vmatprep.subr.mxu0 0.0
  %2551 = vmatpush1.msra.mxu0 0.0
  %2552 = vmatprep.subr.mxu0 0.0
  %2553 = vmatpush1.msra.mxu0 0.0
  %2554 = vmatprep.subr.mxu0 0.0
  %2555 = vmatpush1.msra.mxu0 0.0
  %2556 = vmatprep.subr.mxu0 0.0
  %2557 = vmatpush1.msra.mxu0 0.0
  %2558 = vmatprep.subr.mxu0 0.0
  %2559 = vmatpush1.msra.mxu0 0.0
  %2560 = vmatprep.subr.mxu0 0.0
  %2561 = vmatpush1.msra.mxu0 0.0
  %2562 = vmatprep.subr.mxu0 0.0
  %2563 = vmatpush1.msra.mxu0 0.0
  %2564 = vmatprep.subr.mxu0 0.0
  %2565 = vmatpush1.msra.mxu0 0.0
  %2566 = vmatprep.subr.mxu0 0.0
  %2567 = vmatpush1.msra.mxu0 0.0
  %2568 = vmatprep.subr.mxu0 0.0
  %2569 = vmatpush1.msra.mxu0 0.0
  %2570 = vmatprep.subr.mxu0 0.0
  %2571 = vmatpush1.msra.mxu0 0.0
  %2572 = vmatprep.mubr.f32.mxu0 0.0
  %2573 = vmatmul.mubr.f32.gmra.mrb[0].mxu0 %v2506
  %v2574 = vpop.f32.mrb[0].mxu0
  %v2575 = vadd.f32 %v2503, %v2574
  %v2576 = vpop.f32.mrb[0].mxu0
  %2577 = vdwg.mxu0
  %v2578 = vmax.f32 %v2575, 0.0
  %v2579 = vld [vmem:[%s26] sm:$0xff]
  %v2580 = vld [vmem:[%s26 + $0x8] sm:$0xff]
  %v2581 = vld [vmem:[%s26 + $0x10] sm:$0xff]
  %v2582 = vld [vmem:[%s26 + $0x18] sm:$0xff]
  %v2583 = vld [vmem:[#allocation2] sm:$0x1]
  %v2585 = vlaneseq
  %v2586 = vshrl.u32 %v2585, 7
  %v2587 = vsub.s32 0, %v2586
  %v2588 = vrot.slane %v2583, %v2587
  %v2591 = vsel %vm904, %v2578, 0
  %2593 = vmatprep.subr.mxu0 0.0
  %2594 = vmatpush1.msra.mxu0 %v2579
  %2595 = vmatprep.subr.mxu0 0.0
  %2596 = vmatpush1.msra.mxu0 %v2580
  %2597 = vmatprep.subr.mxu0 0.0
  %2598 = vmatpush1.msra.mxu0 %v2581
  %2599 = vmatprep.subr.mxu0 0.0
  %2600 = vmatpush1.msra.mxu0 %v2582
  %2601 = vmatprep.subr.mxu0 0.0
  %2602 = vmatpush1.msra.mxu0 0.0
  %2603 = vmatprep.subr.mxu0 0.0
  %2604 = vmatpush1.msra.mxu0 0.0
  %2605 = vmatprep.subr.mxu0 0.0
  %2606 = vmatpush1.msra.mxu0 0.0
  %2607 = vmatprep.subr.mxu0 0.0
  %2608 = vmatpush1.msra.mxu0 0.0
  %2609 = vmatprep.subr.mxu0 0.0
  %2610 = vmatpush1.msra.mxu0 0.0
  %2611 = vmatprep.subr.mxu0 0.0
  %2612 = vmatpush1.msra.mxu0 0.0
  %2613 = vmatprep.subr.mxu0 0.0
  %2614 = vmatpush1.msra.mxu0 0.0
  %2615 = vmatprep.subr.mxu0 0.0
  %2616 = vmatpush1.msra.mxu0 0.0
  %2617 = vmatprep.subr.mxu0 0.0
  %2618 = vmatpush1.msra.mxu0 0.0
  %2619 = vmatprep.subr.mxu0 0.0
  %2620 = vmatpush1.msra.mxu0 0.0
  %2621 = vmatprep.subr.mxu0 0.0
  %2622 = vmatpush1.msra.mxu0 0.0
  %2623 = vmatprep.subr.mxu0 0.0
  %2624 = vmatpush1.msra.mxu0 0.0
  %2625 = vmatprep.subr.mxu0 0.0
  %2626 = vmatpush1.msra.mxu0 0.0
  %2627 = vmatprep.subr.mxu0 0.0
  %2628 = vmatpush1.msra.mxu0 0.0
  %2629 = vmatprep.subr.mxu0 0.0
  %2630 = vmatpush1.msra.mxu0 0.0
  %2631 = vmatprep.subr.mxu0 0.0
  %2632 = vmatpush1.msra.mxu0 0.0
  %2633 = vmatprep.subr.mxu0 0.0
  %2634 = vmatpush1.msra.mxu0 0.0
  %2635 = vmatprep.subr.mxu0 0.0
  %2636 = vmatpush1.msra.mxu0 0.0
  %2637 = vmatprep.subr.mxu0 0.0
  %2638 = vmatpush1.msra.mxu0 0.0
  %2639 = vmatprep.subr.mxu0 0.0
  %2640 = vmatpush1.msra.mxu0 0.0
  %2641 = vmatprep.subr.mxu0 0.0
  %2642 = vmatpush1.msra.mxu0 0.0
  %2643 = vmatprep.subr.mxu0 0.0
  %2644 = vmatpush1.msra.mxu0 0.0
  %2645 = vmatprep.subr.mxu0 0.0
  %2646 = vmatpush1.msra.mxu0 0.0
  %2647 = vmatprep.subr.mxu0 0.0
  %2648 = vmatpush1.msra.mxu0 0.0
  %2649 = vmatprep.subr.mxu0 0.0
  %2650 = vmatpush1.msra.mxu0 0.0
  %2651 = vmatprep.subr.mxu0 0.0
  %2652 = vmatpush1.msra.mxu0 0.0
  %2653 = vmatprep.subr.mxu0 0.0
  %2654 = vmatpush1.msra.mxu0 0.0
  %2655 = vmatprep.subr.mxu0 0.0
  %2656 = vmatpush1.msra.mxu0 0.0
  %2657 = vmatprep.mubr.f32.mxu0 0.0
  %2658 = vmatmul.mubr.f32.gmra.mrb[0].mxu0 %v2591
  %v2659 = vpop.f32.mrb[0].mxu0
  %v2660 = vadd.f32 %v2588, %v2659
  %v2661 = vpop.f32.mrb[0].mxu0
  %2662 = vdwg.mxu0
  %vm2663 = vcmask 1024
  %2664 = vst.msk [vmem:[%s28] sm:$0x3] %vm2663, %v2660
  // Predicated region
  $region114: #{tpu_custom_call.1} parent=0 // pred_check
    _
  $region115: #{tpu_custom_call.1} parent=0 // pred_check_branch
    %2666 = sbr.rel (0) target = $region117
  $region116: #{tpu_custom_call.1} parent=0 // pred_region
    _
  $region117: #{tpu_custom_call.1} parent=0 // pred_fallthru
    _
  // Predicated region
  $region118: #{tpu_custom_call.1} parent=0 // pred_check
    _
  $region119: #{tpu_custom_call.1} parent=0 // pred_check_branch
    %2668 = sbr.rel (0) target = $region121
  $region120: #{tpu_custom_call.1} parent=0 // pred_region
    _
  $region121: #{tpu_custom_call.1} parent=0 // pred_fallthru
    _

</llo_original>
